<compile_context>
chip_gen: v7x
topology: tpu7x:2x2x1
jax: 0.10.0
libtpu: 0.0.40
codegen_flags: <defaults>
</compile_context>

<pallas_src>
import functools

import jax
import jax.numpy as jnp
from jax import lax
from jax.experimental import pallas as pl
from jax.experimental.pallas import tpu as pltpu


# ---------------------------------------------------------------------------
# Fused kernel: expand(1x1) -> depthwise(3x3, stride) -> project(1x1) (+res)
# ---------------------------------------------------------------------------
def _fused_block_kernel(xp_ref, w1_ref, b1_ref, w2_ref, b2_ref,
                        w3t_ref, b3t_ref, *rest,
                        H, W, THO, stride, has_residual, expand_on_mxu):
    if has_residual:
        wst_ref, bst_ref, o_ref = rest
    else:
        (o_ref,) = rest

    Wp = W + 2
    WO = (W - 1) // stride + 1
    RIN = (THO - 1) * stride + 3            # padded input rows needed by tile
    Cin, Cmid = w1_ref.shape

    t = pl.program_id(1)
    row_step = THO * stride
    r0 = pl.multiple_of(t * row_step, row_step)

    # Haloed input row window (small Cin-channel tensor; the whole padded
    # image stays resident in VMEM across the row-tile axis).
    xw = xp_ref[0, pl.ds(r0, RIN), :, :].astype(jnp.float32)     # (RIN, Wp, Cin)

    # ---- expand 1x1 (BN scale folded into w1) + bias + ReLU -----------------
    if expand_on_mxu:
        e = jnp.dot(xw.reshape(RIN * Wp, Cin),
                    w1_ref[...].astype(jnp.float32),
                    precision=lax.Precision.HIGHEST,
                    preferred_element_type=jnp.float32).reshape(RIN, Wp, Cmid)
    else:                                   # tiny Cin: degenerate K for the MXU
        w1 = w1_ref[...].astype(jnp.float32)
        e = xw[:, :, 0:1] * w1[0:1, :]
        for c in range(1, Cin):
            e = e + xw[:, :, c:c + 1] * w1[c:c + 1, :]
    e = jnp.maximum(e + b1_ref[...], 0.0)                        # (RIN, Wp, Cmid)

    # ---- zero the padded halo ring (padding is applied AFTER conv1/relu1 in
    # the reference module) -- one (RIN, Wp, 1) mask broadcast over channels.
    rows = r0 + lax.broadcasted_iota(jnp.int32, (RIN, Wp, 1), 0)
    cols = lax.broadcasted_iota(jnp.int32, (RIN, Wp, 1), 1)
    halo_ok = (rows >= 1) & (rows <= H) & (cols >= 1) & (cols <= W)
    e = e * halo_ok.astype(jnp.float32)

    # ---- depthwise 3x3 + bias + ReLU ----------------------------------------
    # kh bands are outer-axis (row) slices; the stride lives only on that axis.
    # TODO(synk): realize the kw shifts with pltpu.roll (XLU) instead of
    # sublane-offset lax.slice to drop the remaining relayout copies.
    w2 = w2_ref[...].astype(jnp.float32)
    acc = jnp.zeros((THO, W, Cmid), jnp.float32)
    for kh in range(3):
        band = lax.slice(e, (kh, 0, 0),
                         (kh + (THO - 1) * stride + 1, Wp, Cmid),
                         (stride, 1, 1))                         # (THO, Wp, Cmid)
        for kw in range(3):
            tap = lax.slice(band, (0, kw, 0), (THO, kw + W, Cmid))
            acc = acc + tap * w2[kh, kw, :]
    d = jnp.maximum(acc + b2_ref[...], 0.0)                      # (THO, W, Cmid)
    if stride > 1:                          # subsample columns once, at the end
        d = lax.slice(d, (0, 0, 0), (THO, (WO - 1) * stride + 1, Cmid),
                      (1, stride, 1))                            # (THO, WO, Cmid)

    # ---- project 1x1 on the MXU -> lane-dense (Cout, THO*WO) slab -----------
    dn = (((1,), (1,)), ((), ()))           # contract the trailing channel dims
    d2 = d.reshape(THO * WO, Cmid)
    out = lax.dot_general(w3t_ref[...].astype(jnp.float32), d2, dn,
                          precision=lax.Precision.HIGHEST,
                          preferred_element_type=jnp.float32) + b3t_ref[...]

    # ---- fused residual (stride == 1): reuse the already-loaded xw window ---
    if has_residual:                        # WO == W here
        xc = lax.slice(xw, (1, 1, 0),
                       (1 + THO, 1 + W, Cin)).reshape(THO * W, Cin)
        out = out + lax.dot_general(wst_ref[...].astype(jnp.float32), xc, dn,
                                    precision=lax.Precision.HIGHEST,
                                    preferred_element_type=jnp.float32)
        out = out + bst_ref[...]

    o_ref[0] = out.astype(o_ref.dtype)                           # (Cout, THO*WO)


# ---------------------------------------------------------------------------
# Wrapper: layout, BN folding, tiling, pallas_call
# ---------------------------------------------------------------------------
def _pick_row_tile(ho, max_tile):
    """Largest divisor of `ho` not exceeding `max_tile` (exact grid).  Note:
    degrades to 1 for prime `ho` -- a perf cliff, not a correctness bug."""
    t = max(1, min(max_tile, ho))
    while ho % t:
        t -= 1
    return t


def mobilenetv2_block(x_nchw, params, *, in_planes, out_planes, stride,
                      max_row_tile=None, storage_dtype=jnp.float32):
    """max_row_tile=None -> whole image per grid step (right call at CIFAR
    sizes; re-derive for v7x's 64 MiB VMEM at production shapes).
    storage_dtype: pass jnp.bfloat16 on v6e/v7x to halve HBM DMA bytes;
    biases and all accumulation stay f32."""
    N, Cin, H, W = x_nchw.shape
    assert Cin == in_planes
    x = jnp.transpose(x_nchw, (0, 2, 3, 1)).astype(jnp.float32)  # NCHW -> NHWC

    # Pre-fold BN scales into the conv weights (bias-only epilogue in-kernel).
    w1 = (params["w1"] * params["s1"]).astype(storage_dtype)     # (Cin, Cmid)
    w2 = (params["w2"] * params["s2"][0]).astype(storage_dtype)  # (3, 3, Cmid)
    w3t = (params["w3"] * params["s3"]).T.astype(storage_dtype)  # (Cout, Cmid)
    b1 = params["b1"].astype(jnp.float32)                        # (1, Cmid)
    b2 = params["b2"].astype(jnp.float32)                        # (1, Cmid)
    b3t = params["b3"].reshape(-1, 1).astype(jnp.float32)        # (Cout, 1)
    Cmid = w1.shape[1]
    Cout = w3t.shape[0]

    HO = (H - 1) // stride + 1
    WO = (W - 1) // stride + 1
    THO = HO if max_row_tile is None else _pick_row_tile(HO, max_row_tile)
    # (8,128) rule on the lane-dense output block when sub-tiling rows.
    assert THO == HO or (THO * WO) % 128 == 0, \
        "row tile must keep the flattened output lane dim 128-aligned"

    # One cheap spatial pad of the small Cin-channel input; the expansion-6
    # Cmid-channel intermediate never touches HBM.
    xp = jnp.pad(x, ((0, 0), (1, 1), (1, 1), (0, 0))).astype(storage_dtype)
    Hp, Wp = H + 2, W + 2

    has_residual = (stride == 1)
    operands = [xp, w1, b1, w2, b2, w3t, b3t]
    in_specs = [
        pl.BlockSpec((1, Hp, Wp, Cin), lambda n, t: (n, 0, 0, 0)),
        pl.BlockSpec((Cin, Cmid), lambda n, t: (0, 0)),
        pl.BlockSpec((1, Cmid), lambda n, t: (0, 0)),
        pl.BlockSpec((3, 3, Cmid), lambda n, t: (0, 0, 0)),
        pl.BlockSpec((1, Cmid), lambda n, t: (0, 0)),
        pl.BlockSpec((Cout, Cmid), lambda n, t: (0, 0)),
        pl.BlockSpec((Cout, 1), lambda n, t: (0, 0)),
    ]
    if has_residual:
        if in_planes != out_planes:
            wst = (params["ws"] * params["ss"]).T.astype(storage_dtype)
            bst = params["bs"].reshape(-1, 1).astype(jnp.float32)
        else:
            # Identity shortcut expressed as a projection by the identity
            # matrix: exact in f32, and it rides the same (idle) MXU path.
            wst = jnp.eye(Cin, dtype=storage_dtype)
            bst = jnp.zeros((Cout, 1), jnp.float32)
        operands += [wst, bst]
        in_specs += [pl.BlockSpec((Cout, Cin), lambda n, t: (0, 0)),
                     pl.BlockSpec((Cout, 1), lambda n, t: (0, 0))]

    kernel = functools.partial(
        _fused_block_kernel, H=H, W=W, THO=THO, stride=stride,
        has_residual=has_residual, expand_on_mxu=(in_planes >= 16))

    out_flat = pl.pallas_call(
        kernel,
        out_shape=jax.ShapeDtypeStruct((N, Cout, HO * WO), jnp.float32),
        grid=(N, HO // THO),
        in_specs=in_specs,
        out_specs=pl.BlockSpec((1, Cout, THO * WO), lambda n, t: (n, 0, t)),
        compiler_params=pltpu.CompilerParams(
            dimension_semantics=("parallel", "parallel")),
    )(*operands)

    # Lane-dense slab is already NCHW-flat: only a metadata reshape remains.
    return out_flat.reshape(N, Cout, HO, WO)


# ---------------------------------------------------------------------------
# Deterministic parameter construction (BN folded into scale/bias)
# ---------------------------------------------------------------------------
def fold_bn(key, c, eps=1e-5):
    k1, k2, k3, k4 = jax.random.split(key, 4)
    gamma = 1.0 + 0.1 * jax.random.normal(k1, (c,), jnp.float32)
    beta = 0.1 * jax.random.normal(k2, (c,), jnp.float32)
    mean = 0.1 * jax.random.normal(k3, (c,), jnp.float32)
    var = 0.5 + jnp.abs(jax.random.normal(k4, (c,), jnp.float32))
    scale = gamma / jnp.sqrt(var + eps)
    bias = beta - mean * scale
    return scale.reshape(1, c), bias.reshape(1, c)


def make_params(key, in_planes, out_planes, expansion):
    planes = expansion * in_planes
    ks = jax.random.split(key, 8)
    p = {}
    p["w1"] = 0.1 * jax.random.normal(ks[0], (in_planes, planes), jnp.float32)
    p["s1"], p["b1"] = fold_bn(ks[1], planes)
    p["w2"] = 0.1 * jax.random.normal(ks[2], (3, 3, planes), jnp.float32)
    p["s2"], p["b2"] = fold_bn(ks[3], planes)
    p["w3"] = 0.1 * jax.random.normal(ks[4], (planes, out_planes), jnp.float32)
    p["s3"], p["b3"] = fold_bn(ks[5], out_planes)
    p["ws"] = 0.1 * jax.random.normal(ks[6], (in_planes, out_planes), jnp.float32)
    p["ss"], p["bs"] = fold_bn(ks[7], out_planes)
    return p


# ---------------------------------------------------------------------------
# Pure-JAX reference (same math) for a correctness check
# ---------------------------------------------------------------------------
def reference_block(x_nchw, params, *, in_planes, out_planes, stride):
    ein = functools.partial(jnp.einsum, precision=lax.Precision.HIGHEST)
    x = jnp.transpose(x_nchw, (0, 2, 3, 1)).astype(jnp.float32)
    N, H, W, _ = x.shape
    h = ein("nhwc,cd->nhwd", x, params["w1"]) * params["s1"] + params["b1"]
    h = jnp.maximum(h, 0.0)
    hp = jnp.pad(h, ((0, 0), (1, 1), (1, 1), (0, 0)))
    Ho = (H - 1) // stride + 1
    Wo = (W - 1) // stride + 1
    acc = jnp.zeros((N, Ho, Wo, h.shape[-1]), jnp.float32)
    for kh in range(3):
        for kw in range(3):
            tap = hp[:, kh:kh + stride * Ho:stride, kw:kw + stride * Wo:stride, :]
            acc = acc + tap * params["w2"][kh, kw, :]
    h = jnp.maximum(acc * params["s2"] + params["b2"], 0.0)
    out = ein("nhwc,cd->nhwd", h, params["w3"]) * params["s3"] + params["b3"]
    if stride == 1:
        if in_planes != out_planes:
            sc = (ein("nhwc,cd->nhwd", x, params["ws"]) * params["ss"]
                  + params["bs"])
        else:
            sc = x
        out = out + sc
    return jnp.transpose(out, (0, 3, 1, 2))


# ---------------------------------------------------------------------------
if __name__ == "__main__":
    key = jax.random.PRNGKey(0)
    kx1, kp1, kx2, kp2, kx3, kp3 = jax.random.split(key, 6)

    # Project / shortcut ride the MXU f32 path; tolerance covers its
    # pass-decomposition vs. the XLA reference.  Real bugs are O(0.1+).
    TOL = 2e-2

    # Case 1: Block(4, 8, expansion=6, stride=1) -> projected shortcut.
    x1 = jax.random.normal(kx1, (2, 4, 16, 16), jnp.float32)       # NCHW
    p1 = make_params(kp1, 4, 8, 6)
    o1 = jax.block_until_ready(
        mobilenetv2_block(x1, p1, in_planes=4, out_planes=8, stride=1))
    r1 = reference_block(x1, p1, in_planes=4, out_planes=8, stride=1)
    assert o1.shape == r1.shape == (2, 8, 16, 16)
    e1 = float(jnp.max(jnp.abs(o1 - r1)))
    assert e1 < TOL, f"projected-shortcut mismatch: {e1}"

    # Case 2: Block(8, 8, 6, 1) -> identity shortcut.
    x2 = jax.random.normal(kx2, (2, 8, 16, 16), jnp.float32)
    p2 = make_params(kp2, 8, 8, 6)
    o2 = jax.block_until_ready(
        mobilenetv2_block(x2, p2, in_planes=8, out_planes=8, stride=1))
    r2 = reference_block(x2, p2, in_planes=8, out_planes=8, stride=1)
    assert o2.shape == r2.shape == (2, 8, 16, 16)
    e2 = float(jnp.max(jnp.abs(o2 - r2)))
    assert e2 < TOL, f"identity-shortcut mismatch: {e2}"

    # Case 3: Block(8, 16, 6, 2) -> strided, no residual.
    x3 = jax.random.normal(kx3, (2, 8, 16, 16), jnp.float32)
    p3 = make_params(kp3, 8, 16, 6)
    o3 = jax.block_until_ready(
        mobilenetv2_block(x3, p3, in_planes=8, out_planes=16, stride=2))
    r3 = reference_block(x3, p3, in_planes=8, out_planes=16, stride=2)
    assert o3.shape == r3.shape == (2, 16, 8, 8)
    e3 = float(jnp.max(jnp.abs(o3 - r3)))
    assert e3 < TOL, f"stride-2 mismatch: {e3}"

    print("KERNEL_OK")
</pallas_src>

<mosaic_0001>
module attributes {stable_mosaic.version = 11 : i64} {
  func.func @_fused_block_kernel(%arg0: i32, %arg1: i32, %arg2: memref<1x18x18x4xf32, #tpu.memory_space<vmem>>, %arg3: memref<4x24xf32, #tpu.memory_space<vmem>>, %arg4: memref<1x24xf32, #tpu.memory_space<vmem>>, %arg5: memref<3x3x24xf32, #tpu.memory_space<vmem>>, %arg6: memref<1x24xf32, #tpu.memory_space<vmem>>, %arg7: memref<8x24xf32, #tpu.memory_space<vmem>>, %arg8: memref<8x1xf32, #tpu.memory_space<vmem>>, %arg9: memref<8x4xf32, #tpu.memory_space<vmem>>, %arg10: memref<8x1xf32, #tpu.memory_space<vmem>>, %arg11: memref<1x8x256xf32, #tpu.memory_space<vmem>>) attributes {dimension_semantics = [#tpu.dimension_semantics<parallel>, #tpu.dimension_semantics<parallel>], iteration_bounds = array<i64: 2, 1>, scalar_prefetch = 0 : i64, scratch_operands = 0 : i64, tpu.core_type = #tpu.core_type<tc>, window_params = [{transform_indices = @transform_0, window_bounds = array<i64: 1, 18, 18, 4>}, {pipeline_mode = #tpu.pipeline_mode<synchronous>, transform_indices = @transform_1, window_bounds = array<i64: 4, 24>}, {pipeline_mode = #tpu.pipeline_mode<synchronous>, transform_indices = @transform_2, window_bounds = array<i64: 1, 24>}, {pipeline_mode = #tpu.pipeline_mode<synchronous>, transform_indices = @transform_3, window_bounds = array<i64: 3, 3, 24>}, {pipeline_mode = #tpu.pipeline_mode<synchronous>, transform_indices = @transform_4, window_bounds = array<i64: 1, 24>}, {pipeline_mode = #tpu.pipeline_mode<synchronous>, transform_indices = @transform_5, window_bounds = array<i64: 8, 24>}, {pipeline_mode = #tpu.pipeline_mode<synchronous>, transform_indices = @transform_6, window_bounds = array<i64: 8, 1>}, {pipeline_mode = #tpu.pipeline_mode<synchronous>, transform_indices = @transform_7, window_bounds = array<i64: 8, 4>}, {pipeline_mode = #tpu.pipeline_mode<synchronous>, transform_indices = @transform_8, window_bounds = array<i64: 8, 1>}, {transform_indices = @transform_9, window_bounds = array<i64: 1, 8, 256>}]} {
    %c16_i32 = arith.constant 16 : i32
    %0 = arith.muli %arg1, %c16_i32 : i32
    %1 = tpu.assume_multiple %0, 16 : i32
    %c0 = arith.constant 0 : index
    %2 = arith.index_cast %1 : i32 to index
    %c0_0 = arith.constant 0 : index
    %c0_1 = arith.constant 0 : index
    %3 = vector.load %arg2[%c0, %2, %c0_0, %c0_1] : memref<1x18x18x4xf32, #tpu.memory_space<vmem>>, vector<1x18x18x4xf32>
    %4 = vector.shape_cast %3 : vector<1x18x18x4xf32> to vector<18x18x4xf32>
    %c0_2 = arith.constant 0 : index
    %c0_3 = arith.constant 0 : index
    %5 = vector.load %arg3[%c0_2, %c0_3] : memref<4x24xf32, #tpu.memory_space<vmem>>, vector<4x24xf32>
    %6 = vector.extract_strided_slice %4 {offsets = [0, 0, 0], sizes = [18, 18, 1], strides = [1, 1, 1]} : vector<18x18x4xf32> to vector<18x18x1xf32>
    %7 = vector.extract_strided_slice %5 {offsets = [0, 0], sizes = [1, 24], strides = [1, 1]} : vector<4x24xf32> to vector<1x24xf32>
    %8 = vector.shape_cast %7 : vector<1x24xf32> to vector<1x1x24xf32>
    %9 = vector.broadcast %6 : vector<18x18x1xf32> to vector<18x18x24xf32>
    %10 = vector.broadcast %8 : vector<1x1x24xf32> to vector<18x18x24xf32>
    %11 = arith.mulf %9, %10 : vector<18x18x24xf32>
    %12 = vector.extract_strided_slice %4 {offsets = [0, 0, 1], sizes = [18, 18, 1], strides = [1, 1, 1]} : vector<18x18x4xf32> to vector<18x18x1xf32>
    %13 = vector.extract_strided_slice %5 {offsets = [1, 0], sizes = [1, 24], strides = [1, 1]} : vector<4x24xf32> to vector<1x24xf32>
    %14 = vector.shape_cast %13 : vector<1x24xf32> to vector<1x1x24xf32>
    %15 = vector.broadcast %12 : vector<18x18x1xf32> to vector<18x18x24xf32>
    %16 = vector.broadcast %14 : vector<1x1x24xf32> to vector<18x18x24xf32>
    %17 = arith.mulf %15, %16 : vector<18x18x24xf32>
    %18 = arith.addf %11, %17 : vector<18x18x24xf32>
    %19 = vector.extract_strided_slice %4 {offsets = [0, 0, 2], sizes = [18, 18, 1], strides = [1, 1, 1]} : vector<18x18x4xf32> to vector<18x18x1xf32>
    %20 = vector.extract_strided_slice %5 {offsets = [2, 0], sizes = [1, 24], strides = [1, 1]} : vector<4x24xf32> to vector<1x24xf32>
    %21 = vector.shape_cast %20 : vector<1x24xf32> to vector<1x1x24xf32>
    %22 = vector.broadcast %19 : vector<18x18x1xf32> to vector<18x18x24xf32>
    %23 = vector.broadcast %21 : vector<1x1x24xf32> to vector<18x18x24xf32>
    %24 = arith.mulf %22, %23 : vector<18x18x24xf32>
    %25 = arith.addf %18, %24 : vector<18x18x24xf32>
    %26 = vector.extract_strided_slice %4 {offsets = [0, 0, 3], sizes = [18, 18, 1], strides = [1, 1, 1]} : vector<18x18x4xf32> to vector<18x18x1xf32>
    %27 = vector.extract_strided_slice %5 {offsets = [3, 0], sizes = [1, 24], strides = [1, 1]} : vector<4x24xf32> to vector<1x24xf32>
    %28 = vector.shape_cast %27 : vector<1x24xf32> to vector<1x1x24xf32>
    %29 = vector.broadcast %26 : vector<18x18x1xf32> to vector<18x18x24xf32>
    %30 = vector.broadcast %28 : vector<1x1x24xf32> to vector<18x18x24xf32>
    %31 = arith.mulf %29, %30 : vector<18x18x24xf32>
    %32 = arith.addf %25, %31 : vector<18x18x24xf32>
    %c0_4 = arith.constant 0 : index
    %c0_5 = arith.constant 0 : index
    %33 = vector.load %arg4[%c0_4, %c0_5] : memref<1x24xf32, #tpu.memory_space<vmem>>, vector<1x24xf32>
    %34 = vector.shape_cast %33 : vector<1x24xf32> to vector<1x1x24xf32>
    %35 = vector.broadcast %34 : vector<1x1x24xf32> to vector<18x18x24xf32>
    %36 = arith.addf %32, %35 : vector<18x18x24xf32>
    %cst = arith.constant 0.000000e+00 : f32
    %37 = vector.broadcast %cst : f32 to vector<18x18x24xf32>
    %38 = arith.maximumf %36, %37 : vector<18x18x24xf32>
    %39 = tpu.iota {dimensions = array<i32: 0>} : vector<18x18x1xi32>
    %40 = vector.broadcast %1 : i32 to vector<18x18x1xi32>
    %41 = arith.addi %40, %39 : vector<18x18x1xi32>
    %42 = tpu.iota {dimensions = array<i32: 1>} : vector<18x18x1xi32>
    %c1_i32 = arith.constant 1 : i32
    %43 = vector.broadcast %c1_i32 : i32 to vector<18x18x1xi32>
    %44 = arith.cmpi sge, %41, %43 : vector<18x18x1xi32>
    %c16_i32_6 = arith.constant 16 : i32
    %45 = vector.broadcast %c16_i32_6 : i32 to vector<18x18x1xi32>
    %46 = arith.cmpi sle, %41, %45 : vector<18x18x1xi32>
    %47 = arith.andi %44, %46 : vector<18x18x1xi1>
    %c1_i32_7 = arith.constant 1 : i32
    %48 = vector.broadcast %c1_i32_7 : i32 to vector<18x18x1xi32>
    %49 = arith.cmpi sge, %42, %48 : vector<18x18x1xi32>
    %50 = arith.andi %47, %49 : vector<18x18x1xi1>
    %c16_i32_8 = arith.constant 16 : i32
    %51 = vector.broadcast %c16_i32_8 : i32 to vector<18x18x1xi32>
    %52 = arith.cmpi sle, %42, %51 : vector<18x18x1xi32>
    %53 = arith.andi %50, %52 : vector<18x18x1xi1>
    %54 = arith.extui %53 : vector<18x18x1xi1> to vector<18x18x1xi32>
    %55 = arith.sitofp %54 : vector<18x18x1xi32> to vector<18x18x1xf32>
    %56 = vector.broadcast %55 : vector<18x18x1xf32> to vector<18x18x24xf32>
    %57 = arith.mulf %38, %56 : vector<18x18x24xf32>
    %c0_9 = arith.constant 0 : index
    %c0_10 = arith.constant 0 : index
    %c0_11 = arith.constant 0 : index
    %58 = vector.load %arg5[%c0_9, %c0_10, %c0_11] : memref<3x3x24xf32, #tpu.memory_space<vmem>>, vector<3x3x24xf32>
    %cst_12 = arith.constant 0.000000e+00 : f32
    %59 = vector.broadcast %cst_12 : f32 to vector<16x16x24xf32>
    %60 = vector.extract_strided_slice %57 {offsets = [0, 0, 0], sizes = [16, 18, 24], strides = [1, 1, 1]} : vector<18x18x24xf32> to vector<16x18x24xf32>
    %61 = vector.extract_strided_slice %60 {offsets = [0, 0, 0], sizes = [16, 16, 24], strides = [1, 1, 1]} : vector<16x18x24xf32> to vector<16x16x24xf32>
    %62 = vector.extract_strided_slice %58 {offsets = [0, 0, 0], sizes = [1, 1, 24], strides = [1, 1, 1]} : vector<3x3x24xf32> to vector<1x1x24xf32>
    %63 = vector.shape_cast %62 : vector<1x1x24xf32> to vector<24xf32>
    %64 = vector.shape_cast %63 : vector<24xf32> to vector<1x1x24xf32>
    %65 = vector.broadcast %64 : vector<1x1x24xf32> to vector<16x16x24xf32>
    %66 = arith.mulf %61, %65 : vector<16x16x24xf32>
    %67 = arith.addf %59, %66 : vector<16x16x24xf32>
    %68 = vector.extract_strided_slice %60 {offsets = [0, 1, 0], sizes = [16, 16, 24], strides = [1, 1, 1]} : vector<16x18x24xf32> to vector<16x16x24xf32>
    %69 = vector.extract_strided_slice %58 {offsets = [0, 1, 0], sizes = [1, 1, 24], strides = [1, 1, 1]} : vector<3x3x24xf32> to vector<1x1x24xf32>
    %70 = vector.shape_cast %69 : vector<1x1x24xf32> to vector<24xf32>
    %71 = vector.shape_cast %70 : vector<24xf32> to vector<1x1x24xf32>
    %72 = vector.broadcast %71 : vector<1x1x24xf32> to vector<16x16x24xf32>
    %73 = arith.mulf %68, %72 : vector<16x16x24xf32>
    %74 = arith.addf %67, %73 : vector<16x16x24xf32>
    %75 = vector.extract_strided_slice %60 {offsets = [0, 2, 0], sizes = [16, 16, 24], strides = [1, 1, 1]} : vector<16x18x24xf32> to vector<16x16x24xf32>
    %76 = vector.extract_strided_slice %58 {offsets = [0, 2, 0], sizes = [1, 1, 24], strides = [1, 1, 1]} : vector<3x3x24xf32> to vector<1x1x24xf32>
    %77 = vector.shape_cast %76 : vector<1x1x24xf32> to vector<24xf32>
    %78 = vector.shape_cast %77 : vector<24xf32> to vector<1x1x24xf32>
    %79 = vector.broadcast %78 : vector<1x1x24xf32> to vector<16x16x24xf32>
    %80 = arith.mulf %75, %79 : vector<16x16x24xf32>
    %81 = arith.addf %74, %80 : vector<16x16x24xf32>
    %82 = vector.extract_strided_slice %57 {offsets = [1, 0, 0], sizes = [16, 18, 24], strides = [1, 1, 1]} : vector<18x18x24xf32> to vector<16x18x24xf32>
    %83 = vector.extract_strided_slice %82 {offsets = [0, 0, 0], sizes = [16, 16, 24], strides = [1, 1, 1]} : vector<16x18x24xf32> to vector<16x16x24xf32>
    %84 = vector.extract_strided_slice %58 {offsets = [1, 0, 0], sizes = [1, 1, 24], strides = [1, 1, 1]} : vector<3x3x24xf32> to vector<1x1x24xf32>
    %85 = vector.shape_cast %84 : vector<1x1x24xf32> to vector<24xf32>
    %86 = vector.shape_cast %85 : vector<24xf32> to vector<1x1x24xf32>
    %87 = vector.broadcast %86 : vector<1x1x24xf32> to vector<16x16x24xf32>
    %88 = arith.mulf %83, %87 : vector<16x16x24xf32>
    %89 = arith.addf %81, %88 : vector<16x16x24xf32>
    %90 = vector.extract_strided_slice %82 {offsets = [0, 1, 0], sizes = [16, 16, 24], strides = [1, 1, 1]} : vector<16x18x24xf32> to vector<16x16x24xf32>
    %91 = vector.extract_strided_slice %58 {offsets = [1, 1, 0], sizes = [1, 1, 24], strides = [1, 1, 1]} : vector<3x3x24xf32> to vector<1x1x24xf32>
    %92 = vector.shape_cast %91 : vector<1x1x24xf32> to vector<24xf32>
    %93 = vector.shape_cast %92 : vector<24xf32> to vector<1x1x24xf32>
    %94 = vector.broadcast %93 : vector<1x1x24xf32> to vector<16x16x24xf32>
    %95 = arith.mulf %90, %94 : vector<16x16x24xf32>
    %96 = arith.addf %89, %95 : vector<16x16x24xf32>
    %97 = vector.extract_strided_slice %82 {offsets = [0, 2, 0], sizes = [16, 16, 24], strides = [1, 1, 1]} : vector<16x18x24xf32> to vector<16x16x24xf32>
    %98 = vector.extract_strided_slice %58 {offsets = [1, 2, 0], sizes = [1, 1, 24], strides = [1, 1, 1]} : vector<3x3x24xf32> to vector<1x1x24xf32>
    %99 = vector.shape_cast %98 : vector<1x1x24xf32> to vector<24xf32>
    %100 = vector.shape_cast %99 : vector<24xf32> to vector<1x1x24xf32>
    %101 = vector.broadcast %100 : vector<1x1x24xf32> to vector<16x16x24xf32>
    %102 = arith.mulf %97, %101 : vector<16x16x24xf32>
    %103 = arith.addf %96, %102 : vector<16x16x24xf32>
    %104 = vector.extract_strided_slice %57 {offsets = [2, 0, 0], sizes = [16, 18, 24], strides = [1, 1, 1]} : vector<18x18x24xf32> to vector<16x18x24xf32>
    %105 = vector.extract_strided_slice %104 {offsets = [0, 0, 0], sizes = [16, 16, 24], strides = [1, 1, 1]} : vector<16x18x24xf32> to vector<16x16x24xf32>
    %106 = vector.extract_strided_slice %58 {offsets = [2, 0, 0], sizes = [1, 1, 24], strides = [1, 1, 1]} : vector<3x3x24xf32> to vector<1x1x24xf32>
    %107 = vector.shape_cast %106 : vector<1x1x24xf32> to vector<24xf32>
    %108 = vector.shape_cast %107 : vector<24xf32> to vector<1x1x24xf32>
    %109 = vector.broadcast %108 : vector<1x1x24xf32> to vector<16x16x24xf32>
    %110 = arith.mulf %105, %109 : vector<16x16x24xf32>
    %111 = arith.addf %103, %110 : vector<16x16x24xf32>
    %112 = vector.extract_strided_slice %104 {offsets = [0, 1, 0], sizes = [16, 16, 24], strides = [1, 1, 1]} : vector<16x18x24xf32> to vector<16x16x24xf32>
    %113 = vector.extract_strided_slice %58 {offsets = [2, 1, 0], sizes = [1, 1, 24], strides = [1, 1, 1]} : vector<3x3x24xf32> to vector<1x1x24xf32>
    %114 = vector.shape_cast %113 : vector<1x1x24xf32> to vector<24xf32>
    %115 = vector.shape_cast %114 : vector<24xf32> to vector<1x1x24xf32>
    %116 = vector.broadcast %115 : vector<1x1x24xf32> to vector<16x16x24xf32>
    %117 = arith.mulf %112, %116 : vector<16x16x24xf32>
    %118 = arith.addf %111, %117 : vector<16x16x24xf32>
    %119 = vector.extract_strided_slice %104 {offsets = [0, 2, 0], sizes = [16, 16, 24], strides = [1, 1, 1]} : vector<16x18x24xf32> to vector<16x16x24xf32>
    %120 = vector.extract_strided_slice %58 {offsets = [2, 2, 0], sizes = [1, 1, 24], strides = [1, 1, 1]} : vector<3x3x24xf32> to vector<1x1x24xf32>
    %121 = vector.shape_cast %120 : vector<1x1x24xf32> to vector<24xf32>
    %122 = vector.shape_cast %121 : vector<24xf32> to vector<1x1x24xf32>
    %123 = vector.broadcast %122 : vector<1x1x24xf32> to vector<16x16x24xf32>
    %124 = arith.mulf %119, %123 : vector<16x16x24xf32>
    %125 = arith.addf %118, %124 : vector<16x16x24xf32>
    %c0_13 = arith.constant 0 : index
    %c0_14 = arith.constant 0 : index
    %126 = vector.load %arg6[%c0_13, %c0_14] : memref<1x24xf32, #tpu.memory_space<vmem>>, vector<1x24xf32>
    %127 = vector.shape_cast %126 : vector<1x24xf32> to vector<1x1x24xf32>
    %128 = vector.broadcast %127 : vector<1x1x24xf32> to vector<16x16x24xf32>
    %129 = arith.addf %125, %128 : vector<16x16x24xf32>
    %cst_15 = arith.constant 0.000000e+00 : f32
    %130 = vector.broadcast %cst_15 : f32 to vector<16x16x24xf32>
    %131 = arith.maximumf %129, %130 : vector<16x16x24xf32>
    %132 = vector.shape_cast %131 : vector<16x16x24xf32> to vector<256x24xf32>
    %c0_16 = arith.constant 0 : index
    %c0_17 = arith.constant 0 : index
    %133 = vector.load %arg7[%c0_16, %c0_17] : memref<8x24xf32, #tpu.memory_space<vmem>>, vector<8x24xf32>
    %cst_18 = arith.constant dense<0.000000e+00> : vector<8x256xf32>
    %134 = tpu.matmul %133, %132, %cst_18 {dimension_numbers = #tpu.dot_dimension_numbers<[1], [1], [0], [0], [0, 0, 1, 0], [], []>, precision = #tpu.contract_precision<fp32>} : vector<8x24xf32>, vector<256x24xf32>, vector<8x256xf32> -> vector<8x256xf32>
    %c0_19 = arith.constant 0 : index
    %c0_20 = arith.constant 0 : index
    %135 = vector.load %arg8[%c0_19, %c0_20] : memref<8x1xf32, #tpu.memory_space<vmem>>, vector<8x1xf32>
    %136 = vector.broadcast %135 : vector<8x1xf32> to vector<8x256xf32>
    %137 = arith.addf %134, %136 : vector<8x256xf32>
    %138 = vector.extract_strided_slice %4 {offsets = [1, 1, 0], sizes = [16, 16, 4], strides = [1, 1, 1]} : vector<18x18x4xf32> to vector<16x16x4xf32>
    %139 = vector.shape_cast %138 : vector<16x16x4xf32> to vector<256x4xf32>
    %c0_21 = arith.constant 0 : index
    %c0_22 = arith.constant 0 : index
    %140 = vector.load %arg9[%c0_21, %c0_22] : memref<8x4xf32, #tpu.memory_space<vmem>>, vector<8x4xf32>
    %cst_23 = arith.constant dense<0.000000e+00> : vector<8x256xf32>
    %141 = tpu.matmul %140, %139, %cst_23 {dimension_numbers = #tpu.dot_dimension_numbers<[1], [1], [0], [0], [0, 0, 1, 0], [], []>, precision = #tpu.contract_precision<fp32>} : vector<8x4xf32>, vector<256x4xf32>, vector<8x256xf32> -> vector<8x256xf32>
    %142 = arith.addf %137, %141 : vector<8x256xf32>
    %c0_24 = arith.constant 0 : index
    %c0_25 = arith.constant 0 : index
    %143 = vector.load %arg10[%c0_24, %c0_25] : memref<8x1xf32, #tpu.memory_space<vmem>>, vector<8x1xf32>
    %144 = vector.broadcast %143 : vector<8x1xf32> to vector<8x256xf32>
    %145 = arith.addf %142, %144 : vector<8x256xf32>
    %c0_26 = arith.constant 0 : index
    %c0_27 = arith.constant 0 : index
    %c0_28 = arith.constant 0 : index
    %146 = vector.load %arg11[%c0_26, %c0_27, %c0_28] : memref<1x8x256xf32, #tpu.memory_space<vmem>>, vector<1x8x256xf32>
    %147 = vector.shape_cast %146 : vector<1x8x256xf32> to vector<8x256xf32>
    %148 = vector.shape_cast %145 : vector<8x256xf32> to vector<1x8x256xf32>
    tpu.vector_store %arg11[%c0_26, %c0_27, %c0_28], %148 {strides = array<i32>} : memref<1x8x256xf32, #tpu.memory_space<vmem>>, vector<1x8x256xf32>,
    return
  }
  func.func @transform_0(%arg0: i32, %arg1: i32) -> (i32, i32, i32, i32) {
    %c0_i32 = arith.constant 0 : i32
    %c0_i32_0 = arith.constant 0 : i32
    %c0_i32_1 = arith.constant 0 : i32
    %c0_i32_2 = arith.constant 0 : i32
    return %arg0, %c0_i32, %c0_i32_0, %c0_i32_1 : i32, i32, i32, i32
  }
  func.func @transform_1(%arg0: i32, %arg1: i32) -> (i32, i32) {
    %c0_i32 = arith.constant 0 : i32
    %c0_i32_0 = arith.constant 0 : i32
    %c0_i32_1 = arith.constant 0 : i32
    return %c0_i32, %c0_i32_0 : i32, i32
  }
  func.func @transform_2(%arg0: i32, %arg1: i32) -> (i32, i32) {
    %c0_i32 = arith.constant 0 : i32
    %c0_i32_0 = arith.constant 0 : i32
    %c0_i32_1 = arith.constant 0 : i32
    return %c0_i32, %c0_i32_0 : i32, i32
  }
  func.func @transform_3(%arg0: i32, %arg1: i32) -> (i32, i32, i32) {
    %c0_i32 = arith.constant 0 : i32
    %c0_i32_0 = arith.constant 0 : i32
    %c0_i32_1 = arith.constant 0 : i32
    %c0_i32_2 = arith.constant 0 : i32
    return %c0_i32, %c0_i32_0, %c0_i32_1 : i32, i32, i32
  }
  func.func @transform_4(%arg0: i32, %arg1: i32) -> (i32, i32) {
    %c0_i32 = arith.constant 0 : i32
    %c0_i32_0 = arith.constant 0 : i32
    %c0_i32_1 = arith.constant 0 : i32
    return %c0_i32, %c0_i32_0 : i32, i32
  }
  func.func @transform_5(%arg0: i32, %arg1: i32) -> (i32, i32) {
    %c0_i32 = arith.constant 0 : i32
    %c0_i32_0 = arith.constant 0 : i32
    %c0_i32_1 = arith.constant 0 : i32
    return %c0_i32, %c0_i32_0 : i32, i32
  }
  func.func @transform_6(%arg0: i32, %arg1: i32) -> (i32, i32) {
    %c0_i32 = arith.constant 0 : i32
    %c0_i32_0 = arith.constant 0 : i32
    %c0_i32_1 = arith.constant 0 : i32
    return %c0_i32, %c0_i32_0 : i32, i32
  }
  func.func @transform_7(%arg0: i32, %arg1: i32) -> (i32, i32) {
    %c0_i32 = arith.constant 0 : i32
    %c0_i32_0 = arith.constant 0 : i32
    %c0_i32_1 = arith.constant 0 : i32
    return %c0_i32, %c0_i32_0 : i32, i32
  }
  func.func @transform_8(%arg0: i32, %arg1: i32) -> (i32, i32) {
    %c0_i32 = arith.constant 0 : i32
    %c0_i32_0 = arith.constant 0 : i32
    %c0_i32_1 = arith.constant 0 : i32
    return %c0_i32, %c0_i32_0 : i32, i32
  }
  func.func @transform_9(%arg0: i32, %arg1: i32) -> (i32, i32, i32) {
    %c0_i32 = arith.constant 0 : i32
    %c0_i32_0 = arith.constant 0 : i32
    return %arg0, %c0_i32, %arg1 : i32, i32, i32
  }
}

</mosaic_0001>

<llo_original>
// kernel: tpu_custom_call.1
$region0: #{tpu_custom_call.1}
  #allocation0 [shape = 'u32[]', space=smem, size = 0x4, offset = 0x4, fixed_abs, tag = 'smem constant byte address 0x4 - core index']
  #allocation1 [shape = 'u32[144,128]{1,0:T(1,128)}', space=vmem, size = 0x12000, scoped, tag = 'internal scratch']
  %s0 = inlined_call_operand.vmem [shape: f32[2,18,18,4], index: 0, kind: input, shape index: {}]
  %s1 = inlined_call_operand.vmem [shape: f32[4,24], index: 1, kind: input, shape index: {}]
  %s2 = inlined_call_operand.vmem [shape: f32[1,24], index: 2, kind: input, shape index: {}]
  %s3 = inlined_call_operand.vmem [shape: f32[3,3,24], index: 3, kind: input, shape index: {}]
  %s4 = inlined_call_operand.vmem [shape: f32[1,24], index: 4, kind: input, shape index: {}]
  %s5 = inlined_call_operand.vmem [shape: f32[8,24], index: 5, kind: input, shape index: {}]
  %s6 = inlined_call_operand.vmem [shape: f32[8,1], index: 6, kind: input, shape index: {}]
  %s7 = inlined_call_operand.vmem [shape: f32[8,4], index: 7, kind: input, shape index: {}]
  %s8 = inlined_call_operand.vmem [shape: f32[8,1], index: 8, kind: input, shape index: {}]
  %s9 = inlined_call_operand.hbm [shape: f32[2,8,256], index: 9, kind: output, shape index: {}]
  %s10 = sld [smem:[#allocation0]]
  $region69: #{tpu_custom_call.1} parent=0
    _
  %s12 = ssub.s32 1, %s10
  %s13 = scalar_select 0, %s12, %s10
  $region1: #{tpu_custom_call.1} parent=0
    #allocation2 [shape = 'u8[16384]{0}', space=vmem, size = 0x4000, scoped, tag = 'output window, operand 0']
    #allocation3 [shape = 's32[2]{0}', space=sflag, size = 0x8, scoped, tag = 'scoped memory for tpu_custom_call.1']
    %14 = vsyncpa [#allocation3], 0
    %s15 = scalar_lea.sflag [#allocation3], 1
    %16 = vsyncpa %s15, 0
    loop: start=0, step=1, limit=4
    $region2: #{tpu_custom_call.1} parent=1 // loop_pre_header
      _
    $region3: #{tpu_custom_call.1} parent=1 // loop_header
      %s18 = sphi 0, %s22
      %p19 = scmp.ge.s32.totalorder %s18, 4
      %s25 = sphi 0, %s37
      %s26 = sphi 0, %s33
      %s27 = sphi 0, %s25
      %s28 = sphi 0, %s26
      %s29 = sphi 0, %s27
      %s30 = sphi 0, %s28
      %s40 = sphi 0, %s42
      %s43 = sphi 0, %s40
      %s44 = sphi 0, %s43
      %s60 = sphi 0, %s44
      %s64 = sphi 0, %s64
      %s66 = sphi 0, %s64
      %s67 = sphi 0, %s66
      %s81 = sphi 0, %s67
      %s85 = sphi 0, %s85
      %s87 = sphi 0, %s85
      %s88 = sphi 0, %s87
      %s102 = sphi 0, %s88
      %s106 = sphi 0, %s106
      %s108 = sphi 0, %s106
      %s109 = sphi 0, %s108
      %s123 = sphi 0, %s109
      %s127 = sphi 0, %s127
      %s129 = sphi 0, %s127
      %s130 = sphi 0, %s129
      %s144 = sphi 0, %s130
      %s148 = sphi 0, %s148
      %s150 = sphi 0, %s148
      %s151 = sphi 0, %s150
      %s165 = sphi 0, %s151
      %s169 = sphi 0, %s169
      %s171 = sphi 0, %s169
      %s172 = sphi 0, %s171
      %s186 = sphi 0, %s172
      %s190 = sphi 0, %s190
      %s192 = sphi 0, %s190
      %s193 = sphi 0, %s192
      %s207 = sphi 0, %s193
      %s211 = sphi 0, %s211
      %s213 = sphi 0, %s211
      %s214 = sphi 0, %s213
      %s228 = sphi 0, %s214
      %s236 = sphi 0, %s238
      %s239 = sphi 0, %s236
      %s240 = sphi 0, %s239
      %s256 = sphi 0, %s240
    $region4: #{tpu_custom_call.1} parent=1 // loop_header_branch
      %21 = sbr.rel (%p19) target = $region8
    $region5: #{tpu_custom_call.1} parent=1 // loop_body
      %s23 = ssub.s32 %s18, 1
      %s24 = ssub.s32 %s18, 2
      %s31 = sadd.s32 1, %s26
      %p32 = scmp.ge.s32.totalorder %s31, 1
      %s33 = scalar_select %p32, 0, %s31
      %s34 = sadd.s32 1, %s25
      %s35 = scalar_select %p32, %s34, %s25
      %p36 = scmp.ge.s32.totalorder %s35, 2
      %s37 = scalar_select %p36, 0, %s35
      %s38 = ssub.s32 %s25, %s37
      %p39 = scmp.eq.s32.totalorder %s38, 0
      %s41 = sadd.s32 %s40, 1
      %s42 = scalar_select %p39, %s40, %s41
      %p45 = pneg %p39
      %p46 = scmp.eq.s32.totalorder %s18, 1
      %p47 = por %p45, %p46
      %p48 = scmp.ne.s32.totalorder %s40, %s43
      %p49 = scmp.eq.s32.totalorder %s18, 0
      %p50 = por %p48, %p49
      %p51 = scmp.ne.s32.totalorder %s40, %s43
      %p52 = scmp.eq.s32.totalorder %s23, 1
      %p53 = por %p51, %p52
      %p54 = scmp.ne.s32.totalorder %s43, %s44
      %p55 = scmp.eq.s32.totalorder %s23, 0
      %p56 = por %p54, %p55
      %p57 = scmp.ne.s32.totalorder %s43, %s44
      %p58 = scmp.eq.s32.totalorder %s24, 1
      %p59 = por %p57, %p58
      %p61 = scmp.ne.s32.totalorder %s44, %s60
      %p62 = scmp.eq.s32.totalorder %s24, 0
      %p63 = por %p61, %p62
      %s65 = sadd.s32 %s64, 1
      %p68 = scmp.eq.s32.totalorder %s18, 1
      %p69 = scmp.ne.s32.totalorder %s64, %s66
      %p70 = scmp.eq.s32.totalorder %s18, 0
      %p71 = por %p69, %p70
      %p72 = scmp.ne.s32.totalorder %s64, %s66
      %p73 = scmp.eq.s32.totalorder %s23, 1
      %p74 = por %p72, %p73
      %p75 = scmp.ne.s32.totalorder %s66, %s67
      %p76 = scmp.eq.s32.totalorder %s23, 0
      %p77 = por %p75, %p76
      %p78 = scmp.ne.s32.totalorder %s66, %s67
      %p79 = scmp.eq.s32.totalorder %s24, 1
      %p80 = por %p78, %p79
      %p82 = scmp.ne.s32.totalorder %s67, %s81
      %p83 = scmp.eq.s32.totalorder %s24, 0
      %p84 = por %p82, %p83
      %s86 = sadd.s32 %s85, 1
      %p89 = scmp.eq.s32.totalorder %s18, 1
      %p90 = scmp.ne.s32.totalorder %s85, %s87
      %p91 = scmp.eq.s32.totalorder %s18, 0
      %p92 = por %p90, %p91
      %p93 = scmp.ne.s32.totalorder %s85, %s87
      %p94 = scmp.eq.s32.totalorder %s23, 1
      %p95 = por %p93, %p94
      %p96 = scmp.ne.s32.totalorder %s87, %s88
      %p97 = scmp.eq.s32.totalorder %s23, 0
      %p98 = por %p96, %p97
      %p99 = scmp.ne.s32.totalorder %s87, %s88
      %p100 = scmp.eq.s32.totalorder %s24, 1
      %p101 = por %p99, %p100
      %p103 = scmp.ne.s32.totalorder %s88, %s102
      %p104 = scmp.eq.s32.totalorder %s24, 0
      %p105 = por %p103, %p104
      %s107 = sadd.s32 %s106, 1
      %p110 = scmp.eq.s32.totalorder %s18, 1
      %p111 = scmp.ne.s32.totalorder %s106, %s108
      %p112 = scmp.eq.s32.totalorder %s18, 0
      %p113 = por %p111, %p112
      %p114 = scmp.ne.s32.totalorder %s106, %s108
      %p115 = scmp.eq.s32.totalorder %s23, 1
      %p116 = por %p114, %p115
      %p117 = scmp.ne.s32.totalorder %s108, %s109
      %p118 = scmp.eq.s32.totalorder %s23, 0
      %p119 = por %p117, %p118
      %p120 = scmp.ne.s32.totalorder %s108, %s109
      %p121 = scmp.eq.s32.totalorder %s24, 1
      %p122 = por %p120, %p121
      %p124 = scmp.ne.s32.totalorder %s109, %s123
      %p125 = scmp.eq.s32.totalorder %s24, 0
      %p126 = por %p124, %p125
      %s128 = sadd.s32 %s127, 1
      %p131 = scmp.eq.s32.totalorder %s18, 1
      %p132 = scmp.ne.s32.totalorder %s127, %s129
      %p133 = scmp.eq.s32.totalorder %s18, 0
      %p134 = por %p132, %p133
      %p135 = scmp.ne.s32.totalorder %s127, %s129
      %p136 = scmp.eq.s32.totalorder %s23, 1
      %p137 = por %p135, %p136
      %p138 = scmp.ne.s32.totalorder %s129, %s130
      %p139 = scmp.eq.s32.totalorder %s23, 0
      %p140 = por %p138, %p139
      %p141 = scmp.ne.s32.totalorder %s129, %s130
      %p142 = scmp.eq.s32.totalorder %s24, 1
      %p143 = por %p141, %p142
      %p145 = scmp.ne.s32.totalorder %s130, %s144
      %p146 = scmp.eq.s32.totalorder %s24, 0
      %p147 = por %p145, %p146
      %s149 = sadd.s32 %s148, 1
      %p152 = scmp.eq.s32.totalorder %s18, 1
      %p153 = scmp.ne.s32.totalorder %s148, %s150
      %p154 = scmp.eq.s32.totalorder %s18, 0
      %p155 = por %p153, %p154
      %p156 = scmp.ne.s32.totalorder %s148, %s150
      %p157 = scmp.eq.s32.totalorder %s23, 1
      %p158 = por %p156, %p157
      %p159 = scmp.ne.s32.totalorder %s150, %s151
      %p160 = scmp.eq.s32.totalorder %s23, 0
      %p161 = por %p159, %p160
      %p162 = scmp.ne.s32.totalorder %s150, %s151
      %p163 = scmp.eq.s32.totalorder %s24, 1
      %p164 = por %p162, %p163
      %p166 = scmp.ne.s32.totalorder %s151, %s165
      %p167 = scmp.eq.s32.totalorder %s24, 0
      %p168 = por %p166, %p167
      %s170 = sadd.s32 %s169, 1
      %p173 = scmp.eq.s32.totalorder %s18, 1
      %p174 = scmp.ne.s32.totalorder %s169, %s171
      %p175 = scmp.eq.s32.totalorder %s18, 0
      %p176 = por %p174, %p175
      %p177 = scmp.ne.s32.totalorder %s169, %s171
      %p178 = scmp.eq.s32.totalorder %s23, 1
      %p179 = por %p177, %p178
      %p180 = scmp.ne.s32.totalorder %s171, %s172
      %p181 = scmp.eq.s32.totalorder %s23, 0
      %p182 = por %p180, %p181
      %p183 = scmp.ne.s32.totalorder %s171, %s172
      %p184 = scmp.eq.s32.totalorder %s24, 1
      %p185 = por %p183, %p184
      %p187 = scmp.ne.s32.totalorder %s172, %s186
      %p188 = scmp.eq.s32.totalorder %s24, 0
      %p189 = por %p187, %p188
      %s191 = sadd.s32 %s190, 1
      %p194 = scmp.eq.s32.totalorder %s18, 1
      %p195 = scmp.ne.s32.totalorder %s190, %s192
      %p196 = scmp.eq.s32.totalorder %s18, 0
      %p197 = por %p195, %p196
      %p198 = scmp.ne.s32.totalorder %s190, %s192
      %p199 = scmp.eq.s32.totalorder %s23, 1
      %p200 = por %p198, %p199
      %p201 = scmp.ne.s32.totalorder %s192, %s193
      %p202 = scmp.eq.s32.totalorder %s23, 0
      %p203 = por %p201, %p202
      %p204 = scmp.ne.s32.totalorder %s192, %s193
      %p205 = scmp.eq.s32.totalorder %s24, 1
      %p206 = por %p204, %p205
      %p208 = scmp.ne.s32.totalorder %s193, %s207
      %p209 = scmp.eq.s32.totalorder %s24, 0
      %p210 = por %p208, %p209
      %s212 = sadd.s32 %s211, 1
      %p215 = scmp.eq.s32.totalorder %s18, 1
      %p216 = scmp.ne.s32.totalorder %s211, %s213
      %p217 = scmp.eq.s32.totalorder %s18, 0
      %p218 = por %p216, %p217
      %p219 = scmp.ne.s32.totalorder %s211, %s213
      %p220 = scmp.eq.s32.totalorder %s23, 1
      %p221 = por %p219, %p220
      %p222 = scmp.ne.s32.totalorder %s213, %s214
      %p223 = scmp.eq.s32.totalorder %s23, 0
      %p224 = por %p222, %p223
      %p225 = scmp.ne.s32.totalorder %s213, %s214
      %p226 = scmp.eq.s32.totalorder %s24, 1
      %p227 = por %p225, %p226
      %p229 = scmp.ne.s32.totalorder %s214, %s228
      %p230 = scmp.eq.s32.totalorder %s24, 0
      %p231 = por %p229, %p230
      %s232 = ssub.s32 %s25, %s37
      %s233 = ssub.s32 %s26, %s33
      %s234 = sor.u32 %s232, %s233
      %p235 = scmp.eq.s32.totalorder %s234, 0
      %s237 = sadd.s32 %s236, 1
      %s238 = scalar_select %p235, %s236, %s237
      %p241 = pneg %p235
      %p242 = scmp.eq.s32.totalorder %s18, 1
      %p243 = por %p241, %p242
      %p244 = scmp.ne.s32.totalorder %s236, %s239
      %p245 = scmp.eq.s32.totalorder %s18, 0
      %p246 = por %p244, %p245
      %p247 = scmp.ne.s32.totalorder %s236, %s239
      %p248 = scmp.eq.s32.totalorder %s23, 1
      %p249 = por %p247, %p248
      %p250 = scmp.ne.s32.totalorder %s239, %s240
      %p251 = scmp.eq.s32.totalorder %s23, 0
      %p252 = por %p250, %p251
      %p253 = scmp.ne.s32.totalorder %s239, %s240
      %p254 = scmp.eq.s32.totalorder %s24, 1
      %p255 = por %p253, %p254
      %p257 = scmp.ne.s32.totalorder %s240, %s256
      %p258 = scmp.eq.s32.totalorder %s24, 0
      %p259 = por %p257, %p258
      %p260 = scmp.le.s32.totalorder 1, %s18
      %p261 = scmp.lt.s32.totalorder %s18, 3
      %p262 = pnand %p260, %p261
      %p263 = pneg %p262
      // Predicated region
      $region9: #{tpu_custom_call.1} parent=5 // pred_check
        _
      $region10: #{tpu_custom_call.1} parent=5 // pred_check_branch
        %265 = sbr.rel (%p262) target = $region12
      $region11: #{tpu_custom_call.1} parent=5 // pred_region
        %s266 = ssub.s32 %s18, 1
        // Predicated region
        $region13: #{tpu_custom_call.1} parent=11 // pred_check
          %p267 = pneg %p77
        $region14: #{tpu_custom_call.1} parent=11 // pred_check_branch
          %269 = sbr.rel (%p267) target = $region16
        $region15: #{tpu_custom_call.1} parent=11 // pred_region
          _
        $region16: #{tpu_custom_call.1} parent=11 // pred_fallthru
          _
        // Predicated region
        $region17: #{tpu_custom_call.1} parent=11 // pred_check
          %p270 = pneg %p98
        $region18: #{tpu_custom_call.1} parent=11 // pred_check_branch
          %272 = sbr.rel (%p270) target = $region20
        $region19: #{tpu_custom_call.1} parent=11 // pred_region
          _
        $region20: #{tpu_custom_call.1} parent=11 // pred_fallthru
          _
        // Predicated region
        $region21: #{tpu_custom_call.1} parent=11 // pred_check
          %p273 = pneg %p119
        $region22: #{tpu_custom_call.1} parent=11 // pred_check_branch
          %275 = sbr.rel (%p273) target = $region24
        $region23: #{tpu_custom_call.1} parent=11 // pred_region
          _
        $region24: #{tpu_custom_call.1} parent=11 // pred_fallthru
          _
        // Predicated region
        $region25: #{tpu_custom_call.1} parent=11 // pred_check
          %p276 = pneg %p140
        $region26: #{tpu_custom_call.1} parent=11 // pred_check_branch
          %278 = sbr.rel (%p276) target = $region28
        $region27: #{tpu_custom_call.1} parent=11 // pred_region
          _
        $region28: #{tpu_custom_call.1} parent=11 // pred_fallthru
          _
        // Predicated region
        $region29: #{tpu_custom_call.1} parent=11 // pred_check
          %p279 = pneg %p161
        $region30: #{tpu_custom_call.1} parent=11 // pred_check_branch
          %281 = sbr.rel (%p279) target = $region32
        $region31: #{tpu_custom_call.1} parent=11 // pred_region
          _
        $region32: #{tpu_custom_call.1} parent=11 // pred_fallthru
          _
        // Predicated region
        $region33: #{tpu_custom_call.1} parent=11 // pred_check
          %p282 = pneg %p182
        $region34: #{tpu_custom_call.1} parent=11 // pred_check_branch
          %284 = sbr.rel (%p282) target = $region36
        $region35: #{tpu_custom_call.1} parent=11 // pred_region
          _
        $region36: #{tpu_custom_call.1} parent=11 // pred_fallthru
          _
        // Predicated region
        $region37: #{tpu_custom_call.1} parent=11 // pred_check
          %p285 = pneg %p203
        $region38: #{tpu_custom_call.1} parent=11 // pred_check_branch
          %287 = sbr.rel (%p285) target = $region40
        $region39: #{tpu_custom_call.1} parent=11 // pred_region
          _
        $region40: #{tpu_custom_call.1} parent=11 // pred_fallthru
          _
        // Predicated region
        $region41: #{tpu_custom_call.1} parent=11 // pred_check
          %p288 = pneg %p224
        $region42: #{tpu_custom_call.1} parent=11 // pred_check_branch
          %290 = sbr.rel (%p288) target = $region44
        $region43: #{tpu_custom_call.1} parent=11 // pred_region
          _
        $region44: #{tpu_custom_call.1} parent=11 // pred_fallthru
          _
      $region12: #{tpu_custom_call.1} parent=5 // pred_fallthru
        _
      %p291 = scmp.lt.s32.totalorder %s18, 2
      // Predicated region
      $region45: #{tpu_custom_call.1} parent=5 // pred_check
        %p292 = pneg %p291
      $region46: #{tpu_custom_call.1} parent=5 // pred_check_branch
        %294 = sbr.rel (%p292) target = $region48
      $region47: #{tpu_custom_call.1} parent=5 // pred_region
        // Predicated region
        $region49: #{tpu_custom_call.1} parent=47 // pred_check
          %p295 = pneg %p50
        $region50: #{tpu_custom_call.1} parent=47 // pred_check_branch
          %297 = sbr.rel (%p295) target = $region52
        $region51: #{tpu_custom_call.1} parent=47 // pred_region
          %p298 = scmp.lt.s32.totalorder %s25, 1
          %s299 = scalar_select %p298, %s25, 1
          %s300 = smul.addr %s299, 54
          %s301 = smul.addr %s300, 8
          %s302 = scalar_lea.vmem %s0, %s301
        $region52: #{tpu_custom_call.1} parent=47 // pred_fallthru
          _
      $region48: #{tpu_custom_call.1} parent=5 // pred_fallthru
        _
      %p303 = scmp.le.s32.totalorder 1, %s18
      %p304 = scmp.lt.s32.totalorder %s18, 3
      %p305 = pnand %p303, %p304
      %p306 = pneg %p305
      // Predicated region
      $region53: #{tpu_custom_call.1} parent=5 // pred_check
        _
      $region54: #{tpu_custom_call.1} parent=5 // pred_check_branch
        %308 = sbr.rel (%p305) target = $region56
      $region55: #{tpu_custom_call.1} parent=5 // pred_region
        %s309 = ssub.s32 %s18, 1
        %p310 = scmp.lt.s32.totalorder %s27, 1
        %s311 = scalar_select %p310, %s27, 1
        %s312 = smul.addr %s311, 54
        %s313 = smul.addr %s312, 8
        %s314 = scalar_lea.vmem %s0, %s313
        %p315 = pneg %p56
        %p316 = pneg %p53
        %p317 = pneg %p77
        %p318 = pneg %p74
        %p319 = pneg %p98
        %p320 = pneg %p95
        %p321 = pneg %p119
        %p322 = pneg %p116
        %p323 = pneg %p140
        %p324 = pneg %p137
        %p325 = pneg %p161
        %p326 = pneg %p158
        %p327 = pneg %p182
        %p328 = pneg %p179
        %p329 = pneg %p203
        %p330 = pneg %p200
        %p331 = pneg %p224
        %p332 = pneg %p221
        %p333 = pneg %p252
        %p334 = pneg %p249
        %s335 = sand.u32 %s239, 1
        %s336 = scalar_lea.sflag [#allocation3], %s335
        %s337 = sand.u32 %s239, 1
        %s338 = smul.addr %s337, 16
        %s339 = scalar_lea.vmem [#allocation2], %s338
        %p340 = scmp.lt.s32.totalorder %s27, 1
        %s341 = scalar_select %p340, %s27, 1
        %s342 = smul.addr %s341, 54
        %s343 = smul.addr %s342, 8
        %s344 = scalar_lea.vmem %s0, %s343
        %s345 = smul.u32 2, %s28
        %s346 = smul.u32 %s28, 16
        %s347 = smul.u32 %s346, 24
        %s348 = scalar_lea.vmem %s344, %s347
        %v349 = vld [vmem:[%s348] sm:$0xff]
        %v350 = vld [vmem:[%s348 + $0x8] sm:$0xff]
        %v351 = vld [vmem:[%s348 + $0x10] sm:$0x3]
        %v352 = vld [vmem:[%s348 + $0x18] sm:$0xff]
        %v353 = vld [vmem:[%s348 + $0x20] sm:$0xff]
        %v354 = vld [vmem:[%s348 + $0x28] sm:$0x3]
        %v355 = vld [vmem:[%s348 + $0x30] sm:$0xff]
        %v356 = vld [vmem:[%s348 + $0x38] sm:$0xff]
        %v357 = vld [vmem:[%s348 + $0x40] sm:$0x3]
        %v358 = vld [vmem:[%s348 + $0x48] sm:$0xff]
        %v359 = vld [vmem:[%s348 + $0x50] sm:$0xff]
        %v360 = vld [vmem:[%s348 + $0x58] sm:$0x3]
        %v361 = vld [vmem:[%s348 + $0x60] sm:$0xff]
        %v362 = vld [vmem:[%s348 + $0x68] sm:$0xff]
        %v363 = vld [vmem:[%s348 + $0x70] sm:$0x3]
        %v364 = vld [vmem:[%s348 + $0x78] sm:$0xff]
        %v365 = vld [vmem:[%s348 + $0x80] sm:$0xff]
        %v366 = vld [vmem:[%s348 + $0x88] sm:$0x3]
        %v367 = vld [vmem:[%s348 + $0x90] sm:$0xff]
        %v368 = vld [vmem:[%s348 + $0x98] sm:$0xff]
        %v369 = vld [vmem:[%s348 + $0xa0] sm:$0x3]
        %v370 = vld [vmem:[%s348 + $0xa8] sm:$0xff]
        %v371 = vld [vmem:[%s348 + $0xb0] sm:$0xff]
        %v372 = vld [vmem:[%s348 + $0xb8] sm:$0x3]
        %v373 = vld [vmem:[%s348 + $0xc0] sm:$0xff]
        %v374 = vld [vmem:[%s348 + $0xc8] sm:$0xff]
        %v375 = vld [vmem:[%s348 + $0xd0] sm:$0x3]
        %v376 = vld [vmem:[%s348 + $0xd8] sm:$0xff]
        %v377 = vld [vmem:[%s348 + $0xe0] sm:$0xff]
        %v378 = vld [vmem:[%s348 + $0xe8] sm:$0x3]
        %v379 = vld [vmem:[%s348 + $0xf0] sm:$0xff]
        %v380 = vld [vmem:[%s348 + $0xf8] sm:$0xff]
        %v381 = vld [vmem:[%s348 + $0x100] sm:$0x3]
        %v382 = vld [vmem:[%s348 + $0x108] sm:$0xff]
        %v383 = vld [vmem:[%s348 + $0x110] sm:$0xff]
        %v384 = vld [vmem:[%s348 + $0x118] sm:$0x3]
        %v385 = vld [vmem:[%s348 + $0x120] sm:$0xff]
        %v386 = vld [vmem:[%s348 + $0x128] sm:$0xff]
        %v387 = vld [vmem:[%s348 + $0x130] sm:$0x3]
        %v388 = vld [vmem:[%s348 + $0x138] sm:$0xff]
        %v389 = vld [vmem:[%s348 + $0x140] sm:$0xff]
        %v390 = vld [vmem:[%s348 + $0x148] sm:$0x3]
        %v391 = vld [vmem:[%s348 + $0x150] sm:$0xff]
        %v392 = vld [vmem:[%s348 + $0x158] sm:$0xff]
        %v393 = vld [vmem:[%s348 + $0x160] sm:$0x3]
        %v394 = vld [vmem:[%s348 + $0x168] sm:$0xff]
        %v395 = vld [vmem:[%s348 + $0x170] sm:$0xff]
        %v396 = vld [vmem:[%s348 + $0x178] sm:$0x3]
        %v397 = vld [vmem:[%s348 + $0x180] sm:$0xff]
        %v398 = vld [vmem:[%s348 + $0x188] sm:$0xff]
        %v399 = vld [vmem:[%s348 + $0x190] sm:$0x3]
        %v400 = vld [vmem:[%s348 + $0x198] sm:$0xff]
        %v401 = vld [vmem:[%s348 + $0x1a0] sm:$0xff]
        %v402 = vld [vmem:[%s348 + $0x1a8] sm:$0x3]
        %v403 = vld [vmem:[%s1] sm:$0xf]
        %405 = vset.pattern.permute.xlu0 0
        %406 = vperm.xlu0 %405, %v349
        %v407 = vpop.permute.xlu0 %406
        %410 = vset.pattern.permute.xlu0 0
        %411 = vperm.xlu0 %410, %v350
        %v412 = vpop.permute.xlu0 %411
        %415 = vset.pattern.permute.xlu0 0
        %416 = vperm.xlu0 %415, %v351
        %v417 = vpop.permute.xlu0 %416
        %420 = vset.pattern.permute.xlu0 0
        %421 = vperm.xlu0 %420, %v352
        %v422 = vpop.permute.xlu0 %421
        %425 = vset.pattern.permute.xlu0 0
        %426 = vperm.xlu0 %425, %v353
        %v427 = vpop.permute.xlu0 %426
        %430 = vset.pattern.permute.xlu0 0
        %431 = vperm.xlu0 %430, %v354
        %v432 = vpop.permute.xlu0 %431
        %435 = vset.pattern.permute.xlu0 0
        %436 = vperm.xlu0 %435, %v355
        %v437 = vpop.permute.xlu0 %436
        %440 = vset.pattern.permute.xlu0 0
        %441 = vperm.xlu0 %440, %v356
        %v442 = vpop.permute.xlu0 %441
        %445 = vset.pattern.permute.xlu0 0
        %446 = vperm.xlu0 %445, %v357
        %v447 = vpop.permute.xlu0 %446
        %450 = vset.pattern.permute.xlu0 0
        %451 = vperm.xlu0 %450, %v358
        %v452 = vpop.permute.xlu0 %451
        %455 = vset.pattern.permute.xlu0 0
        %456 = vperm.xlu0 %455, %v359
        %v457 = vpop.permute.xlu0 %456
        %460 = vset.pattern.permute.xlu0 0
        %461 = vperm.xlu0 %460, %v360
        %v462 = vpop.permute.xlu0 %461
        %465 = vset.pattern.permute.xlu0 0
        %466 = vperm.xlu0 %465, %v361
        %v467 = vpop.permute.xlu0 %466
        %470 = vset.pattern.permute.xlu0 0
        %471 = vperm.xlu0 %470, %v362
        %v472 = vpop.permute.xlu0 %471
        %475 = vset.pattern.permute.xlu0 0
        %476 = vperm.xlu0 %475, %v363
        %v477 = vpop.permute.xlu0 %476
        %480 = vset.pattern.permute.xlu0 0
        %481 = vperm.xlu0 %480, %v364
        %v482 = vpop.permute.xlu0 %481
        %485 = vset.pattern.permute.xlu0 0
        %486 = vperm.xlu0 %485, %v365
        %v487 = vpop.permute.xlu0 %486
        %490 = vset.pattern.permute.xlu0 0
        %491 = vperm.xlu0 %490, %v366
        %v492 = vpop.permute.xlu0 %491
        %495 = vset.pattern.permute.xlu0 0
        %496 = vperm.xlu0 %495, %v367
        %v497 = vpop.permute.xlu0 %496
        %500 = vset.pattern.permute.xlu0 0
        %501 = vperm.xlu0 %500, %v368
        %v502 = vpop.permute.xlu0 %501
        %505 = vset.pattern.permute.xlu0 0
        %506 = vperm.xlu0 %505, %v369
        %v507 = vpop.permute.xlu0 %506
        %510 = vset.pattern.permute.xlu0 0
        %511 = vperm.xlu0 %510, %v370
        %v512 = vpop.permute.xlu0 %511
        %515 = vset.pattern.permute.xlu0 0
        %516 = vperm.xlu0 %515, %v371
        %v517 = vpop.permute.xlu0 %516
        %520 = vset.pattern.permute.xlu0 0
        %521 = vperm.xlu0 %520, %v372
        %v522 = vpop.permute.xlu0 %521
        %525 = vset.pattern.permute.xlu0 0
        %526 = vperm.xlu0 %525, %v373
        %v527 = vpop.permute.xlu0 %526
        %530 = vset.pattern.permute.xlu0 0
        %531 = vperm.xlu0 %530, %v374
        %v532 = vpop.permute.xlu0 %531
        %535 = vset.pattern.permute.xlu0 0
        %536 = vperm.xlu0 %535, %v375
        %v537 = vpop.permute.xlu0 %536
        %540 = vset.pattern.permute.xlu0 0
        %541 = vperm.xlu0 %540, %v376
        %v542 = vpop.permute.xlu0 %541
        %545 = vset.pattern.permute.xlu0 0
        %546 = vperm.xlu0 %545, %v377
        %v547 = vpop.permute.xlu0 %546
        %550 = vset.pattern.permute.xlu0 0
        %551 = vperm.xlu0 %550, %v378
        %v552 = vpop.permute.xlu0 %551
        %555 = vset.pattern.permute.xlu0 0
        %556 = vperm.xlu0 %555, %v379
        %v557 = vpop.permute.xlu0 %556
        %560 = vset.pattern.permute.xlu0 0
        %561 = vperm.xlu0 %560, %v380
        %v562 = vpop.permute.xlu0 %561
        %565 = vset.pattern.permute.xlu0 0
        %566 = vperm.xlu0 %565, %v381
        %v567 = vpop.permute.xlu0 %566
        %570 = vset.pattern.permute.xlu0 0
        %571 = vperm.xlu0 %570, %v382
        %v572 = vpop.permute.xlu0 %571
        %575 = vset.pattern.permute.xlu0 0
        %576 = vperm.xlu0 %575, %v383
        %v577 = vpop.permute.xlu0 %576
        %580 = vset.pattern.permute.xlu0 0
        %581 = vperm.xlu0 %580, %v384
        %v582 = vpop.permute.xlu0 %581
        %585 = vset.pattern.permute.xlu0 0
        %586 = vperm.xlu0 %585, %v385
        %v587 = vpop.permute.xlu0 %586
        %590 = vset.pattern.permute.xlu0 0
        %591 = vperm.xlu0 %590, %v386
        %v592 = vpop.permute.xlu0 %591
        %595 = vset.pattern.permute.xlu0 0
        %596 = vperm.xlu0 %595, %v387
        %v597 = vpop.permute.xlu0 %596
        %600 = vset.pattern.permute.xlu0 0
        %601 = vperm.xlu0 %600, %v388
        %v602 = vpop.permute.xlu0 %601
        %605 = vset.pattern.permute.xlu0 0
        %606 = vperm.xlu0 %605, %v389
        %v607 = vpop.permute.xlu0 %606
        %610 = vset.pattern.permute.xlu0 0
        %611 = vperm.xlu0 %610, %v390
        %v612 = vpop.permute.xlu0 %611
        %615 = vset.pattern.permute.xlu0 0
        %616 = vperm.xlu0 %615, %v391
        %v617 = vpop.permute.xlu0 %616
        %620 = vset.pattern.permute.xlu0 0
        %621 = vperm.xlu0 %620, %v392
        %v622 = vpop.permute.xlu0 %621
        %625 = vset.pattern.permute.xlu0 0
        %626 = vperm.xlu0 %625, %v393
        %v627 = vpop.permute.xlu0 %626
        %630 = vset.pattern.permute.xlu0 0
        %631 = vperm.xlu0 %630, %v394
        %v632 = vpop.permute.xlu0 %631
        %635 = vset.pattern.permute.xlu0 0
        %636 = vperm.xlu0 %635, %v395
        %v637 = vpop.permute.xlu0 %636
        %640 = vset.pattern.permute.xlu0 0
        %641 = vperm.xlu0 %640, %v396
        %v642 = vpop.permute.xlu0 %641
        %645 = vset.pattern.permute.xlu0 0
        %646 = vperm.xlu0 %645, %v397
        %v647 = vpop.permute.xlu0 %646
        %650 = vset.pattern.permute.xlu0 0
        %651 = vperm.xlu0 %650, %v398
        %v652 = vpop.permute.xlu0 %651
        %655 = vset.pattern.permute.xlu0 0
        %656 = vperm.xlu0 %655, %v399
        %v657 = vpop.permute.xlu0 %656
        %660 = vset.pattern.permute.xlu0 0
        %661 = vperm.xlu0 %660, %v400
        %v662 = vpop.permute.xlu0 %661
        %665 = vset.pattern.permute.xlu0 0
        %666 = vperm.xlu0 %665, %v401
        %v667 = vpop.permute.xlu0 %666
        %670 = vset.pattern.permute.xlu0 0
        %671 = vperm.xlu0 %670, %v402
        %v672 = vpop.permute.xlu0 %671
        %v674 = vlaneseq
        %v675 = vshrl.u32 %v674, 7
        %v676 = vsub.s32 0, %v675
        %v677 = vrot.slane %v403, %v676
        %v678 = vmul.f32 %v407, %v677
        %v679 = vmul.f32 %v412, %v677
        %v680 = vmul.f32 %v417, %v677
        %v681 = vmul.f32 %v422, %v677
        %v682 = vmul.f32 %v427, %v677
        %v683 = vmul.f32 %v432, %v677
        %v684 = vmul.f32 %v437, %v677
        %v685 = vmul.f32 %v442, %v677
        %v686 = vmul.f32 %v447, %v677
        %v687 = vmul.f32 %v452, %v677
        %v688 = vmul.f32 %v457, %v677
        %v689 = vmul.f32 %v462, %v677
        %v690 = vmul.f32 %v467, %v677
        %v691 = vmul.f32 %v472, %v677
        %v692 = vmul.f32 %v477, %v677
        %v693 = vmul.f32 %v482, %v677
        %v694 = vmul.f32 %v487, %v677
        %v695 = vmul.f32 %v492, %v677
        %v696 = vmul.f32 %v497, %v677
        %v697 = vmul.f32 %v502, %v677
        %v698 = vmul.f32 %v507, %v677
        %v699 = vmul.f32 %v512, %v677
        %v700 = vmul.f32 %v517, %v677
        %v701 = vmul.f32 %v522, %v677
        %v702 = vmul.f32 %v527, %v677
        %v703 = vmul.f32 %v532, %v677
        %v704 = vmul.f32 %v537, %v677
        %v705 = vmul.f32 %v542, %v677
        %v706 = vmul.f32 %v547, %v677
        %v707 = vmul.f32 %v552, %v677
        %v708 = vmul.f32 %v557, %v677
        %v709 = vmul.f32 %v562, %v677
        %v710 = vmul.f32 %v567, %v677
        %v711 = vmul.f32 %v572, %v677
        %v712 = vmul.f32 %v577, %v677
        %v713 = vmul.f32 %v582, %v677
        %v714 = vmul.f32 %v587, %v677
        %v715 = vmul.f32 %v592, %v677
        %v716 = vmul.f32 %v597, %v677
        %v717 = vmul.f32 %v602, %v677
        %v718 = vmul.f32 %v607, %v677
        %v719 = vmul.f32 %v612, %v677
        %v720 = vmul.f32 %v617, %v677
        %v721 = vmul.f32 %v622, %v677
        %v722 = vmul.f32 %v627, %v677
        %v723 = vmul.f32 %v632, %v677
        %v724 = vmul.f32 %v637, %v677
        %v725 = vmul.f32 %v642, %v677
        %v726 = vmul.f32 %v647, %v677
        %v727 = vmul.f32 %v652, %v677
        %v728 = vmul.f32 %v657, %v677
        %v729 = vmul.f32 %v662, %v677
        %v730 = vmul.f32 %v667, %v677
        %v731 = vmul.f32 %v672, %v677
        %732 = vset.pattern.permute.xlu0 1
        %733 = vperm.xlu0 %732, %v349
        %v734 = vpop.permute.xlu0 %733
        %736 = vset.pattern.permute.xlu0 1
        %737 = vperm.xlu0 %736, %v350
        %v738 = vpop.permute.xlu0 %737
        %740 = vset.pattern.permute.xlu0 1
        %741 = vperm.xlu0 %740, %v351
        %v742 = vpop.permute.xlu0 %741
        %744 = vset.pattern.permute.xlu0 1
        %745 = vperm.xlu0 %744, %v352
        %v746 = vpop.permute.xlu0 %745
        %748 = vset.pattern.permute.xlu0 1
        %749 = vperm.xlu0 %748, %v353
        %v750 = vpop.permute.xlu0 %749
        %752 = vset.pattern.permute.xlu0 1
        %753 = vperm.xlu0 %752, %v354
        %v754 = vpop.permute.xlu0 %753
        %756 = vset.pattern.permute.xlu0 1
        %757 = vperm.xlu0 %756, %v355
        %v758 = vpop.permute.xlu0 %757
        %760 = vset.pattern.permute.xlu0 1
        %761 = vperm.xlu0 %760, %v356
        %v762 = vpop.permute.xlu0 %761
        %764 = vset.pattern.permute.xlu0 1
        %765 = vperm.xlu0 %764, %v357
        %v766 = vpop.permute.xlu0 %765
        %768 = vset.pattern.permute.xlu0 1
        %769 = vperm.xlu0 %768, %v358
        %v770 = vpop.permute.xlu0 %769
        %772 = vset.pattern.permute.xlu0 1
        %773 = vperm.xlu0 %772, %v359
        %v774 = vpop.permute.xlu0 %773
        %776 = vset.pattern.permute.xlu0 1
        %777 = vperm.xlu0 %776, %v360
        %v778 = vpop.permute.xlu0 %777
        %780 = vset.pattern.permute.xlu0 1
        %781 = vperm.xlu0 %780, %v361
        %v782 = vpop.permute.xlu0 %781
        %784 = vset.pattern.permute.xlu0 1
        %785 = vperm.xlu0 %784, %v362
        %v786 = vpop.permute.xlu0 %785
        %788 = vset.pattern.permute.xlu0 1
        %789 = vperm.xlu0 %788, %v363
        %v790 = vpop.permute.xlu0 %789
        %792 = vset.pattern.permute.xlu0 1
        %793 = vperm.xlu0 %792, %v364
        %v794 = vpop.permute.xlu0 %793
        %796 = vset.pattern.permute.xlu0 1
        %797 = vperm.xlu0 %796, %v365
        %v798 = vpop.permute.xlu0 %797
        %800 = vset.pattern.permute.xlu0 1
        %801 = vperm.xlu0 %800, %v366
        %v802 = vpop.permute.xlu0 %801
        %804 = vset.pattern.permute.xlu0 1
        %805 = vperm.xlu0 %804, %v367
        %v806 = vpop.permute.xlu0 %805
        %808 = vset.pattern.permute.xlu0 1
        %809 = vperm.xlu0 %808, %v368
        %v810 = vpop.permute.xlu0 %809
        %812 = vset.pattern.permute.xlu0 1
        %813 = vperm.xlu0 %812, %v369
        %v814 = vpop.permute.xlu0 %813
        %816 = vset.pattern.permute.xlu0 1
        %817 = vperm.xlu0 %816, %v370
        %v818 = vpop.permute.xlu0 %817
        %820 = vset.pattern.permute.xlu0 1
        %821 = vperm.xlu0 %820, %v371
        %v822 = vpop.permute.xlu0 %821
        %824 = vset.pattern.permute.xlu0 1
        %825 = vperm.xlu0 %824, %v372
        %v826 = vpop.permute.xlu0 %825
        %828 = vset.pattern.permute.xlu0 1
        %829 = vperm.xlu0 %828, %v373
        %v830 = vpop.permute.xlu0 %829
        %832 = vset.pattern.permute.xlu0 1
        %833 = vperm.xlu0 %832, %v374
        %v834 = vpop.permute.xlu0 %833
        %836 = vset.pattern.permute.xlu0 1
        %837 = vperm.xlu0 %836, %v375
        %v838 = vpop.permute.xlu0 %837
        %840 = vset.pattern.permute.xlu0 1
        %841 = vperm.xlu0 %840, %v376
        %v842 = vpop.permute.xlu0 %841
        %844 = vset.pattern.permute.xlu0 1
        %845 = vperm.xlu0 %844, %v377
        %v846 = vpop.permute.xlu0 %845
        %848 = vset.pattern.permute.xlu0 1
        %849 = vperm.xlu0 %848, %v378
        %v850 = vpop.permute.xlu0 %849
        %852 = vset.pattern.permute.xlu0 1
        %853 = vperm.xlu0 %852, %v379
        %v854 = vpop.permute.xlu0 %853
        %856 = vset.pattern.permute.xlu0 1
        %857 = vperm.xlu0 %856, %v380
        %v858 = vpop.permute.xlu0 %857
        %860 = vset.pattern.permute.xlu0 1
        %861 = vperm.xlu0 %860, %v381
        %v862 = vpop.permute.xlu0 %861
        %864 = vset.pattern.permute.xlu0 1
        %865 = vperm.xlu0 %864, %v382
        %v866 = vpop.permute.xlu0 %865
        %868 = vset.pattern.permute.xlu0 1
        %869 = vperm.xlu0 %868, %v383
        %v870 = vpop.permute.xlu0 %869
        %872 = vset.pattern.permute.xlu0 1
        %873 = vperm.xlu0 %872, %v384
        %v874 = vpop.permute.xlu0 %873
        %876 = vset.pattern.permute.xlu0 1
        %877 = vperm.xlu0 %876, %v385
        %v878 = vpop.permute.xlu0 %877
        %880 = vset.pattern.permute.xlu0 1
        %881 = vperm.xlu0 %880, %v386
        %v882 = vpop.permute.xlu0 %881
        %884 = vset.pattern.permute.xlu0 1
        %885 = vperm.xlu0 %884, %v387
        %v886 = vpop.permute.xlu0 %885
        %888 = vset.pattern.permute.xlu0 1
        %889 = vperm.xlu0 %888, %v388
        %v890 = vpop.permute.xlu0 %889
        %892 = vset.pattern.permute.xlu0 1
        %893 = vperm.xlu0 %892, %v389
        %v894 = vpop.permute.xlu0 %893
        %896 = vset.pattern.permute.xlu0 1
        %897 = vperm.xlu0 %896, %v390
        %v898 = vpop.permute.xlu0 %897
        %900 = vset.pattern.permute.xlu0 1
        %901 = vperm.xlu0 %900, %v391
        %v902 = vpop.permute.xlu0 %901
        %904 = vset.pattern.permute.xlu0 1
        %905 = vperm.xlu0 %904, %v392
        %v906 = vpop.permute.xlu0 %905
        %908 = vset.pattern.permute.xlu0 1
        %909 = vperm.xlu0 %908, %v393
        %v910 = vpop.permute.xlu0 %909
        %912 = vset.pattern.permute.xlu0 1
        %913 = vperm.xlu0 %912, %v394
        %v914 = vpop.permute.xlu0 %913
        %916 = vset.pattern.permute.xlu0 1
        %917 = vperm.xlu0 %916, %v395
        %v918 = vpop.permute.xlu0 %917
        %920 = vset.pattern.permute.xlu0 1
        %921 = vperm.xlu0 %920, %v396
        %v922 = vpop.permute.xlu0 %921
        %924 = vset.pattern.permute.xlu0 1
        %925 = vperm.xlu0 %924, %v397
        %v926 = vpop.permute.xlu0 %925
        %928 = vset.pattern.permute.xlu0 1
        %929 = vperm.xlu0 %928, %v398
        %v930 = vpop.permute.xlu0 %929
        %932 = vset.pattern.permute.xlu0 1
        %933 = vperm.xlu0 %932, %v399
        %v934 = vpop.permute.xlu0 %933
        %936 = vset.pattern.permute.xlu0 1
        %937 = vperm.xlu0 %936, %v400
        %v938 = vpop.permute.xlu0 %937
        %940 = vset.pattern.permute.xlu0 1
        %941 = vperm.xlu0 %940, %v401
        %v942 = vpop.permute.xlu0 %941
        %944 = vset.pattern.permute.xlu0 1
        %945 = vperm.xlu0 %944, %v402
        %v946 = vpop.permute.xlu0 %945
        %v948 = vlaneseq
        %v949 = vshrl.u32 %v948, 7
        %v950 = vsub.s32 1, %v949
        %v951 = vrot.slane %v403, %v950
        %v952 = vmul.f32 %v734, %v951
        %v953 = vmul.f32 %v738, %v951
        %v954 = vmul.f32 %v742, %v951
        %v955 = vmul.f32 %v746, %v951
        %v956 = vmul.f32 %v750, %v951
        %v957 = vmul.f32 %v754, %v951
        %v958 = vmul.f32 %v758, %v951
        %v959 = vmul.f32 %v762, %v951
        %v960 = vmul.f32 %v766, %v951
        %v961 = vmul.f32 %v770, %v951
        %v962 = vmul.f32 %v774, %v951
        %v963 = vmul.f32 %v778, %v951
        %v964 = vmul.f32 %v782, %v951
        %v965 = vmul.f32 %v786, %v951
        %v966 = vmul.f32 %v790, %v951
        %v967 = vmul.f32 %v794, %v951
        %v968 = vmul.f32 %v798, %v951
        %v969 = vmul.f32 %v802, %v951
        %v970 = vmul.f32 %v806, %v951
        %v971 = vmul.f32 %v810, %v951
        %v972 = vmul.f32 %v814, %v951
        %v973 = vmul.f32 %v818, %v951
        %v974 = vmul.f32 %v822, %v951
        %v975 = vmul.f32 %v826, %v951
        %v976 = vmul.f32 %v830, %v951
        %v977 = vmul.f32 %v834, %v951
        %v978 = vmul.f32 %v838, %v951
        %v979 = vmul.f32 %v842, %v951
        %v980 = vmul.f32 %v846, %v951
        %v981 = vmul.f32 %v850, %v951
        %v982 = vmul.f32 %v854, %v951
        %v983 = vmul.f32 %v858, %v951
        %v984 = vmul.f32 %v862, %v951
        %v985 = vmul.f32 %v866, %v951
        %v986 = vmul.f32 %v870, %v951
        %v987 = vmul.f32 %v874, %v951
        %v988 = vmul.f32 %v878, %v951
        %v989 = vmul.f32 %v882, %v951
        %v990 = vmul.f32 %v886, %v951
        %v991 = vmul.f32 %v890, %v951
        %v992 = vmul.f32 %v894, %v951
        %v993 = vmul.f32 %v898, %v951
        %v994 = vmul.f32 %v902, %v951
        %v995 = vmul.f32 %v906, %v951
        %v996 = vmul.f32 %v910, %v951
        %v997 = vmul.f32 %v914, %v951
        %v998 = vmul.f32 %v918, %v951
        %v999 = vmul.f32 %v922, %v951
        %v1000 = vmul.f32 %v926, %v951
        %v1001 = vmul.f32 %v930, %v951
        %v1002 = vmul.f32 %v934, %v951
        %v1003 = vmul.f32 %v938, %v951
        %v1004 = vmul.f32 %v942, %v951
        %v1005 = vmul.f32 %v946, %v951
        %v1006 = vadd.f32 %v678, %v952
        %v1007 = vadd.f32 %v679, %v953
        %v1008 = vadd.f32 %v680, %v954
        %v1009 = vadd.f32 %v681, %v955
        %v1010 = vadd.f32 %v682, %v956
        %v1011 = vadd.f32 %v683, %v957
        %v1012 = vadd.f32 %v684, %v958
        %v1013 = vadd.f32 %v685, %v959
        %v1014 = vadd.f32 %v686, %v960
        %v1015 = vadd.f32 %v687, %v961
        %v1016 = vadd.f32 %v688, %v962
        %v1017 = vadd.f32 %v689, %v963
        %v1018 = vadd.f32 %v690, %v964
        %v1019 = vadd.f32 %v691, %v965
        %v1020 = vadd.f32 %v692, %v966
        %v1021 = vadd.f32 %v693, %v967
        %v1022 = vadd.f32 %v694, %v968
        %v1023 = vadd.f32 %v695, %v969
        %v1024 = vadd.f32 %v696, %v970
        %v1025 = vadd.f32 %v697, %v971
        %v1026 = vadd.f32 %v698, %v972
        %v1027 = vadd.f32 %v699, %v973
        %v1028 = vadd.f32 %v700, %v974
        %v1029 = vadd.f32 %v701, %v975
        %v1030 = vadd.f32 %v702, %v976
        %v1031 = vadd.f32 %v703, %v977
        %v1032 = vadd.f32 %v704, %v978
        %v1033 = vadd.f32 %v705, %v979
        %v1034 = vadd.f32 %v706, %v980
        %v1035 = vadd.f32 %v707, %v981
        %v1036 = vadd.f32 %v708, %v982
        %v1037 = vadd.f32 %v709, %v983
        %v1038 = vadd.f32 %v710, %v984
        %v1039 = vadd.f32 %v711, %v985
        %v1040 = vadd.f32 %v712, %v986
        %v1041 = vadd.f32 %v713, %v987
        %v1042 = vadd.f32 %v714, %v988
        %v1043 = vadd.f32 %v715, %v989
        %v1044 = vadd.f32 %v716, %v990
        %v1045 = vadd.f32 %v717, %v991
        %v1046 = vadd.f32 %v718, %v992
        %v1047 = vadd.f32 %v719, %v993
        %v1048 = vadd.f32 %v720, %v994
        %v1049 = vadd.f32 %v721, %v995
        %v1050 = vadd.f32 %v722, %v996
        %v1051 = vadd.f32 %v723, %v997
        %v1052 = vadd.f32 %v724, %v998
        %v1053 = vadd.f32 %v725, %v999
        %v1054 = vadd.f32 %v726, %v1000
        %v1055 = vadd.f32 %v727, %v1001
        %v1056 = vadd.f32 %v728, %v1002
        %v1057 = vadd.f32 %v729, %v1003
        %v1058 = vadd.f32 %v730, %v1004
        %v1059 = vadd.f32 %v731, %v1005
        %1060 = vset.pattern.permute.xlu0 2
        %1061 = vperm.xlu0 %1060, %v349
        %v1062 = vpop.permute.xlu0 %1061
        %1064 = vset.pattern.permute.xlu0 2
        %1065 = vperm.xlu0 %1064, %v350
        %v1066 = vpop.permute.xlu0 %1065
        %1068 = vset.pattern.permute.xlu0 2
        %1069 = vperm.xlu0 %1068, %v351
        %v1070 = vpop.permute.xlu0 %1069
        %1072 = vset.pattern.permute.xlu0 2
        %1073 = vperm.xlu0 %1072, %v352
        %v1074 = vpop.permute.xlu0 %1073
        %1076 = vset.pattern.permute.xlu0 2
        %1077 = vperm.xlu0 %1076, %v353
        %v1078 = vpop.permute.xlu0 %1077
        %1080 = vset.pattern.permute.xlu0 2
        %1081 = vperm.xlu0 %1080, %v354
        %v1082 = vpop.permute.xlu0 %1081
        %1084 = vset.pattern.permute.xlu0 2
        %1085 = vperm.xlu0 %1084, %v355
        %v1086 = vpop.permute.xlu0 %1085
        %1088 = vset.pattern.permute.xlu0 2
        %1089 = vperm.xlu0 %1088, %v356
        %v1090 = vpop.permute.xlu0 %1089
        %1092 = vset.pattern.permute.xlu0 2
        %1093 = vperm.xlu0 %1092, %v357
        %v1094 = vpop.permute.xlu0 %1093
        %1096 = vset.pattern.permute.xlu0 2
        %1097 = vperm.xlu0 %1096, %v358
        %v1098 = vpop.permute.xlu0 %1097
        %1100 = vset.pattern.permute.xlu0 2
        %1101 = vperm.xlu0 %1100, %v359
        %v1102 = vpop.permute.xlu0 %1101
        %1104 = vset.pattern.permute.xlu0 2
        %1105 = vperm.xlu0 %1104, %v360
        %v1106 = vpop.permute.xlu0 %1105
        %1108 = vset.pattern.permute.xlu0 2
        %1109 = vperm.xlu0 %1108, %v361
        %v1110 = vpop.permute.xlu0 %1109
        %1112 = vset.pattern.permute.xlu0 2
        %1113 = vperm.xlu0 %1112, %v362
        %v1114 = vpop.permute.xlu0 %1113
        %1116 = vset.pattern.permute.xlu0 2
        %1117 = vperm.xlu0 %1116, %v363
        %v1118 = vpop.permute.xlu0 %1117
        %1120 = vset.pattern.permute.xlu0 2
        %1121 = vperm.xlu0 %1120, %v364
        %v1122 = vpop.permute.xlu0 %1121
        %1124 = vset.pattern.permute.xlu0 2
        %1125 = vperm.xlu0 %1124, %v365
        %v1126 = vpop.permute.xlu0 %1125
        %1128 = vset.pattern.permute.xlu0 2
        %1129 = vperm.xlu0 %1128, %v366
        %v1130 = vpop.permute.xlu0 %1129
        %1132 = vset.pattern.permute.xlu0 2
        %1133 = vperm.xlu0 %1132, %v367
        %v1134 = vpop.permute.xlu0 %1133
        %1136 = vset.pattern.permute.xlu0 2
        %1137 = vperm.xlu0 %1136, %v368
        %v1138 = vpop.permute.xlu0 %1137
        %1140 = vset.pattern.permute.xlu0 2
        %1141 = vperm.xlu0 %1140, %v369
        %v1142 = vpop.permute.xlu0 %1141
        %1144 = vset.pattern.permute.xlu0 2
        %1145 = vperm.xlu0 %1144, %v370
        %v1146 = vpop.permute.xlu0 %1145
        %1148 = vset.pattern.permute.xlu0 2
        %1149 = vperm.xlu0 %1148, %v371
        %v1150 = vpop.permute.xlu0 %1149
        %1152 = vset.pattern.permute.xlu0 2
        %1153 = vperm.xlu0 %1152, %v372
        %v1154 = vpop.permute.xlu0 %1153
        %1156 = vset.pattern.permute.xlu0 2
        %1157 = vperm.xlu0 %1156, %v373
        %v1158 = vpop.permute.xlu0 %1157
        %1160 = vset.pattern.permute.xlu0 2
        %1161 = vperm.xlu0 %1160, %v374
        %v1162 = vpop.permute.xlu0 %1161
        %1164 = vset.pattern.permute.xlu0 2
        %1165 = vperm.xlu0 %1164, %v375
        %v1166 = vpop.permute.xlu0 %1165
        %1168 = vset.pattern.permute.xlu0 2
        %1169 = vperm.xlu0 %1168, %v376
        %v1170 = vpop.permute.xlu0 %1169
        %1172 = vset.pattern.permute.xlu0 2
        %1173 = vperm.xlu0 %1172, %v377
        %v1174 = vpop.permute.xlu0 %1173
        %1176 = vset.pattern.permute.xlu0 2
        %1177 = vperm.xlu0 %1176, %v378
        %v1178 = vpop.permute.xlu0 %1177
        %1180 = vset.pattern.permute.xlu0 2
        %1181 = vperm.xlu0 %1180, %v379
        %v1182 = vpop.permute.xlu0 %1181
        %1184 = vset.pattern.permute.xlu0 2
        %1185 = vperm.xlu0 %1184, %v380
        %v1186 = vpop.permute.xlu0 %1185
        %1188 = vset.pattern.permute.xlu0 2
        %1189 = vperm.xlu0 %1188, %v381
        %v1190 = vpop.permute.xlu0 %1189
        %1192 = vset.pattern.permute.xlu0 2
        %1193 = vperm.xlu0 %1192, %v382
        %v1194 = vpop.permute.xlu0 %1193
        %1196 = vset.pattern.permute.xlu0 2
        %1197 = vperm.xlu0 %1196, %v383
        %v1198 = vpop.permute.xlu0 %1197
        %1200 = vset.pattern.permute.xlu0 2
        %1201 = vperm.xlu0 %1200, %v384
        %v1202 = vpop.permute.xlu0 %1201
        %1204 = vset.pattern.permute.xlu0 2
        %1205 = vperm.xlu0 %1204, %v385
        %v1206 = vpop.permute.xlu0 %1205
        %1208 = vset.pattern.permute.xlu0 2
        %1209 = vperm.xlu0 %1208, %v386
        %v1210 = vpop.permute.xlu0 %1209
        %1212 = vset.pattern.permute.xlu0 2
        %1213 = vperm.xlu0 %1212, %v387
        %v1214 = vpop.permute.xlu0 %1213
        %1216 = vset.pattern.permute.xlu0 2
        %1217 = vperm.xlu0 %1216, %v388
        %v1218 = vpop.permute.xlu0 %1217
        %1220 = vset.pattern.permute.xlu0 2
        %1221 = vperm.xlu0 %1220, %v389
        %v1222 = vpop.permute.xlu0 %1221
        %1224 = vset.pattern.permute.xlu0 2
        %1225 = vperm.xlu0 %1224, %v390
        %v1226 = vpop.permute.xlu0 %1225
        %1228 = vset.pattern.permute.xlu0 2
        %1229 = vperm.xlu0 %1228, %v391
        %v1230 = vpop.permute.xlu0 %1229
        %1232 = vset.pattern.permute.xlu0 2
        %1233 = vperm.xlu0 %1232, %v392
        %v1234 = vpop.permute.xlu0 %1233
        %1236 = vset.pattern.permute.xlu0 2
        %1237 = vperm.xlu0 %1236, %v393
        %v1238 = vpop.permute.xlu0 %1237
        %1240 = vset.pattern.permute.xlu0 2
        %1241 = vperm.xlu0 %1240, %v394
        %v1242 = vpop.permute.xlu0 %1241
        %1244 = vset.pattern.permute.xlu0 2
        %1245 = vperm.xlu0 %1244, %v395
        %v1246 = vpop.permute.xlu0 %1245
        %1248 = vset.pattern.permute.xlu0 2
        %1249 = vperm.xlu0 %1248, %v396
        %v1250 = vpop.permute.xlu0 %1249
        %1252 = vset.pattern.permute.xlu0 2
        %1253 = vperm.xlu0 %1252, %v397
        %v1254 = vpop.permute.xlu0 %1253
        %1256 = vset.pattern.permute.xlu0 2
        %1257 = vperm.xlu0 %1256, %v398
        %v1258 = vpop.permute.xlu0 %1257
        %1260 = vset.pattern.permute.xlu0 2
        %1261 = vperm.xlu0 %1260, %v399
        %v1262 = vpop.permute.xlu0 %1261
        %1264 = vset.pattern.permute.xlu0 2
        %1265 = vperm.xlu0 %1264, %v400
        %v1266 = vpop.permute.xlu0 %1265
        %1268 = vset.pattern.permute.xlu0 2
        %1269 = vperm.xlu0 %1268, %v401
        %v1270 = vpop.permute.xlu0 %1269
        %1272 = vset.pattern.permute.xlu0 2
        %1273 = vperm.xlu0 %1272, %v402
        %v1274 = vpop.permute.xlu0 %1273
        %v1276 = vlaneseq
        %v1277 = vshrl.u32 %v1276, 7
        %v1278 = vsub.s32 2, %v1277
        %v1279 = vrot.slane %v403, %v1278
        %v1280 = vmul.f32 %v1062, %v1279
        %v1281 = vmul.f32 %v1066, %v1279
        %v1282 = vmul.f32 %v1070, %v1279
        %v1283 = vmul.f32 %v1074, %v1279
        %v1284 = vmul.f32 %v1078, %v1279
        %v1285 = vmul.f32 %v1082, %v1279
        %v1286 = vmul.f32 %v1086, %v1279
        %v1287 = vmul.f32 %v1090, %v1279
        %v1288 = vmul.f32 %v1094, %v1279
        %v1289 = vmul.f32 %v1098, %v1279
        %v1290 = vmul.f32 %v1102, %v1279
        %v1291 = vmul.f32 %v1106, %v1279
        %v1292 = vmul.f32 %v1110, %v1279
        %v1293 = vmul.f32 %v1114, %v1279
        %v1294 = vmul.f32 %v1118, %v1279
        %v1295 = vmul.f32 %v1122, %v1279
        %v1296 = vmul.f32 %v1126, %v1279
        %v1297 = vmul.f32 %v1130, %v1279
        %v1298 = vmul.f32 %v1134, %v1279
        %v1299 = vmul.f32 %v1138, %v1279
        %v1300 = vmul.f32 %v1142, %v1279
        %v1301 = vmul.f32 %v1146, %v1279
        %v1302 = vmul.f32 %v1150, %v1279
        %v1303 = vmul.f32 %v1154, %v1279
        %v1304 = vmul.f32 %v1158, %v1279
        %v1305 = vmul.f32 %v1162, %v1279
        %v1306 = vmul.f32 %v1166, %v1279
        %v1307 = vmul.f32 %v1170, %v1279
        %v1308 = vmul.f32 %v1174, %v1279
        %v1309 = vmul.f32 %v1178, %v1279
        %v1310 = vmul.f32 %v1182, %v1279
        %v1311 = vmul.f32 %v1186, %v1279
        %v1312 = vmul.f32 %v1190, %v1279
        %v1313 = vmul.f32 %v1194, %v1279
        %v1314 = vmul.f32 %v1198, %v1279
        %v1315 = vmul.f32 %v1202, %v1279
        %v1316 = vmul.f32 %v1206, %v1279
        %v1317 = vmul.f32 %v1210, %v1279
        %v1318 = vmul.f32 %v1214, %v1279
        %v1319 = vmul.f32 %v1218, %v1279
        %v1320 = vmul.f32 %v1222, %v1279
        %v1321 = vmul.f32 %v1226, %v1279
        %v1322 = vmul.f32 %v1230, %v1279
        %v1323 = vmul.f32 %v1234, %v1279
        %v1324 = vmul.f32 %v1238, %v1279
        %v1325 = vmul.f32 %v1242, %v1279
        %v1326 = vmul.f32 %v1246, %v1279
        %v1327 = vmul.f32 %v1250, %v1279
        %v1328 = vmul.f32 %v1254, %v1279
        %v1329 = vmul.f32 %v1258, %v1279
        %v1330 = vmul.f32 %v1262, %v1279
        %v1331 = vmul.f32 %v1266, %v1279
        %v1332 = vmul.f32 %v1270, %v1279
        %v1333 = vmul.f32 %v1274, %v1279
        %v1334 = vadd.f32 %v1006, %v1280
        %v1335 = vadd.f32 %v1007, %v1281
        %v1336 = vadd.f32 %v1008, %v1282
        %v1337 = vadd.f32 %v1009, %v1283
        %v1338 = vadd.f32 %v1010, %v1284
        %v1339 = vadd.f32 %v1011, %v1285
        %v1340 = vadd.f32 %v1012, %v1286
        %v1341 = vadd.f32 %v1013, %v1287
        %v1342 = vadd.f32 %v1014, %v1288
        %v1343 = vadd.f32 %v1015, %v1289
        %v1344 = vadd.f32 %v1016, %v1290
        %v1345 = vadd.f32 %v1017, %v1291
        %v1346 = vadd.f32 %v1018, %v1292
        %v1347 = vadd.f32 %v1019, %v1293
        %v1348 = vadd.f32 %v1020, %v1294
        %v1349 = vadd.f32 %v1021, %v1295
        %v1350 = vadd.f32 %v1022, %v1296
        %v1351 = vadd.f32 %v1023, %v1297
        %v1352 = vadd.f32 %v1024, %v1298
        %v1353 = vadd.f32 %v1025, %v1299
        %v1354 = vadd.f32 %v1026, %v1300
        %v1355 = vadd.f32 %v1027, %v1301
        %v1356 = vadd.f32 %v1028, %v1302
        %v1357 = vadd.f32 %v1029, %v1303
        %v1358 = vadd.f32 %v1030, %v1304
        %v1359 = vadd.f32 %v1031, %v1305
        %v1360 = vadd.f32 %v1032, %v1306
        %v1361 = vadd.f32 %v1033, %v1307
        %v1362 = vadd.f32 %v1034, %v1308
        %v1363 = vadd.f32 %v1035, %v1309
        %v1364 = vadd.f32 %v1036, %v1310
        %v1365 = vadd.f32 %v1037, %v1311
        %v1366 = vadd.f32 %v1038, %v1312
        %v1367 = vadd.f32 %v1039, %v1313
        %v1368 = vadd.f32 %v1040, %v1314
        %v1369 = vadd.f32 %v1041, %v1315
        %v1370 = vadd.f32 %v1042, %v1316
        %v1371 = vadd.f32 %v1043, %v1317
        %v1372 = vadd.f32 %v1044, %v1318
        %v1373 = vadd.f32 %v1045, %v1319
        %v1374 = vadd.f32 %v1046, %v1320
        %v1375 = vadd.f32 %v1047, %v1321
        %v1376 = vadd.f32 %v1048, %v1322
        %v1377 = vadd.f32 %v1049, %v1323
        %v1378 = vadd.f32 %v1050, %v1324
        %v1379 = vadd.f32 %v1051, %v1325
        %v1380 = vadd.f32 %v1052, %v1326
        %v1381 = vadd.f32 %v1053, %v1327
        %v1382 = vadd.f32 %v1054, %v1328
        %v1383 = vadd.f32 %v1055, %v1329
        %v1384 = vadd.f32 %v1056, %v1330
        %v1385 = vadd.f32 %v1057, %v1331
        %v1386 = vadd.f32 %v1058, %v1332
        %v1387 = vadd.f32 %v1059, %v1333
        %1388 = vset.pattern.permute.xlu0 3
        %1389 = vperm.xlu0 %1388, %v349
        %v1390 = vpop.permute.xlu0 %1389
        %1392 = vset.pattern.permute.xlu0 3
        %1393 = vperm.xlu0 %1392, %v350
        %v1394 = vpop.permute.xlu0 %1393
        %1396 = vset.pattern.permute.xlu0 3
        %1397 = vperm.xlu0 %1396, %v351
        %v1398 = vpop.permute.xlu0 %1397
        %1400 = vset.pattern.permute.xlu0 3
        %1401 = vperm.xlu0 %1400, %v352
        %v1402 = vpop.permute.xlu0 %1401
        %1404 = vset.pattern.permute.xlu0 3
        %1405 = vperm.xlu0 %1404, %v353
        %v1406 = vpop.permute.xlu0 %1405
        %1408 = vset.pattern.permute.xlu0 3
        %1409 = vperm.xlu0 %1408, %v354
        %v1410 = vpop.permute.xlu0 %1409
        %1412 = vset.pattern.permute.xlu0 3
        %1413 = vperm.xlu0 %1412, %v355
        %v1414 = vpop.permute.xlu0 %1413
        %1416 = vset.pattern.permute.xlu0 3
        %1417 = vperm.xlu0 %1416, %v356
        %v1418 = vpop.permute.xlu0 %1417
        %1420 = vset.pattern.permute.xlu0 3
        %1421 = vperm.xlu0 %1420, %v357
        %v1422 = vpop.permute.xlu0 %1421
        %1424 = vset.pattern.permute.xlu0 3
        %1425 = vperm.xlu0 %1424, %v358
        %v1426 = vpop.permute.xlu0 %1425
        %1428 = vset.pattern.permute.xlu0 3
        %1429 = vperm.xlu0 %1428, %v359
        %v1430 = vpop.permute.xlu0 %1429
        %1432 = vset.pattern.permute.xlu0 3
        %1433 = vperm.xlu0 %1432, %v360
        %v1434 = vpop.permute.xlu0 %1433
        %1436 = vset.pattern.permute.xlu0 3
        %1437 = vperm.xlu0 %1436, %v361
        %v1438 = vpop.permute.xlu0 %1437
        %1440 = vset.pattern.permute.xlu0 3
        %1441 = vperm.xlu0 %1440, %v362
        %v1442 = vpop.permute.xlu0 %1441
        %1444 = vset.pattern.permute.xlu0 3
        %1445 = vperm.xlu0 %1444, %v363
        %v1446 = vpop.permute.xlu0 %1445
        %1448 = vset.pattern.permute.xlu0 3
        %1449 = vperm.xlu0 %1448, %v364
        %v1450 = vpop.permute.xlu0 %1449
        %1452 = vset.pattern.permute.xlu0 3
        %1453 = vperm.xlu0 %1452, %v365
        %v1454 = vpop.permute.xlu0 %1453
        %1456 = vset.pattern.permute.xlu0 3
        %1457 = vperm.xlu0 %1456, %v366
        %v1458 = vpop.permute.xlu0 %1457
        %1460 = vset.pattern.permute.xlu0 3
        %1461 = vperm.xlu0 %1460, %v367
        %v1462 = vpop.permute.xlu0 %1461
        %1464 = vset.pattern.permute.xlu0 3
        %1465 = vperm.xlu0 %1464, %v368
        %v1466 = vpop.permute.xlu0 %1465
        %1468 = vset.pattern.permute.xlu0 3
        %1469 = vperm.xlu0 %1468, %v369
        %v1470 = vpop.permute.xlu0 %1469
        %1472 = vset.pattern.permute.xlu0 3
        %1473 = vperm.xlu0 %1472, %v370
        %v1474 = vpop.permute.xlu0 %1473
        %1476 = vset.pattern.permute.xlu0 3
        %1477 = vperm.xlu0 %1476, %v371
        %v1478 = vpop.permute.xlu0 %1477
        %1480 = vset.pattern.permute.xlu0 3
        %1481 = vperm.xlu0 %1480, %v372
        %v1482 = vpop.permute.xlu0 %1481
        %1484 = vset.pattern.permute.xlu0 3
        %1485 = vperm.xlu0 %1484, %v373
        %v1486 = vpop.permute.xlu0 %1485
        %1488 = vset.pattern.permute.xlu0 3
        %1489 = vperm.xlu0 %1488, %v374
        %v1490 = vpop.permute.xlu0 %1489
        %1492 = vset.pattern.permute.xlu0 3
        %1493 = vperm.xlu0 %1492, %v375
        %v1494 = vpop.permute.xlu0 %1493
        %1496 = vset.pattern.permute.xlu0 3
        %1497 = vperm.xlu0 %1496, %v376
        %v1498 = vpop.permute.xlu0 %1497
        %1500 = vset.pattern.permute.xlu0 3
        %1501 = vperm.xlu0 %1500, %v377
        %v1502 = vpop.permute.xlu0 %1501
        %1504 = vset.pattern.permute.xlu0 3
        %1505 = vperm.xlu0 %1504, %v378
        %v1506 = vpop.permute.xlu0 %1505
        %1508 = vset.pattern.permute.xlu0 3
        %1509 = vperm.xlu0 %1508, %v379
        %v1510 = vpop.permute.xlu0 %1509
        %1512 = vset.pattern.permute.xlu0 3
        %1513 = vperm.xlu0 %1512, %v380
        %v1514 = vpop.permute.xlu0 %1513
        %1516 = vset.pattern.permute.xlu0 3
        %1517 = vperm.xlu0 %1516, %v381
        %v1518 = vpop.permute.xlu0 %1517
        %1520 = vset.pattern.permute.xlu0 3
        %1521 = vperm.xlu0 %1520, %v382
        %v1522 = vpop.permute.xlu0 %1521
        %1524 = vset.pattern.permute.xlu0 3
        %1525 = vperm.xlu0 %1524, %v383
        %v1526 = vpop.permute.xlu0 %1525
        %1528 = vset.pattern.permute.xlu0 3
        %1529 = vperm.xlu0 %1528, %v384
        %v1530 = vpop.permute.xlu0 %1529
        %1532 = vset.pattern.permute.xlu0 3
        %1533 = vperm.xlu0 %1532, %v385
        %v1534 = vpop.permute.xlu0 %1533
        %1536 = vset.pattern.permute.xlu0 3
        %1537 = vperm.xlu0 %1536, %v386
        %v1538 = vpop.permute.xlu0 %1537
        %1540 = vset.pattern.permute.xlu0 3
        %1541 = vperm.xlu0 %1540, %v387
        %v1542 = vpop.permute.xlu0 %1541
        %1544 = vset.pattern.permute.xlu0 3
        %1545 = vperm.xlu0 %1544, %v388
        %v1546 = vpop.permute.xlu0 %1545
        %1548 = vset.pattern.permute.xlu0 3
        %1549 = vperm.xlu0 %1548, %v389
        %v1550 = vpop.permute.xlu0 %1549
        %1552 = vset.pattern.permute.xlu0 3
        %1553 = vperm.xlu0 %1552, %v390
        %v1554 = vpop.permute.xlu0 %1553
        %1556 = vset.pattern.permute.xlu0 3
        %1557 = vperm.xlu0 %1556, %v391
        %v1558 = vpop.permute.xlu0 %1557
        %1560 = vset.pattern.permute.xlu0 3
        %1561 = vperm.xlu0 %1560, %v392
        %v1562 = vpop.permute.xlu0 %1561
        %1564 = vset.pattern.permute.xlu0 3
        %1565 = vperm.xlu0 %1564, %v393
        %v1566 = vpop.permute.xlu0 %1565
        %1568 = vset.pattern.permute.xlu0 3
        %1569 = vperm.xlu0 %1568, %v394
        %v1570 = vpop.permute.xlu0 %1569
        %1572 = vset.pattern.permute.xlu0 3
        %1573 = vperm.xlu0 %1572, %v395
        %v1574 = vpop.permute.xlu0 %1573
        %1576 = vset.pattern.permute.xlu0 3
        %1577 = vperm.xlu0 %1576, %v396
        %v1578 = vpop.permute.xlu0 %1577
        %1580 = vset.pattern.permute.xlu0 3
        %1581 = vperm.xlu0 %1580, %v397
        %v1582 = vpop.permute.xlu0 %1581
        %1584 = vset.pattern.permute.xlu0 3
        %1585 = vperm.xlu0 %1584, %v398
        %v1586 = vpop.permute.xlu0 %1585
        %1588 = vset.pattern.permute.xlu0 3
        %1589 = vperm.xlu0 %1588, %v399
        %v1590 = vpop.permute.xlu0 %1589
        %1592 = vset.pattern.permute.xlu0 3
        %1593 = vperm.xlu0 %1592, %v400
        %v1594 = vpop.permute.xlu0 %1593
        %1596 = vset.pattern.permute.xlu0 3
        %1597 = vperm.xlu0 %1596, %v401
        %v1598 = vpop.permute.xlu0 %1597
        %1600 = vset.pattern.permute.xlu0 3
        %1601 = vperm.xlu0 %1600, %v402
        %v1602 = vpop.permute.xlu0 %1601
        %v1604 = vlaneseq
        %v1605 = vshrl.u32 %v1604, 7
        %v1606 = vsub.s32 3, %v1605
        %v1607 = vrot.slane %v403, %v1606
        %v1608 = vmul.f32 %v1390, %v1607
        %v1609 = vmul.f32 %v1394, %v1607
        %v1610 = vmul.f32 %v1398, %v1607
        %v1611 = vmul.f32 %v1402, %v1607
        %v1612 = vmul.f32 %v1406, %v1607
        %v1613 = vmul.f32 %v1410, %v1607
        %v1614 = vmul.f32 %v1414, %v1607
        %v1615 = vmul.f32 %v1418, %v1607
        %v1616 = vmul.f32 %v1422, %v1607
        %v1617 = vmul.f32 %v1426, %v1607
        %v1618 = vmul.f32 %v1430, %v1607
        %v1619 = vmul.f32 %v1434, %v1607
        %v1620 = vmul.f32 %v1438, %v1607
        %v1621 = vmul.f32 %v1442, %v1607
        %v1622 = vmul.f32 %v1446, %v1607
        %v1623 = vmul.f32 %v1450, %v1607
        %v1624 = vmul.f32 %v1454, %v1607
        %v1625 = vmul.f32 %v1458, %v1607
        %v1626 = vmul.f32 %v1462, %v1607
        %v1627 = vmul.f32 %v1466, %v1607
        %v1628 = vmul.f32 %v1470, %v1607
        %v1629 = vmul.f32 %v1474, %v1607
        %v1630 = vmul.f32 %v1478, %v1607
        %v1631 = vmul.f32 %v1482, %v1607
        %v1632 = vmul.f32 %v1486, %v1607
        %v1633 = vmul.f32 %v1490, %v1607
        %v1634 = vmul.f32 %v1494, %v1607
        %v1635 = vmul.f32 %v1498, %v1607
        %v1636 = vmul.f32 %v1502, %v1607
        %v1637 = vmul.f32 %v1506, %v1607
        %v1638 = vmul.f32 %v1510, %v1607
        %v1639 = vmul.f32 %v1514, %v1607
        %v1640 = vmul.f32 %v1518, %v1607
        %v1641 = vmul.f32 %v1522, %v1607
        %v1642 = vmul.f32 %v1526, %v1607
        %v1643 = vmul.f32 %v1530, %v1607
        %v1644 = vmul.f32 %v1534, %v1607
        %v1645 = vmul.f32 %v1538, %v1607
        %v1646 = vmul.f32 %v1542, %v1607
        %v1647 = vmul.f32 %v1546, %v1607
        %v1648 = vmul.f32 %v1550, %v1607
        %v1649 = vmul.f32 %v1554, %v1607
        %v1650 = vmul.f32 %v1558, %v1607
        %v1651 = vmul.f32 %v1562, %v1607
        %v1652 = vmul.f32 %v1566, %v1607
        %v1653 = vmul.f32 %v1570, %v1607
        %v1654 = vmul.f32 %v1574, %v1607
        %v1655 = vmul.f32 %v1578, %v1607
        %v1656 = vmul.f32 %v1582, %v1607
        %v1657 = vmul.f32 %v1586, %v1607
        %v1658 = vmul.f32 %v1590, %v1607
        %v1659 = vmul.f32 %v1594, %v1607
        %v1660 = vmul.f32 %v1598, %v1607
        %v1661 = vmul.f32 %v1602, %v1607
        %v1662 = vadd.f32 %v1334, %v1608
        %v1663 = vadd.f32 %v1335, %v1609
        %v1664 = vadd.f32 %v1336, %v1610
        %v1665 = vadd.f32 %v1337, %v1611
        %v1666 = vadd.f32 %v1338, %v1612
        %v1667 = vadd.f32 %v1339, %v1613
        %v1668 = vadd.f32 %v1340, %v1614
        %v1669 = vadd.f32 %v1341, %v1615
        %v1670 = vadd.f32 %v1342, %v1616
        %v1671 = vadd.f32 %v1343, %v1617
        %v1672 = vadd.f32 %v1344, %v1618
        %v1673 = vadd.f32 %v1345, %v1619
        %v1674 = vadd.f32 %v1346, %v1620
        %v1675 = vadd.f32 %v1347, %v1621
        %v1676 = vadd.f32 %v1348, %v1622
        %v1677 = vadd.f32 %v1349, %v1623
        %v1678 = vadd.f32 %v1350, %v1624
        %v1679 = vadd.f32 %v1351, %v1625
        %v1680 = vadd.f32 %v1352, %v1626
        %v1681 = vadd.f32 %v1353, %v1627
        %v1682 = vadd.f32 %v1354, %v1628
        %v1683 = vadd.f32 %v1355, %v1629
        %v1684 = vadd.f32 %v1356, %v1630
        %v1685 = vadd.f32 %v1357, %v1631
        %v1686 = vadd.f32 %v1358, %v1632
        %v1687 = vadd.f32 %v1359, %v1633
        %v1688 = vadd.f32 %v1360, %v1634
        %v1689 = vadd.f32 %v1361, %v1635
        %v1690 = vadd.f32 %v1362, %v1636
        %v1691 = vadd.f32 %v1363, %v1637
        %v1692 = vadd.f32 %v1364, %v1638
        %v1693 = vadd.f32 %v1365, %v1639
        %v1694 = vadd.f32 %v1366, %v1640
        %v1695 = vadd.f32 %v1367, %v1641
        %v1696 = vadd.f32 %v1368, %v1642
        %v1697 = vadd.f32 %v1369, %v1643
        %v1698 = vadd.f32 %v1370, %v1644
        %v1699 = vadd.f32 %v1371, %v1645
        %v1700 = vadd.f32 %v1372, %v1646
        %v1701 = vadd.f32 %v1373, %v1647
        %v1702 = vadd.f32 %v1374, %v1648
        %v1703 = vadd.f32 %v1375, %v1649
        %v1704 = vadd.f32 %v1376, %v1650
        %v1705 = vadd.f32 %v1377, %v1651
        %v1706 = vadd.f32 %v1378, %v1652
        %v1707 = vadd.f32 %v1379, %v1653
        %v1708 = vadd.f32 %v1380, %v1654
        %v1709 = vadd.f32 %v1381, %v1655
        %v1710 = vadd.f32 %v1382, %v1656
        %v1711 = vadd.f32 %v1383, %v1657
        %v1712 = vadd.f32 %v1384, %v1658
        %v1713 = vadd.f32 %v1385, %v1659
        %v1714 = vadd.f32 %v1386, %v1660
        %v1715 = vadd.f32 %v1387, %v1661
        %v1716 = vld [vmem:[%s2] sm:$0x1]
        %v1718 = vlaneseq
        %v1719 = vshrl.u32 %v1718, 7
        %v1720 = vsub.s32 0, %v1719
        %v1721 = vrot.slane %v1716, %v1720
        %v1723 = vadd.f32 %v1662, %v1721
        %v1724 = vadd.f32 %v1663, %v1721
        %v1725 = vadd.f32 %v1664, %v1721
        %v1726 = vadd.f32 %v1665, %v1721
        %v1727 = vadd.f32 %v1666, %v1721
        %v1728 = vadd.f32 %v1667, %v1721
        %v1729 = vadd.f32 %v1668, %v1721
        %v1730 = vadd.f32 %v1669, %v1721
        %v1731 = vadd.f32 %v1670, %v1721
        %v1732 = vadd.f32 %v1671, %v1721
        %v1733 = vadd.f32 %v1672, %v1721
        %v1734 = vadd.f32 %v1673, %v1721
        %v1735 = vadd.f32 %v1674, %v1721
        %v1736 = vadd.f32 %v1675, %v1721
        %v1737 = vadd.f32 %v1676, %v1721
        %v1738 = vadd.f32 %v1677, %v1721
        %v1739 = vadd.f32 %v1678, %v1721
        %v1740 = vadd.f32 %v1679, %v1721
        %v1741 = vadd.f32 %v1680, %v1721
        %v1742 = vadd.f32 %v1681, %v1721
        %v1743 = vadd.f32 %v1682, %v1721
        %v1744 = vadd.f32 %v1683, %v1721
        %v1745 = vadd.f32 %v1684, %v1721
        %v1746 = vadd.f32 %v1685, %v1721
        %v1747 = vadd.f32 %v1686, %v1721
        %v1748 = vadd.f32 %v1687, %v1721
        %v1749 = vadd.f32 %v1688, %v1721
        %v1750 = vadd.f32 %v1689, %v1721
        %v1751 = vadd.f32 %v1690, %v1721
        %v1752 = vadd.f32 %v1691, %v1721
        %v1753 = vadd.f32 %v1692, %v1721
        %v1754 = vadd.f32 %v1693, %v1721
        %v1755 = vadd.f32 %v1694, %v1721
        %v1756 = vadd.f32 %v1695, %v1721
        %v1757 = vadd.f32 %v1696, %v1721
        %v1758 = vadd.f32 %v1697, %v1721
        %v1759 = vadd.f32 %v1698, %v1721
        %v1760 = vadd.f32 %v1699, %v1721
        %v1761 = vadd.f32 %v1700, %v1721
        %v1762 = vadd.f32 %v1701, %v1721
        %v1763 = vadd.f32 %v1702, %v1721
        %v1764 = vadd.f32 %v1703, %v1721
        %v1765 = vadd.f32 %v1704, %v1721
        %v1766 = vadd.f32 %v1705, %v1721
        %v1767 = vadd.f32 %v1706, %v1721
        %v1768 = vadd.f32 %v1707, %v1721
        %v1769 = vadd.f32 %v1708, %v1721
        %v1770 = vadd.f32 %v1709, %v1721
        %v1771 = vadd.f32 %v1710, %v1721
        %v1772 = vadd.f32 %v1711, %v1721
        %v1773 = vadd.f32 %v1712, %v1721
        %v1774 = vadd.f32 %v1713, %v1721
        %v1775 = vadd.f32 %v1714, %v1721
        %v1776 = vadd.f32 %v1715, %v1721
        %v1777 = vmax.f32 %v1723, 0.0
        %v1778 = vmax.f32 %v1724, 0.0
        %v1779 = vmax.f32 %v1725, 0.0
        %v1780 = vmax.f32 %v1726, 0.0
        %v1781 = vmax.f32 %v1727, 0.0
        %v1782 = vmax.f32 %v1728, 0.0
        %v1783 = vmax.f32 %v1729, 0.0
        %v1784 = vmax.f32 %v1730, 0.0
        %v1785 = vmax.f32 %v1731, 0.0
        %v1786 = vmax.f32 %v1732, 0.0
        %v1787 = vmax.f32 %v1733, 0.0
        %v1788 = vmax.f32 %v1734, 0.0
        %v1789 = vmax.f32 %v1735, 0.0
        %v1790 = vmax.f32 %v1736, 0.0
        %v1791 = vmax.f32 %v1737, 0.0
        %v1792 = vmax.f32 %v1738, 0.0
        %v1793 = vmax.f32 %v1739, 0.0
        %v1794 = vmax.f32 %v1740, 0.0
        %v1795 = vmax.f32 %v1741, 0.0
        %v1796 = vmax.f32 %v1742, 0.0
        %v1797 = vmax.f32 %v1743, 0.0
        %v1798 = vmax.f32 %v1744, 0.0
        %v1799 = vmax.f32 %v1745, 0.0
        %v1800 = vmax.f32 %v1746, 0.0
        %v1801 = vmax.f32 %v1747, 0.0
        %v1802 = vmax.f32 %v1748, 0.0
        %v1803 = vmax.f32 %v1749, 0.0
        %v1804 = vmax.f32 %v1750, 0.0
        %v1805 = vmax.f32 %v1751, 0.0
        %v1806 = vmax.f32 %v1752, 0.0
        %v1807 = vmax.f32 %v1753, 0.0
        %v1808 = vmax.f32 %v1754, 0.0
        %v1809 = vmax.f32 %v1755, 0.0
        %v1810 = vmax.f32 %v1756, 0.0
        %v1811 = vmax.f32 %v1757, 0.0
        %v1812 = vmax.f32 %v1758, 0.0
        %v1813 = vmax.f32 %v1759, 0.0
        %v1814 = vmax.f32 %v1760, 0.0
        %v1815 = vmax.f32 %v1761, 0.0
        %v1816 = vmax.f32 %v1762, 0.0
        %v1817 = vmax.f32 %v1763, 0.0
        %v1818 = vmax.f32 %v1764, 0.0
        %v1819 = vmax.f32 %v1765, 0.0
        %v1820 = vmax.f32 %v1766, 0.0
        %v1821 = vmax.f32 %v1767, 0.0
        %v1822 = vmax.f32 %v1768, 0.0
        %v1823 = vmax.f32 %v1769, 0.0
        %v1824 = vmax.f32 %v1770, 0.0
        %v1825 = vmax.f32 %v1771, 0.0
        %v1826 = vmax.f32 %v1772, 0.0
        %v1827 = vmax.f32 %v1773, 0.0
        %v1828 = vmax.f32 %v1774, 0.0
        %v1829 = vmax.f32 %v1775, 0.0
        %v1830 = vmax.f32 %v1776, 0.0
        %v1831 = vstv %s346
        %v1832 = vadd.s32 %v1831, 1
        %v1833 = vadd.s32 %v1831, 2
        %v1834 = vadd.s32 %v1831, 3
        %v1835 = vadd.s32 %v1831, 4
        %v1836 = vadd.s32 %v1831, 5
        %v1837 = vadd.s32 %v1831, 6
        %v1838 = vadd.s32 %v1831, 7
        %v1839 = vadd.s32 %v1831, 8
        %v1840 = vadd.s32 %v1831, 9
        %v1841 = vadd.s32 %v1831, 10
        %v1842 = vadd.s32 %v1831, 11
        %v1843 = vadd.s32 %v1831, 12
        %v1844 = vadd.s32 %v1831, 13
        %v1845 = vadd.s32 %v1831, 14
        %v1846 = vadd.s32 %v1831, 15
        %v1847 = vadd.s32 %v1831, 16
        %v1848 = vadd.s32 %v1831, 17
        %v1849 = vlaneseq
        %v1850 = vshrl.u32 %v1849, 7
        %v1851 = vadd.s32 %v1850, 8
        %v1852 = vadd.s32 %v1850, 16
        %vm1853 = vcmp.ge.s32.totalorder %v1831, 1
        %vm1854 = vcmp.ge.s32.totalorder %v1832, 1
        %vm1855 = vcmp.ge.s32.totalorder %v1833, 1
        %vm1856 = vcmp.ge.s32.totalorder %v1834, 1
        %vm1857 = vcmp.ge.s32.totalorder %v1835, 1
        %vm1858 = vcmp.ge.s32.totalorder %v1836, 1
        %vm1859 = vcmp.ge.s32.totalorder %v1837, 1
        %vm1860 = vcmp.ge.s32.totalorder %v1838, 1
        %vm1861 = vcmp.ge.s32.totalorder %v1839, 1
        %vm1862 = vcmp.ge.s32.totalorder %v1840, 1
        %vm1863 = vcmp.ge.s32.totalorder %v1841, 1
        %vm1864 = vcmp.ge.s32.totalorder %v1842, 1
        %vm1865 = vcmp.ge.s32.totalorder %v1843, 1
        %vm1866 = vcmp.ge.s32.totalorder %v1844, 1
        %vm1867 = vcmp.ge.s32.totalorder %v1845, 1
        %vm1868 = vcmp.ge.s32.totalorder %v1846, 1
        %vm1869 = vcmp.ge.s32.totalorder %v1847, 1
        %vm1870 = vcmp.ge.s32.totalorder %v1848, 1
        %vm1871 = vcmp.le.s32.totalorder %v1831, 16
        %vm1872 = vcmp.le.s32.totalorder %v1832, 16
        %vm1873 = vcmp.le.s32.totalorder %v1833, 16
        %vm1874 = vcmp.le.s32.totalorder %v1834, 16
        %vm1875 = vcmp.le.s32.totalorder %v1835, 16
        %vm1876 = vcmp.le.s32.totalorder %v1836, 16
        %vm1877 = vcmp.le.s32.totalorder %v1837, 16
        %vm1878 = vcmp.le.s32.totalorder %v1838, 16
        %vm1879 = vcmp.le.s32.totalorder %v1839, 16
        %vm1880 = vcmp.le.s32.totalorder %v1840, 16
        %vm1881 = vcmp.le.s32.totalorder %v1841, 16
        %vm1882 = vcmp.le.s32.totalorder %v1842, 16
        %vm1883 = vcmp.le.s32.totalorder %v1843, 16
        %vm1884 = vcmp.le.s32.totalorder %v1844, 16
        %vm1885 = vcmp.le.s32.totalorder %v1845, 16
        %vm1886 = vcmp.le.s32.totalorder %v1846, 16
        %vm1887 = vcmp.le.s32.totalorder %v1847, 16
        %vm1888 = vcmp.le.s32.totalorder %v1848, 16
        %vm1889 = vmand %vm1853, %vm1871
        %vm1890 = vmand %vm1854, %vm1872
        %vm1891 = vmand %vm1855, %vm1873
        %vm1892 = vmand %vm1856, %vm1874
        %vm1893 = vmand %vm1857, %vm1875
        %vm1894 = vmand %vm1858, %vm1876
        %vm1895 = vmand %vm1859, %vm1877
        %vm1896 = vmand %vm1860, %vm1878
        %vm1897 = vmand %vm1861, %vm1879
        %vm1898 = vmand %vm1862, %vm1880
        %vm1899 = vmand %vm1863, %vm1881
        %vm1900 = vmand %vm1864, %vm1882
        %vm1901 = vmand %vm1865, %vm1883
        %vm1902 = vmand %vm1866, %vm1884
        %vm1903 = vmand %vm1867, %vm1885
        %vm1904 = vmand %vm1868, %vm1886
        %vm1905 = vmand %vm1869, %vm1887
        %vm1906 = vmand %vm1870, %vm1888
        %vm1907 = vcmp.ge.s32.totalorder %v1850, 1
        %vm1908 = vcmp.ge.s32.totalorder %v1851, 1
        %vm1909 = vcmp.ge.s32.totalorder %v1852, 1
        %vm1910 = vmand %vm1889, %vm1907
        %vm1911 = vmand %vm1889, %vm1908
        %vm1912 = vmand %vm1889, %vm1909
        %vm1913 = vmand %vm1890, %vm1907
        %vm1914 = vmand %vm1890, %vm1908
        %vm1915 = vmand %vm1890, %vm1909
        %vm1916 = vmand %vm1891, %vm1907
        %vm1917 = vmand %vm1891, %vm1908
        %vm1918 = vmand %vm1891, %vm1909
        %vm1919 = vmand %vm1892, %vm1907
        %vm1920 = vmand %vm1892, %vm1908
        %vm1921 = vmand %vm1892, %vm1909
        %vm1922 = vmand %vm1893, %vm1907
        %vm1923 = vmand %vm1893, %vm1908
        %vm1924 = vmand %vm1893, %vm1909
        %vm1925 = vmand %vm1894, %vm1907
        %vm1926 = vmand %vm1894, %vm1908
        %vm1927 = vmand %vm1894, %vm1909
        %vm1928 = vmand %vm1895, %vm1907
        %vm1929 = vmand %vm1895, %vm1908
        %vm1930 = vmand %vm1895, %vm1909
        %vm1931 = vmand %vm1896, %vm1907
        %vm1932 = vmand %vm1896, %vm1908
        %vm1933 = vmand %vm1896, %vm1909
        %vm1934 = vmand %vm1897, %vm1907
        %vm1935 = vmand %vm1897, %vm1908
        %vm1936 = vmand %vm1897, %vm1909
        %vm1937 = vmand %vm1898, %vm1907
        %vm1938 = vmand %vm1898, %vm1908
        %vm1939 = vmand %vm1898, %vm1909
        %vm1940 = vmand %vm1899, %vm1907
        %vm1941 = vmand %vm1899, %vm1908
        %vm1942 = vmand %vm1899, %vm1909
        %vm1943 = vmand %vm1900, %vm1907
        %vm1944 = vmand %vm1900, %vm1908
        %vm1945 = vmand %vm1900, %vm1909
        %vm1946 = vmand %vm1901, %vm1907
        %vm1947 = vmand %vm1901, %vm1908
        %vm1948 = vmand %vm1901, %vm1909
        %vm1949 = vmand %vm1902, %vm1907
        %vm1950 = vmand %vm1902, %vm1908
        %vm1951 = vmand %vm1902, %vm1909
        %vm1952 = vmand %vm1903, %vm1907
        %vm1953 = vmand %vm1903, %vm1908
        %vm1954 = vmand %vm1903, %vm1909
        %vm1955 = vmand %vm1904, %vm1907
        %vm1956 = vmand %vm1904, %vm1908
        %vm1957 = vmand %vm1904, %vm1909
        %vm1958 = vmand %vm1905, %vm1907
        %vm1959 = vmand %vm1905, %vm1908
        %vm1960 = vmand %vm1905, %vm1909
        %vm1961 = vmand %vm1906, %vm1907
        %vm1962 = vmand %vm1906, %vm1908
        %vm1963 = vmand %vm1906, %vm1909
        %vm1964 = vcmp.le.s32.totalorder %v1850, 16
        %vm1965 = vcmp.le.s32.totalorder %v1851, 16
        %vm1966 = vcmp.le.s32.totalorder %v1852, 16
        %vm1967 = vmand %vm1910, %vm1964
        %vm1968 = vmand %vm1911, %vm1965
        %vm1969 = vmand %vm1912, %vm1966
        %vm1970 = vmand %vm1913, %vm1964
        %vm1971 = vmand %vm1914, %vm1965
        %vm1972 = vmand %vm1915, %vm1966
        %vm1973 = vmand %vm1916, %vm1964
        %vm1974 = vmand %vm1917, %vm1965
        %vm1975 = vmand %vm1918, %vm1966
        %vm1976 = vmand %vm1919, %vm1964
        %vm1977 = vmand %vm1920, %vm1965
        %vm1978 = vmand %vm1921, %vm1966
        %vm1979 = vmand %vm1922, %vm1964
        %vm1980 = vmand %vm1923, %vm1965
        %vm1981 = vmand %vm1924, %vm1966
        %vm1982 = vmand %vm1925, %vm1964
        %vm1983 = vmand %vm1926, %vm1965
        %vm1984 = vmand %vm1927, %vm1966
        %vm1985 = vmand %vm1928, %vm1964
        %vm1986 = vmand %vm1929, %vm1965
        %vm1987 = vmand %vm1930, %vm1966
        %vm1988 = vmand %vm1931, %vm1964
        %vm1989 = vmand %vm1932, %vm1965
        %vm1990 = vmand %vm1933, %vm1966
        %vm1991 = vmand %vm1934, %vm1964
        %vm1992 = vmand %vm1935, %vm1965
        %vm1993 = vmand %vm1936, %vm1966
        %vm1994 = vmand %vm1937, %vm1964
        %vm1995 = vmand %vm1938, %vm1965
        %vm1996 = vmand %vm1939, %vm1966
        %vm1997 = vmand %vm1940, %vm1964
        %vm1998 = vmand %vm1941, %vm1965
        %vm1999 = vmand %vm1942, %vm1966
        %vm2000 = vmand %vm1943, %vm1964
        %vm2001 = vmand %vm1944, %vm1965
        %vm2002 = vmand %vm1945, %vm1966
        %vm2003 = vmand %vm1946, %vm1964
        %vm2004 = vmand %vm1947, %vm1965
        %vm2005 = vmand %vm1948, %vm1966
        %vm2006 = vmand %vm1949, %vm1964
        %vm2007 = vmand %vm1950, %vm1965
        %vm2008 = vmand %vm1951, %vm1966
        %vm2009 = vmand %vm1952, %vm1964
        %vm2010 = vmand %vm1953, %vm1965
        %vm2011 = vmand %vm1954, %vm1966
        %vm2012 = vmand %vm1955, %vm1964
        %vm2013 = vmand %vm1956, %vm1965
        %vm2014 = vmand %vm1957, %vm1966
        %vm2015 = vmand %vm1958, %vm1964
        %vm2016 = vmand %vm1959, %vm1965
        %vm2017 = vmand %vm1960, %vm1966
        %vm2018 = vmand %vm1961, %vm1964
        %vm2019 = vmand %vm1962, %vm1965
        %vm2020 = vmand %vm1963, %vm1966
        %v2021 = vsel %vm1967, 1, 0
        %v2022 = vsel %vm1968, 1, 0
        %v2023 = vsel %vm1969, 1, 0
        %v2024 = vsel %vm1970, 1, 0
        %v2025 = vsel %vm1971, 1, 0
        %v2026 = vsel %vm1972, 1, 0
        %v2027 = vsel %vm1973, 1, 0
        %v2028 = vsel %vm1974, 1, 0
        %v2029 = vsel %vm1975, 1, 0
        %v2030 = vsel %vm1976, 1, 0
        %v2031 = vsel %vm1977, 1, 0
        %v2032 = vsel %vm1978, 1, 0
        %v2033 = vsel %vm1979, 1, 0
        %v2034 = vsel %vm1980, 1, 0
        %v2035 = vsel %vm1981, 1, 0
        %v2036 = vsel %vm1982, 1, 0
        %v2037 = vsel %vm1983, 1, 0
        %v2038 = vsel %vm1984, 1, 0
        %v2039 = vsel %vm1985, 1, 0
        %v2040 = vsel %vm1986, 1, 0
        %v2041 = vsel %vm1987, 1, 0
        %v2042 = vsel %vm1988, 1, 0
        %v2043 = vsel %vm1989, 1, 0
        %v2044 = vsel %vm1990, 1, 0
        %v2045 = vsel %vm1991, 1, 0
        %v2046 = vsel %vm1992, 1, 0
        %v2047 = vsel %vm1993, 1, 0
        %v2048 = vsel %vm1994, 1, 0
        %v2049 = vsel %vm1995, 1, 0
        %v2050 = vsel %vm1996, 1, 0
        %v2051 = vsel %vm1997, 1, 0
        %v2052 = vsel %vm1998, 1, 0
        %v2053 = vsel %vm1999, 1, 0
        %v2054 = vsel %vm2000, 1, 0
        %v2055 = vsel %vm2001, 1, 0
        %v2056 = vsel %vm2002, 1, 0
        %v2057 = vsel %vm2003, 1, 0
        %v2058 = vsel %vm2004, 1, 0
        %v2059 = vsel %vm2005, 1, 0
        %v2060 = vsel %vm2006, 1, 0
        %v2061 = vsel %vm2007, 1, 0
        %v2062 = vsel %vm2008, 1, 0
        %v2063 = vsel %vm2009, 1, 0
        %v2064 = vsel %vm2010, 1, 0
        %v2065 = vsel %vm2011, 1, 0
        %v2066 = vsel %vm2012, 1, 0
        %v2067 = vsel %vm2013, 1, 0
        %v2068 = vsel %vm2014, 1, 0
        %v2069 = vsel %vm2015, 1, 0
        %v2070 = vsel %vm2016, 1, 0
        %v2071 = vsel %vm2017, 1, 0
        %v2072 = vsel %vm2018, 1, 0
        %v2073 = vsel %vm2019, 1, 0
        %v2074 = vsel %vm2020, 1, 0
        %v2075 = vcvt.s32.f32 %v2021
        %v2076 = vcvt.s32.f32 %v2022
        %v2077 = vcvt.s32.f32 %v2023
        %v2078 = vcvt.s32.f32 %v2024
        %v2079 = vcvt.s32.f32 %v2025
        %v2080 = vcvt.s32.f32 %v2026
        %v2081 = vcvt.s32.f32 %v2027
        %v2082 = vcvt.s32.f32 %v2028
        %v2083 = vcvt.s32.f32 %v2029
        %v2084 = vcvt.s32.f32 %v2030
        %v2085 = vcvt.s32.f32 %v2031
        %v2086 = vcvt.s32.f32 %v2032
        %v2087 = vcvt.s32.f32 %v2033
        %v2088 = vcvt.s32.f32 %v2034
        %v2089 = vcvt.s32.f32 %v2035
        %v2090 = vcvt.s32.f32 %v2036
        %v2091 = vcvt.s32.f32 %v2037
        %v2092 = vcvt.s32.f32 %v2038
        %v2093 = vcvt.s32.f32 %v2039
        %v2094 = vcvt.s32.f32 %v2040
        %v2095 = vcvt.s32.f32 %v2041
        %v2096 = vcvt.s32.f32 %v2042
        %v2097 = vcvt.s32.f32 %v2043
        %v2098 = vcvt.s32.f32 %v2044
        %v2099 = vcvt.s32.f32 %v2045
        %v2100 = vcvt.s32.f32 %v2046
        %v2101 = vcvt.s32.f32 %v2047
        %v2102 = vcvt.s32.f32 %v2048
        %v2103 = vcvt.s32.f32 %v2049
        %v2104 = vcvt.s32.f32 %v2050
        %v2105 = vcvt.s32.f32 %v2051
        %v2106 = vcvt.s32.f32 %v2052
        %v2107 = vcvt.s32.f32 %v2053
        %v2108 = vcvt.s32.f32 %v2054
        %v2109 = vcvt.s32.f32 %v2055
        %v2110 = vcvt.s32.f32 %v2056
        %v2111 = vcvt.s32.f32 %v2057
        %v2112 = vcvt.s32.f32 %v2058
        %v2113 = vcvt.s32.f32 %v2059
        %v2114 = vcvt.s32.f32 %v2060
        %v2115 = vcvt.s32.f32 %v2061
        %v2116 = vcvt.s32.f32 %v2062
        %v2117 = vcvt.s32.f32 %v2063
        %v2118 = vcvt.s32.f32 %v2064
        %v2119 = vcvt.s32.f32 %v2065
        %v2120 = vcvt.s32.f32 %v2066
        %v2121 = vcvt.s32.f32 %v2067
        %v2122 = vcvt.s32.f32 %v2068
        %v2123 = vcvt.s32.f32 %v2069
        %v2124 = vcvt.s32.f32 %v2070
        %v2125 = vcvt.s32.f32 %v2071
        %v2126 = vcvt.s32.f32 %v2072
        %v2127 = vcvt.s32.f32 %v2073
        %v2128 = vcvt.s32.f32 %v2074
        %v2129 = vmul.f32 %v1777, %v2075
        %v2130 = vmul.f32 %v1778, %v2076
        %v2131 = vmul.f32 %v1779, %v2077
        %v2132 = vmul.f32 %v1780, %v2078
        %v2133 = vmul.f32 %v1781, %v2079
        %v2134 = vmul.f32 %v1782, %v2080
        %v2135 = vmul.f32 %v1783, %v2081
        %v2136 = vmul.f32 %v1784, %v2082
        %v2137 = vmul.f32 %v1785, %v2083
        %v2138 = vmul.f32 %v1786, %v2084
        %v2139 = vmul.f32 %v1787, %v2085
        %v2140 = vmul.f32 %v1788, %v2086
        %v2141 = vmul.f32 %v1789, %v2087
        %v2142 = vmul.f32 %v1790, %v2088
        %v2143 = vmul.f32 %v1791, %v2089
        %v2144 = vmul.f32 %v1792, %v2090
        %v2145 = vmul.f32 %v1793, %v2091
        %v2146 = vmul.f32 %v1794, %v2092
        %v2147 = vmul.f32 %v1795, %v2093
        %v2148 = vmul.f32 %v1796, %v2094
        %v2149 = vmul.f32 %v1797, %v2095
        %v2150 = vmul.f32 %v1798, %v2096
        %v2151 = vmul.f32 %v1799, %v2097
        %v2152 = vmul.f32 %v1800, %v2098
        %v2153 = vmul.f32 %v1801, %v2099
        %v2154 = vmul.f32 %v1802, %v2100
        %v2155 = vmul.f32 %v1803, %v2101
        %v2156 = vmul.f32 %v1804, %v2102
        %v2157 = vmul.f32 %v1805, %v2103
        %v2158 = vmul.f32 %v1806, %v2104
        %v2159 = vmul.f32 %v1807, %v2105
        %v2160 = vmul.f32 %v1808, %v2106
        %v2161 = vmul.f32 %v1809, %v2107
        %v2162 = vmul.f32 %v1810, %v2108
        %v2163 = vmul.f32 %v1811, %v2109
        %v2164 = vmul.f32 %v1812, %v2110
        %v2165 = vmul.f32 %v1813, %v2111
        %v2166 = vmul.f32 %v1814, %v2112
        %v2167 = vmul.f32 %v1815, %v2113
        %v2168 = vmul.f32 %v1816, %v2114
        %v2169 = vmul.f32 %v1817, %v2115
        %v2170 = vmul.f32 %v1818, %v2116
        %v2171 = vmul.f32 %v1819, %v2117
        %v2172 = vmul.f32 %v1820, %v2118
        %v2173 = vmul.f32 %v1821, %v2119
        %v2174 = vmul.f32 %v1822, %v2120
        %v2175 = vmul.f32 %v1823, %v2121
        %v2176 = vmul.f32 %v1824, %v2122
        %v2177 = vmul.f32 %v1825, %v2123
        %v2178 = vmul.f32 %v1826, %v2124
        %v2179 = vmul.f32 %v1827, %v2125
        %v2180 = vmul.f32 %v1828, %v2126
        %v2181 = vmul.f32 %v1829, %v2127
        %v2182 = vmul.f32 %v1830, %v2128
        %v2183 = vld [vmem:[%s3] sm:$0x7]
        %v2184 = vld [vmem:[%s3 + $0x4] sm:$0x7]
        %v2185 = vld [vmem:[%s3 + $0x8] sm:$0x7]
        %v2186 = vlaneseq
        %v2187 = vshrl.u32 %v2186, 7
        %v2188 = vsub.s32 0, %v2187
        %v2189 = vrot.slane %v2183, %v2188
        %v2190 = vmul.f32 %v2129, %v2189
        %v2191 = vmul.f32 %v2130, %v2189
        %v2192 = vmul.f32 %v2132, %v2189
        %v2193 = vmul.f32 %v2133, %v2189
        %v2194 = vmul.f32 %v2135, %v2189
        %v2195 = vmul.f32 %v2136, %v2189
        %v2196 = vmul.f32 %v2138, %v2189
        %v2197 = vmul.f32 %v2139, %v2189
        %v2198 = vmul.f32 %v2141, %v2189
        %v2199 = vmul.f32 %v2142, %v2189
        %v2200 = vmul.f32 %v2144, %v2189
        %v2201 = vmul.f32 %v2145, %v2189
        %v2202 = vmul.f32 %v2147, %v2189
        %v2203 = vmul.f32 %v2148, %v2189
        %v2204 = vmul.f32 %v2150, %v2189
        %v2205 = vmul.f32 %v2151, %v2189
        %v2206 = vmul.f32 %v2153, %v2189
        %v2207 = vmul.f32 %v2154, %v2189
        %v2208 = vmul.f32 %v2156, %v2189
        %v2209 = vmul.f32 %v2157, %v2189
        %v2210 = vmul.f32 %v2159, %v2189
        %v2211 = vmul.f32 %v2160, %v2189
        %v2212 = vmul.f32 %v2162, %v2189
        %v2213 = vmul.f32 %v2163, %v2189
        %v2214 = vmul.f32 %v2165, %v2189
        %v2215 = vmul.f32 %v2166, %v2189
        %v2216 = vmul.f32 %v2168, %v2189
        %v2217 = vmul.f32 %v2169, %v2189
        %v2218 = vmul.f32 %v2171, %v2189
        %v2219 = vmul.f32 %v2172, %v2189
        %v2220 = vmul.f32 %v2174, %v2189
        %v2221 = vmul.f32 %v2175, %v2189
        %v2222 = vadd.f32 %v2190, 0.0
        %v2223 = vadd.f32 %v2191, 0.0
        %v2224 = vadd.f32 %v2192, 0.0
        %v2225 = vadd.f32 %v2193, 0.0
        %v2226 = vadd.f32 %v2194, 0.0
        %v2227 = vadd.f32 %v2195, 0.0
        %v2228 = vadd.f32 %v2196, 0.0
        %v2229 = vadd.f32 %v2197, 0.0
        %v2230 = vadd.f32 %v2198, 0.0
        %v2231 = vadd.f32 %v2199, 0.0
        %v2232 = vadd.f32 %v2200, 0.0
        %v2233 = vadd.f32 %v2201, 0.0
        %v2234 = vadd.f32 %v2202, 0.0
        %v2235 = vadd.f32 %v2203, 0.0
        %v2236 = vadd.f32 %v2204, 0.0
        %v2237 = vadd.f32 %v2205, 0.0
        %v2238 = vadd.f32 %v2206, 0.0
        %v2239 = vadd.f32 %v2207, 0.0
        %v2240 = vadd.f32 %v2208, 0.0
        %v2241 = vadd.f32 %v2209, 0.0
        %v2242 = vadd.f32 %v2210, 0.0
        %v2243 = vadd.f32 %v2211, 0.0
        %v2244 = vadd.f32 %v2212, 0.0
        %v2245 = vadd.f32 %v2213, 0.0
        %v2246 = vadd.f32 %v2214, 0.0
        %v2247 = vadd.f32 %v2215, 0.0
        %v2248 = vadd.f32 %v2216, 0.0
        %v2249 = vadd.f32 %v2217, 0.0
        %v2250 = vadd.f32 %v2218, 0.0
        %v2251 = vadd.f32 %v2219, 0.0
        %v2252 = vadd.f32 %v2220, 0.0
        %v2253 = vadd.f32 %v2221, 0.0
        %v2254 = vlaneseq
        %v2255 = vshrl.u32 %v2254, 7
        %v2256 = vsub.s32 1, %v2255
        %v2257 = vrot.slane %v2183, %v2256
        %v2258 = vmul.f32 %v2129, %v2257
        %v2259 = vmul.f32 %v2130, %v2257
        %v2260 = vmul.f32 %v2131, %v2257
        %v2261 = vmul.f32 %v2132, %v2257
        %v2262 = vmul.f32 %v2133, %v2257
        %v2263 = vmul.f32 %v2134, %v2257
        %v2264 = vmul.f32 %v2135, %v2257
        %v2265 = vmul.f32 %v2136, %v2257
        %v2266 = vmul.f32 %v2137, %v2257
        %v2267 = vmul.f32 %v2138, %v2257
        %v2268 = vmul.f32 %v2139, %v2257
        %v2269 = vmul.f32 %v2140, %v2257
        %v2270 = vmul.f32 %v2141, %v2257
        %v2271 = vmul.f32 %v2142, %v2257
        %v2272 = vmul.f32 %v2143, %v2257
        %v2273 = vmul.f32 %v2144, %v2257
        %v2274 = vmul.f32 %v2145, %v2257
        %v2275 = vmul.f32 %v2146, %v2257
        %v2276 = vmul.f32 %v2147, %v2257
        %v2277 = vmul.f32 %v2148, %v2257
        %v2278 = vmul.f32 %v2149, %v2257
        %v2279 = vmul.f32 %v2150, %v2257
        %v2280 = vmul.f32 %v2151, %v2257
        %v2281 = vmul.f32 %v2152, %v2257
        %v2282 = vmul.f32 %v2153, %v2257
        %v2283 = vmul.f32 %v2154, %v2257
        %v2284 = vmul.f32 %v2155, %v2257
        %v2285 = vmul.f32 %v2156, %v2257
        %v2286 = vmul.f32 %v2157, %v2257
        %v2287 = vmul.f32 %v2158, %v2257
        %v2288 = vmul.f32 %v2159, %v2257
        %v2289 = vmul.f32 %v2160, %v2257
        %v2290 = vmul.f32 %v2161, %v2257
        %v2291 = vmul.f32 %v2162, %v2257
        %v2292 = vmul.f32 %v2163, %v2257
        %v2293 = vmul.f32 %v2164, %v2257
        %v2294 = vmul.f32 %v2165, %v2257
        %v2295 = vmul.f32 %v2166, %v2257
        %v2296 = vmul.f32 %v2167, %v2257
        %v2297 = vmul.f32 %v2168, %v2257
        %v2298 = vmul.f32 %v2169, %v2257
        %v2299 = vmul.f32 %v2170, %v2257
        %v2300 = vmul.f32 %v2171, %v2257
        %v2301 = vmul.f32 %v2172, %v2257
        %v2302 = vmul.f32 %v2173, %v2257
        %v2303 = vmul.f32 %v2174, %v2257
        %v2304 = vmul.f32 %v2175, %v2257
        %v2305 = vmul.f32 %v2176, %v2257
        %vm2354 = vcmask 1046528
        %v2355 = vrot.slane %v2258, 1
        %v2356 = vrot.slane %v2259, 1
        %v2357 = vsel %vm2354, %v2355, %v2356
        %v2358 = vrot.slane %v2260, 1
        %v2359 = vsel %vm2354, %v2356, %v2358
        %v2360 = vrot.slane %v2261, 1
        %v2361 = vrot.slane %v2262, 1
        %v2362 = vsel %vm2354, %v2360, %v2361
        %v2363 = vrot.slane %v2263, 1
        %v2364 = vsel %vm2354, %v2361, %v2363
        %v2365 = vrot.slane %v2264, 1
        %v2366 = vrot.slane %v2265, 1
        %v2367 = vsel %vm2354, %v2365, %v2366
        %v2368 = vrot.slane %v2266, 1
        %v2369 = vsel %vm2354, %v2366, %v2368
        %v2370 = vrot.slane %v2267, 1
        %v2371 = vrot.slane %v2268, 1
        %v2372 = vsel %vm2354, %v2370, %v2371
        %v2373 = vrot.slane %v2269, 1
        %v2374 = vsel %vm2354, %v2371, %v2373
        %v2375 = vrot.slane %v2270, 1
        %v2376 = vrot.slane %v2271, 1
        %v2377 = vsel %vm2354, %v2375, %v2376
        %v2378 = vrot.slane %v2272, 1
        %v2379 = vsel %vm2354, %v2376, %v2378
        %v2380 = vrot.slane %v2273, 1
        %v2381 = vrot.slane %v2274, 1
        %v2382 = vsel %vm2354, %v2380, %v2381
        %v2383 = vrot.slane %v2275, 1
        %v2384 = vsel %vm2354, %v2381, %v2383
        %v2385 = vrot.slane %v2276, 1
        %v2386 = vrot.slane %v2277, 1
        %v2387 = vsel %vm2354, %v2385, %v2386
        %v2388 = vrot.slane %v2278, 1
        %v2389 = vsel %vm2354, %v2386, %v2388
        %v2390 = vrot.slane %v2279, 1
        %v2391 = vrot.slane %v2280, 1
        %v2392 = vsel %vm2354, %v2390, %v2391
        %v2393 = vrot.slane %v2281, 1
        %v2394 = vsel %vm2354, %v2391, %v2393
        %v2395 = vrot.slane %v2282, 1
        %v2396 = vrot.slane %v2283, 1
        %v2397 = vsel %vm2354, %v2395, %v2396
        %v2398 = vrot.slane %v2284, 1
        %v2399 = vsel %vm2354, %v2396, %v2398
        %v2400 = vrot.slane %v2285, 1
        %v2401 = vrot.slane %v2286, 1
        %v2402 = vsel %vm2354, %v2400, %v2401
        %v2403 = vrot.slane %v2287, 1
        %v2404 = vsel %vm2354, %v2401, %v2403
        %v2405 = vrot.slane %v2288, 1
        %v2406 = vrot.slane %v2289, 1
        %v2407 = vsel %vm2354, %v2405, %v2406
        %v2408 = vrot.slane %v2290, 1
        %v2409 = vsel %vm2354, %v2406, %v2408
        %v2410 = vrot.slane %v2291, 1
        %v2411 = vrot.slane %v2292, 1
        %v2412 = vsel %vm2354, %v2410, %v2411
        %v2413 = vrot.slane %v2293, 1
        %v2414 = vsel %vm2354, %v2411, %v2413
        %v2415 = vrot.slane %v2294, 1
        %v2416 = vrot.slane %v2295, 1
        %v2417 = vsel %vm2354, %v2415, %v2416
        %v2418 = vrot.slane %v2296, 1
        %v2419 = vsel %vm2354, %v2416, %v2418
        %v2420 = vrot.slane %v2297, 1
        %v2421 = vrot.slane %v2298, 1
        %v2422 = vsel %vm2354, %v2420, %v2421
        %v2423 = vrot.slane %v2299, 1
        %v2424 = vsel %vm2354, %v2421, %v2423
        %v2425 = vrot.slane %v2300, 1
        %v2426 = vrot.slane %v2301, 1
        %v2427 = vsel %vm2354, %v2425, %v2426
        %v2428 = vrot.slane %v2302, 1
        %v2429 = vsel %vm2354, %v2426, %v2428
        %v2430 = vrot.slane %v2303, 1
        %v2431 = vrot.slane %v2304, 1
        %v2432 = vsel %vm2354, %v2430, %v2431
        %v2433 = vrot.slane %v2305, 1
        %v2434 = vsel %vm2354, %v2431, %v2433
        %v2467 = vadd.f32 %v2222, %v2357
        %v2468 = vadd.f32 %v2223, %v2359
        %v2469 = vadd.f32 %v2224, %v2362
        %v2470 = vadd.f32 %v2225, %v2364
        %v2471 = vadd.f32 %v2226, %v2367
        %v2472 = vadd.f32 %v2227, %v2369
        %v2473 = vadd.f32 %v2228, %v2372
        %v2474 = vadd.f32 %v2229, %v2374
        %v2475 = vadd.f32 %v2230, %v2377
        %v2476 = vadd.f32 %v2231, %v2379
        %v2477 = vadd.f32 %v2232, %v2382
        %v2478 = vadd.f32 %v2233, %v2384
        %v2479 = vadd.f32 %v2234, %v2387
        %v2480 = vadd.f32 %v2235, %v2389
        %v2481 = vadd.f32 %v2236, %v2392
        %v2482 = vadd.f32 %v2237, %v2394
        %v2483 = vadd.f32 %v2238, %v2397
        %v2484 = vadd.f32 %v2239, %v2399
        %v2485 = vadd.f32 %v2240, %v2402
        %v2486 = vadd.f32 %v2241, %v2404
        %v2487 = vadd.f32 %v2242, %v2407
        %v2488 = vadd.f32 %v2243, %v2409
        %v2489 = vadd.f32 %v2244, %v2412
        %v2490 = vadd.f32 %v2245, %v2414
        %v2491 = vadd.f32 %v2246, %v2417
        %v2492 = vadd.f32 %v2247, %v2419
        %v2493 = vadd.f32 %v2248, %v2422
        %v2494 = vadd.f32 %v2249, %v2424
        %v2495 = vadd.f32 %v2250, %v2427
        %v2496 = vadd.f32 %v2251, %v2429
        %v2497 = vadd.f32 %v2252, %v2432
        %v2498 = vadd.f32 %v2253, %v2434
        %v2499 = vlaneseq
        %v2500 = vshrl.u32 %v2499, 7
        %v2501 = vsub.s32 2, %v2500
        %v2502 = vrot.slane %v2183, %v2501
        %v2503 = vmul.f32 %v2129, %v2502
        %v2504 = vmul.f32 %v2130, %v2502
        %v2505 = vmul.f32 %v2131, %v2502
        %v2506 = vmul.f32 %v2132, %v2502
        %v2507 = vmul.f32 %v2133, %v2502
        %v2508 = vmul.f32 %v2134, %v2502
        %v2509 = vmul.f32 %v2135, %v2502
        %v2510 = vmul.f32 %v2136, %v2502
        %v2511 = vmul.f32 %v2137, %v2502
        %v2512 = vmul.f32 %v2138, %v2502
        %v2513 = vmul.f32 %v2139, %v2502
        %v2514 = vmul.f32 %v2140, %v2502
        %v2515 = vmul.f32 %v2141, %v2502
        %v2516 = vmul.f32 %v2142, %v2502
        %v2517 = vmul.f32 %v2143, %v2502
        %v2518 = vmul.f32 %v2144, %v2502
        %v2519 = vmul.f32 %v2145, %v2502
        %v2520 = vmul.f32 %v2146, %v2502
        %v2521 = vmul.f32 %v2147, %v2502
        %v2522 = vmul.f32 %v2148, %v2502
        %v2523 = vmul.f32 %v2149, %v2502
        %v2524 = vmul.f32 %v2150, %v2502
        %v2525 = vmul.f32 %v2151, %v2502
        %v2526 = vmul.f32 %v2152, %v2502
        %v2527 = vmul.f32 %v2153, %v2502
        %v2528 = vmul.f32 %v2154, %v2502
        %v2529 = vmul.f32 %v2155, %v2502
        %v2530 = vmul.f32 %v2156, %v2502
        %v2531 = vmul.f32 %v2157, %v2502
        %v2532 = vmul.f32 %v2158, %v2502
        %v2533 = vmul.f32 %v2159, %v2502
        %v2534 = vmul.f32 %v2160, %v2502
        %v2535 = vmul.f32 %v2161, %v2502
        %v2536 = vmul.f32 %v2162, %v2502
        %v2537 = vmul.f32 %v2163, %v2502
        %v2538 = vmul.f32 %v2164, %v2502
        %v2539 = vmul.f32 %v2165, %v2502
        %v2540 = vmul.f32 %v2166, %v2502
        %v2541 = vmul.f32 %v2167, %v2502
        %v2542 = vmul.f32 %v2168, %v2502
        %v2543 = vmul.f32 %v2169, %v2502
        %v2544 = vmul.f32 %v2170, %v2502
        %v2545 = vmul.f32 %v2171, %v2502
        %v2546 = vmul.f32 %v2172, %v2502
        %v2547 = vmul.f32 %v2173, %v2502
        %v2548 = vmul.f32 %v2174, %v2502
        %v2549 = vmul.f32 %v2175, %v2502
        %v2550 = vmul.f32 %v2176, %v2502
        %vm2599 = vcmask 1045504
        %v2600 = vrot.slane %v2503, 2
        %v2601 = vrot.slane %v2504, 2
        %v2602 = vsel %vm2599, %v2600, %v2601
        %v2603 = vrot.slane %v2505, 2
        %v2604 = vsel %vm2599, %v2601, %v2603
        %v2605 = vrot.slane %v2506, 2
        %v2606 = vrot.slane %v2507, 2
        %v2607 = vsel %vm2599, %v2605, %v2606
        %v2608 = vrot.slane %v2508, 2
        %v2609 = vsel %vm2599, %v2606, %v2608
        %v2610 = vrot.slane %v2509, 2
        %v2611 = vrot.slane %v2510, 2
        %v2612 = vsel %vm2599, %v2610, %v2611
        %v2613 = vrot.slane %v2511, 2
        %v2614 = vsel %vm2599, %v2611, %v2613
        %v2615 = vrot.slane %v2512, 2
        %v2616 = vrot.slane %v2513, 2
        %v2617 = vsel %vm2599, %v2615, %v2616
        %v2618 = vrot.slane %v2514, 2
        %v2619 = vsel %vm2599, %v2616, %v2618
        %v2620 = vrot.slane %v2515, 2
        %v2621 = vrot.slane %v2516, 2
        %v2622 = vsel %vm2599, %v2620, %v2621
        %v2623 = vrot.slane %v2517, 2
        %v2624 = vsel %vm2599, %v2621, %v2623
        %v2625 = vrot.slane %v2518, 2
        %v2626 = vrot.slane %v2519, 2
        %v2627 = vsel %vm2599, %v2625, %v2626
        %v2628 = vrot.slane %v2520, 2
        %v2629 = vsel %vm2599, %v2626, %v2628
        %v2630 = vrot.slane %v2521, 2
        %v2631 = vrot.slane %v2522, 2
        %v2632 = vsel %vm2599, %v2630, %v2631
        %v2633 = vrot.slane %v2523, 2
        %v2634 = vsel %vm2599, %v2631, %v2633
        %v2635 = vrot.slane %v2524, 2
        %v2636 = vrot.slane %v2525, 2
        %v2637 = vsel %vm2599, %v2635, %v2636
        %v2638 = vrot.slane %v2526, 2
        %v2639 = vsel %vm2599, %v2636, %v2638
        %v2640 = vrot.slane %v2527, 2
        %v2641 = vrot.slane %v2528, 2
        %v2642 = vsel %vm2599, %v2640, %v2641
        %v2643 = vrot.slane %v2529, 2
        %v2644 = vsel %vm2599, %v2641, %v2643
        %v2645 = vrot.slane %v2530, 2
        %v2646 = vrot.slane %v2531, 2
        %v2647 = vsel %vm2599, %v2645, %v2646
        %v2648 = vrot.slane %v2532, 2
        %v2649 = vsel %vm2599, %v2646, %v2648
        %v2650 = vrot.slane %v2533, 2
        %v2651 = vrot.slane %v2534, 2
        %v2652 = vsel %vm2599, %v2650, %v2651
        %v2653 = vrot.slane %v2535, 2
        %v2654 = vsel %vm2599, %v2651, %v2653
        %v2655 = vrot.slane %v2536, 2
        %v2656 = vrot.slane %v2537, 2
        %v2657 = vsel %vm2599, %v2655, %v2656
        %v2658 = vrot.slane %v2538, 2
        %v2659 = vsel %vm2599, %v2656, %v2658
        %v2660 = vrot.slane %v2539, 2
        %v2661 = vrot.slane %v2540, 2
        %v2662 = vsel %vm2599, %v2660, %v2661
        %v2663 = vrot.slane %v2541, 2
        %v2664 = vsel %vm2599, %v2661, %v2663
        %v2665 = vrot.slane %v2542, 2
        %v2666 = vrot.slane %v2543, 2
        %v2667 = vsel %vm2599, %v2665, %v2666
        %v2668 = vrot.slane %v2544, 2
        %v2669 = vsel %vm2599, %v2666, %v2668
        %v2670 = vrot.slane %v2545, 2
        %v2671 = vrot.slane %v2546, 2
        %v2672 = vsel %vm2599, %v2670, %v2671
        %v2673 = vrot.slane %v2547, 2
        %v2674 = vsel %vm2599, %v2671, %v2673
        %v2675 = vrot.slane %v2548, 2
        %v2676 = vrot.slane %v2549, 2
        %v2677 = vsel %vm2599, %v2675, %v2676
        %v2678 = vrot.slane %v2550, 2
        %v2679 = vsel %vm2599, %v2676, %v2678
        %v2712 = vadd.f32 %v2467, %v2602
        %v2713 = vadd.f32 %v2468, %v2604
        %v2714 = vadd.f32 %v2469, %v2607
        %v2715 = vadd.f32 %v2470, %v2609
        %v2716 = vadd.f32 %v2471, %v2612
        %v2717 = vadd.f32 %v2472, %v2614
        %v2718 = vadd.f32 %v2473, %v2617
        %v2719 = vadd.f32 %v2474, %v2619
        %v2720 = vadd.f32 %v2475, %v2622
        %v2721 = vadd.f32 %v2476, %v2624
        %v2722 = vadd.f32 %v2477, %v2627
        %v2723 = vadd.f32 %v2478, %v2629
        %v2724 = vadd.f32 %v2479, %v2632
        %v2725 = vadd.f32 %v2480, %v2634
        %v2726 = vadd.f32 %v2481, %v2637
        %v2727 = vadd.f32 %v2482, %v2639
        %v2728 = vadd.f32 %v2483, %v2642
        %v2729 = vadd.f32 %v2484, %v2644
        %v2730 = vadd.f32 %v2485, %v2647
        %v2731 = vadd.f32 %v2486, %v2649
        %v2732 = vadd.f32 %v2487, %v2652
        %v2733 = vadd.f32 %v2488, %v2654
        %v2734 = vadd.f32 %v2489, %v2657
        %v2735 = vadd.f32 %v2490, %v2659
        %v2736 = vadd.f32 %v2491, %v2662
        %v2737 = vadd.f32 %v2492, %v2664
        %v2738 = vadd.f32 %v2493, %v2667
        %v2739 = vadd.f32 %v2494, %v2669
        %v2740 = vadd.f32 %v2495, %v2672
        %v2741 = vadd.f32 %v2496, %v2674
        %v2742 = vadd.f32 %v2497, %v2677
        %v2743 = vadd.f32 %v2498, %v2679
        %v2744 = vlaneseq
        %v2745 = vshrl.u32 %v2744, 7
        %v2746 = vsub.s32 0, %v2745
        %v2747 = vrot.slane %v2184, %v2746
        %v2748 = vmul.f32 %v2132, %v2747
        %v2749 = vmul.f32 %v2133, %v2747
        %v2750 = vmul.f32 %v2135, %v2747
        %v2751 = vmul.f32 %v2136, %v2747
        %v2752 = vmul.f32 %v2138, %v2747
        %v2753 = vmul.f32 %v2139, %v2747
        %v2754 = vmul.f32 %v2141, %v2747
        %v2755 = vmul.f32 %v2142, %v2747
        %v2756 = vmul.f32 %v2144, %v2747
        %v2757 = vmul.f32 %v2145, %v2747
        %v2758 = vmul.f32 %v2147, %v2747
        %v2759 = vmul.f32 %v2148, %v2747
        %v2760 = vmul.f32 %v2150, %v2747
        %v2761 = vmul.f32 %v2151, %v2747
        %v2762 = vmul.f32 %v2153, %v2747
        %v2763 = vmul.f32 %v2154, %v2747
        %v2764 = vmul.f32 %v2156, %v2747
        %v2765 = vmul.f32 %v2157, %v2747
        %v2766 = vmul.f32 %v2159, %v2747
        %v2767 = vmul.f32 %v2160, %v2747
        %v2768 = vmul.f32 %v2162, %v2747
        %v2769 = vmul.f32 %v2163, %v2747
        %v2770 = vmul.f32 %v2165, %v2747
        %v2771 = vmul.f32 %v2166, %v2747
        %v2772 = vmul.f32 %v2168, %v2747
        %v2773 = vmul.f32 %v2169, %v2747
        %v2774 = vmul.f32 %v2171, %v2747
        %v2775 = vmul.f32 %v2172, %v2747
        %v2776 = vmul.f32 %v2174, %v2747
        %v2777 = vmul.f32 %v2175, %v2747
        %v2778 = vmul.f32 %v2177, %v2747
        %v2779 = vmul.f32 %v2178, %v2747
        %v2780 = vadd.f32 %v2712, %v2748
        %v2781 = vadd.f32 %v2713, %v2749
        %v2782 = vadd.f32 %v2714, %v2750
        %v2783 = vadd.f32 %v2715, %v2751
        %v2784 = vadd.f32 %v2716, %v2752
        %v2785 = vadd.f32 %v2717, %v2753
        %v2786 = vadd.f32 %v2718, %v2754
        %v2787 = vadd.f32 %v2719, %v2755
        %v2788 = vadd.f32 %v2720, %v2756
        %v2789 = vadd.f32 %v2721, %v2757
        %v2790 = vadd.f32 %v2722, %v2758
        %v2791 = vadd.f32 %v2723, %v2759
        %v2792 = vadd.f32 %v2724, %v2760
        %v2793 = vadd.f32 %v2725, %v2761
        %v2794 = vadd.f32 %v2726, %v2762
        %v2795 = vadd.f32 %v2727, %v2763
        %v2796 = vadd.f32 %v2728, %v2764
        %v2797 = vadd.f32 %v2729, %v2765
        %v2798 = vadd.f32 %v2730, %v2766
        %v2799 = vadd.f32 %v2731, %v2767
        %v2800 = vadd.f32 %v2732, %v2768
        %v2801 = vadd.f32 %v2733, %v2769
        %v2802 = vadd.f32 %v2734, %v2770
        %v2803 = vadd.f32 %v2735, %v2771
        %v2804 = vadd.f32 %v2736, %v2772
        %v2805 = vadd.f32 %v2737, %v2773
        %v2806 = vadd.f32 %v2738, %v2774
        %v2807 = vadd.f32 %v2739, %v2775
        %v2808 = vadd.f32 %v2740, %v2776
        %v2809 = vadd.f32 %v2741, %v2777
        %v2810 = vadd.f32 %v2742, %v2778
        %v2811 = vadd.f32 %v2743, %v2779
        %v2812 = vlaneseq
        %v2813 = vshrl.u32 %v2812, 7
        %v2814 = vsub.s32 1, %v2813
        %v2815 = vrot.slane %v2184, %v2814
        %v2816 = vmul.f32 %v2132, %v2815
        %v2817 = vmul.f32 %v2133, %v2815
        %v2818 = vmul.f32 %v2134, %v2815
        %v2819 = vmul.f32 %v2135, %v2815
        %v2820 = vmul.f32 %v2136, %v2815
        %v2821 = vmul.f32 %v2137, %v2815
        %v2822 = vmul.f32 %v2138, %v2815
        %v2823 = vmul.f32 %v2139, %v2815
        %v2824 = vmul.f32 %v2140, %v2815
        %v2825 = vmul.f32 %v2141, %v2815
        %v2826 = vmul.f32 %v2142, %v2815
        %v2827 = vmul.f32 %v2143, %v2815
        %v2828 = vmul.f32 %v2144, %v2815
        %v2829 = vmul.f32 %v2145, %v2815
        %v2830 = vmul.f32 %v2146, %v2815
        %v2831 = vmul.f32 %v2147, %v2815
        %v2832 = vmul.f32 %v2148, %v2815
        %v2833 = vmul.f32 %v2149, %v2815
        %v2834 = vmul.f32 %v2150, %v2815
        %v2835 = vmul.f32 %v2151, %v2815
        %v2836 = vmul.f32 %v2152, %v2815
        %v2837 = vmul.f32 %v2153, %v2815
        %v2838 = vmul.f32 %v2154, %v2815
        %v2839 = vmul.f32 %v2155, %v2815
        %v2840 = vmul.f32 %v2156, %v2815
        %v2841 = vmul.f32 %v2157, %v2815
        %v2842 = vmul.f32 %v2158, %v2815
        %v2843 = vmul.f32 %v2159, %v2815
        %v2844 = vmul.f32 %v2160, %v2815
        %v2845 = vmul.f32 %v2161, %v2815
        %v2846 = vmul.f32 %v2162, %v2815
        %v2847 = vmul.f32 %v2163, %v2815
        %v2848 = vmul.f32 %v2164, %v2815
        %v2849 = vmul.f32 %v2165, %v2815
        %v2850 = vmul.f32 %v2166, %v2815
        %v2851 = vmul.f32 %v2167, %v2815
        %v2852 = vmul.f32 %v2168, %v2815
        %v2853 = vmul.f32 %v2169, %v2815
        %v2854 = vmul.f32 %v2170, %v2815
        %v2855 = vmul.f32 %v2171, %v2815
        %v2856 = vmul.f32 %v2172, %v2815
        %v2857 = vmul.f32 %v2173, %v2815
        %v2858 = vmul.f32 %v2174, %v2815
        %v2859 = vmul.f32 %v2175, %v2815
        %v2860 = vmul.f32 %v2176, %v2815
        %v2861 = vmul.f32 %v2177, %v2815
        %v2862 = vmul.f32 %v2178, %v2815
        %v2863 = vmul.f32 %v2179, %v2815
        %v2912 = vrot.slane %v2816, 1
        %v2913 = vrot.slane %v2817, 1
        %v2914 = vsel %vm2354, %v2912, %v2913
        %v2915 = vrot.slane %v2818, 1
        %v2916 = vsel %vm2354, %v2913, %v2915
        %v2917 = vrot.slane %v2819, 1
        %v2918 = vrot.slane %v2820, 1
        %v2919 = vsel %vm2354, %v2917, %v2918
        %v2920 = vrot.slane %v2821, 1
        %v2921 = vsel %vm2354, %v2918, %v2920
        %v2922 = vrot.slane %v2822, 1
        %v2923 = vrot.slane %v2823, 1
        %v2924 = vsel %vm2354, %v2922, %v2923
        %v2925 = vrot.slane %v2824, 1
        %v2926 = vsel %vm2354, %v2923, %v2925
        %v2927 = vrot.slane %v2825, 1
        %v2928 = vrot.slane %v2826, 1
        %v2929 = vsel %vm2354, %v2927, %v2928
        %v2930 = vrot.slane %v2827, 1
        %v2931 = vsel %vm2354, %v2928, %v2930
        %v2932 = vrot.slane %v2828, 1
        %v2933 = vrot.slane %v2829, 1
        %v2934 = vsel %vm2354, %v2932, %v2933
        %v2935 = vrot.slane %v2830, 1
        %v2936 = vsel %vm2354, %v2933, %v2935
        %v2937 = vrot.slane %v2831, 1
        %v2938 = vrot.slane %v2832, 1
        %v2939 = vsel %vm2354, %v2937, %v2938
        %v2940 = vrot.slane %v2833, 1
        %v2941 = vsel %vm2354, %v2938, %v2940
        %v2942 = vrot.slane %v2834, 1
        %v2943 = vrot.slane %v2835, 1
        %v2944 = vsel %vm2354, %v2942, %v2943
        %v2945 = vrot.slane %v2836, 1
        %v2946 = vsel %vm2354, %v2943, %v2945
        %v2947 = vrot.slane %v2837, 1
        %v2948 = vrot.slane %v2838, 1
        %v2949 = vsel %vm2354, %v2947, %v2948
        %v2950 = vrot.slane %v2839, 1
        %v2951 = vsel %vm2354, %v2948, %v2950
        %v2952 = vrot.slane %v2840, 1
        %v2953 = vrot.slane %v2841, 1
        %v2954 = vsel %vm2354, %v2952, %v2953
        %v2955 = vrot.slane %v2842, 1
        %v2956 = vsel %vm2354, %v2953, %v2955
        %v2957 = vrot.slane %v2843, 1
        %v2958 = vrot.slane %v2844, 1
        %v2959 = vsel %vm2354, %v2957, %v2958
        %v2960 = vrot.slane %v2845, 1
        %v2961 = vsel %vm2354, %v2958, %v2960
        %v2962 = vrot.slane %v2846, 1
        %v2963 = vrot.slane %v2847, 1
        %v2964 = vsel %vm2354, %v2962, %v2963
        %v2965 = vrot.slane %v2848, 1
        %v2966 = vsel %vm2354, %v2963, %v2965
        %v2967 = vrot.slane %v2849, 1
        %v2968 = vrot.slane %v2850, 1
        %v2969 = vsel %vm2354, %v2967, %v2968
        %v2970 = vrot.slane %v2851, 1
        %v2971 = vsel %vm2354, %v2968, %v2970
        %v2972 = vrot.slane %v2852, 1
        %v2973 = vrot.slane %v2853, 1
        %v2974 = vsel %vm2354, %v2972, %v2973
        %v2975 = vrot.slane %v2854, 1
        %v2976 = vsel %vm2354, %v2973, %v2975
        %v2977 = vrot.slane %v2855, 1
        %v2978 = vrot.slane %v2856, 1
        %v2979 = vsel %vm2354, %v2977, %v2978
        %v2980 = vrot.slane %v2857, 1
        %v2981 = vsel %vm2354, %v2978, %v2980
        %v2982 = vrot.slane %v2858, 1
        %v2983 = vrot.slane %v2859, 1
        %v2984 = vsel %vm2354, %v2982, %v2983
        %v2985 = vrot.slane %v2860, 1
        %v2986 = vsel %vm2354, %v2983, %v2985
        %v2987 = vrot.slane %v2861, 1
        %v2988 = vrot.slane %v2862, 1
        %v2989 = vsel %vm2354, %v2987, %v2988
        %v2990 = vrot.slane %v2863, 1
        %v2991 = vsel %vm2354, %v2988, %v2990
        %v3024 = vadd.f32 %v2780, %v2914
        %v3025 = vadd.f32 %v2781, %v2916
        %v3026 = vadd.f32 %v2782, %v2919
        %v3027 = vadd.f32 %v2783, %v2921
        %v3028 = vadd.f32 %v2784, %v2924
        %v3029 = vadd.f32 %v2785, %v2926
        %v3030 = vadd.f32 %v2786, %v2929
        %v3031 = vadd.f32 %v2787, %v2931
        %v3032 = vadd.f32 %v2788, %v2934
        %v3033 = vadd.f32 %v2789, %v2936
        %v3034 = vadd.f32 %v2790, %v2939
        %v3035 = vadd.f32 %v2791, %v2941
        %v3036 = vadd.f32 %v2792, %v2944
        %v3037 = vadd.f32 %v2793, %v2946
        %v3038 = vadd.f32 %v2794, %v2949
        %v3039 = vadd.f32 %v2795, %v2951
        %v3040 = vadd.f32 %v2796, %v2954
        %v3041 = vadd.f32 %v2797, %v2956
        %v3042 = vadd.f32 %v2798, %v2959
        %v3043 = vadd.f32 %v2799, %v2961
        %v3044 = vadd.f32 %v2800, %v2964
        %v3045 = vadd.f32 %v2801, %v2966
        %v3046 = vadd.f32 %v2802, %v2969
        %v3047 = vadd.f32 %v2803, %v2971
        %v3048 = vadd.f32 %v2804, %v2974
        %v3049 = vadd.f32 %v2805, %v2976
        %v3050 = vadd.f32 %v2806, %v2979
        %v3051 = vadd.f32 %v2807, %v2981
        %v3052 = vadd.f32 %v2808, %v2984
        %v3053 = vadd.f32 %v2809, %v2986
        %v3054 = vadd.f32 %v2810, %v2989
        %v3055 = vadd.f32 %v2811, %v2991
        %v3056 = vlaneseq
        %v3057 = vshrl.u32 %v3056, 7
        %v3058 = vsub.s32 2, %v3057
        %v3059 = vrot.slane %v2184, %v3058
        %v3060 = vmul.f32 %v2132, %v3059
        %v3061 = vmul.f32 %v2133, %v3059
        %v3062 = vmul.f32 %v2134, %v3059
        %v3063 = vmul.f32 %v2135, %v3059
        %v3064 = vmul.f32 %v2136, %v3059
        %v3065 = vmul.f32 %v2137, %v3059
        %v3066 = vmul.f32 %v2138, %v3059
        %v3067 = vmul.f32 %v2139, %v3059
        %v3068 = vmul.f32 %v2140, %v3059
        %v3069 = vmul.f32 %v2141, %v3059
        %v3070 = vmul.f32 %v2142, %v3059
        %v3071 = vmul.f32 %v2143, %v3059
        %v3072 = vmul.f32 %v2144, %v3059
        %v3073 = vmul.f32 %v2145, %v3059
        %v3074 = vmul.f32 %v2146, %v3059
        %v3075 = vmul.f32 %v2147, %v3059
        %v3076 = vmul.f32 %v2148, %v3059
        %v3077 = vmul.f32 %v2149, %v3059
        %v3078 = vmul.f32 %v2150, %v3059
        %v3079 = vmul.f32 %v2151, %v3059
        %v3080 = vmul.f32 %v2152, %v3059
        %v3081 = vmul.f32 %v2153, %v3059
        %v3082 = vmul.f32 %v2154, %v3059
        %v3083 = vmul.f32 %v2155, %v3059
        %v3084 = vmul.f32 %v2156, %v3059
        %v3085 = vmul.f32 %v2157, %v3059
        %v3086 = vmul.f32 %v2158, %v3059
        %v3087 = vmul.f32 %v2159, %v3059
        %v3088 = vmul.f32 %v2160, %v3059
        %v3089 = vmul.f32 %v2161, %v3059
        %v3090 = vmul.f32 %v2162, %v3059
        %v3091 = vmul.f32 %v2163, %v3059
        %v3092 = vmul.f32 %v2164, %v3059
        %v3093 = vmul.f32 %v2165, %v3059
        %v3094 = vmul.f32 %v2166, %v3059
        %v3095 = vmul.f32 %v2167, %v3059
        %v3096 = vmul.f32 %v2168, %v3059
        %v3097 = vmul.f32 %v2169, %v3059
        %v3098 = vmul.f32 %v2170, %v3059
        %v3099 = vmul.f32 %v2171, %v3059
        %v3100 = vmul.f32 %v2172, %v3059
        %v3101 = vmul.f32 %v2173, %v3059
        %v3102 = vmul.f32 %v2174, %v3059
        %v3103 = vmul.f32 %v2175, %v3059
        %v3104 = vmul.f32 %v2176, %v3059
        %v3105 = vmul.f32 %v2177, %v3059
        %v3106 = vmul.f32 %v2178, %v3059
        %v3107 = vmul.f32 %v2179, %v3059
        %v3156 = vrot.slane %v3060, 2
        %v3157 = vrot.slane %v3061, 2
        %v3158 = vsel %vm2599, %v3156, %v3157
        %v3159 = vrot.slane %v3062, 2
        %v3160 = vsel %vm2599, %v3157, %v3159
        %v3161 = vrot.slane %v3063, 2
        %v3162 = vrot.slane %v3064, 2
        %v3163 = vsel %vm2599, %v3161, %v3162
        %v3164 = vrot.slane %v3065, 2
        %v3165 = vsel %vm2599, %v3162, %v3164
        %v3166 = vrot.slane %v3066, 2
        %v3167 = vrot.slane %v3067, 2
        %v3168 = vsel %vm2599, %v3166, %v3167
        %v3169 = vrot.slane %v3068, 2
        %v3170 = vsel %vm2599, %v3167, %v3169
        %v3171 = vrot.slane %v3069, 2
        %v3172 = vrot.slane %v3070, 2
        %v3173 = vsel %vm2599, %v3171, %v3172
        %v3174 = vrot.slane %v3071, 2
        %v3175 = vsel %vm2599, %v3172, %v3174
        %v3176 = vrot.slane %v3072, 2
        %v3177 = vrot.slane %v3073, 2
        %v3178 = vsel %vm2599, %v3176, %v3177
        %v3179 = vrot.slane %v3074, 2
        %v3180 = vsel %vm2599, %v3177, %v3179
        %v3181 = vrot.slane %v3075, 2
        %v3182 = vrot.slane %v3076, 2
        %v3183 = vsel %vm2599, %v3181, %v3182
        %v3184 = vrot.slane %v3077, 2
        %v3185 = vsel %vm2599, %v3182, %v3184
        %v3186 = vrot.slane %v3078, 2
        %v3187 = vrot.slane %v3079, 2
        %v3188 = vsel %vm2599, %v3186, %v3187
        %v3189 = vrot.slane %v3080, 2
        %v3190 = vsel %vm2599, %v3187, %v3189
        %v3191 = vrot.slane %v3081, 2
        %v3192 = vrot.slane %v3082, 2
        %v3193 = vsel %vm2599, %v3191, %v3192
        %v3194 = vrot.slane %v3083, 2
        %v3195 = vsel %vm2599, %v3192, %v3194
        %v3196 = vrot.slane %v3084, 2
        %v3197 = vrot.slane %v3085, 2
        %v3198 = vsel %vm2599, %v3196, %v3197
        %v3199 = vrot.slane %v3086, 2
        %v3200 = vsel %vm2599, %v3197, %v3199
        %v3201 = vrot.slane %v3087, 2
        %v3202 = vrot.slane %v3088, 2
        %v3203 = vsel %vm2599, %v3201, %v3202
        %v3204 = vrot.slane %v3089, 2
        %v3205 = vsel %vm2599, %v3202, %v3204
        %v3206 = vrot.slane %v3090, 2
        %v3207 = vrot.slane %v3091, 2
        %v3208 = vsel %vm2599, %v3206, %v3207
        %v3209 = vrot.slane %v3092, 2
        %v3210 = vsel %vm2599, %v3207, %v3209
        %v3211 = vrot.slane %v3093, 2
        %v3212 = vrot.slane %v3094, 2
        %v3213 = vsel %vm2599, %v3211, %v3212
        %v3214 = vrot.slane %v3095, 2
        %v3215 = vsel %vm2599, %v3212, %v3214
        %v3216 = vrot.slane %v3096, 2
        %v3217 = vrot.slane %v3097, 2
        %v3218 = vsel %vm2599, %v3216, %v3217
        %v3219 = vrot.slane %v3098, 2
        %v3220 = vsel %vm2599, %v3217, %v3219
        %v3221 = vrot.slane %v3099, 2
        %v3222 = vrot.slane %v3100, 2
        %v3223 = vsel %vm2599, %v3221, %v3222
        %v3224 = vrot.slane %v3101, 2
        %v3225 = vsel %vm2599, %v3222, %v3224
        %v3226 = vrot.slane %v3102, 2
        %v3227 = vrot.slane %v3103, 2
        %v3228 = vsel %vm2599, %v3226, %v3227
        %v3229 = vrot.slane %v3104, 2
        %v3230 = vsel %vm2599, %v3227, %v3229
        %v3231 = vrot.slane %v3105, 2
        %v3232 = vrot.slane %v3106, 2
        %v3233 = vsel %vm2599, %v3231, %v3232
        %v3234 = vrot.slane %v3107, 2
        %v3235 = vsel %vm2599, %v3232, %v3234
        %v3268 = vadd.f32 %v3024, %v3158
        %v3269 = vadd.f32 %v3025, %v3160
        %v3270 = vadd.f32 %v3026, %v3163
        %v3271 = vadd.f32 %v3027, %v3165
        %v3272 = vadd.f32 %v3028, %v3168
        %v3273 = vadd.f32 %v3029, %v3170
        %v3274 = vadd.f32 %v3030, %v3173
        %v3275 = vadd.f32 %v3031, %v3175
        %v3276 = vadd.f32 %v3032, %v3178
        %v3277 = vadd.f32 %v3033, %v3180
        %v3278 = vadd.f32 %v3034, %v3183
        %v3279 = vadd.f32 %v3035, %v3185
        %v3280 = vadd.f32 %v3036, %v3188
        %v3281 = vadd.f32 %v3037, %v3190
        %v3282 = vadd.f32 %v3038, %v3193
        %v3283 = vadd.f32 %v3039, %v3195
        %v3284 = vadd.f32 %v3040, %v3198
        %v3285 = vadd.f32 %v3041, %v3200
        %v3286 = vadd.f32 %v3042, %v3203
        %v3287 = vadd.f32 %v3043, %v3205
        %v3288 = vadd.f32 %v3044, %v3208
        %v3289 = vadd.f32 %v3045, %v3210
        %v3290 = vadd.f32 %v3046, %v3213
        %v3291 = vadd.f32 %v3047, %v3215
        %v3292 = vadd.f32 %v3048, %v3218
        %v3293 = vadd.f32 %v3049, %v3220
        %v3294 = vadd.f32 %v3050, %v3223
        %v3295 = vadd.f32 %v3051, %v3225
        %v3296 = vadd.f32 %v3052, %v3228
        %v3297 = vadd.f32 %v3053, %v3230
        %v3298 = vadd.f32 %v3054, %v3233
        %v3299 = vadd.f32 %v3055, %v3235
        %v3300 = vlaneseq
        %v3301 = vshrl.u32 %v3300, 7
        %v3302 = vsub.s32 0, %v3301
        %v3303 = vrot.slane %v2185, %v3302
        %v3304 = vmul.f32 %v2135, %v3303
        %v3305 = vmul.f32 %v2136, %v3303
        %v3306 = vmul.f32 %v2138, %v3303
        %v3307 = vmul.f32 %v2139, %v3303
        %v3308 = vmul.f32 %v2141, %v3303
        %v3309 = vmul.f32 %v2142, %v3303
        %v3310 = vmul.f32 %v2144, %v3303
        %v3311 = vmul.f32 %v2145, %v3303
        %v3312 = vmul.f32 %v2147, %v3303
        %v3313 = vmul.f32 %v2148, %v3303
        %v3314 = vmul.f32 %v2150, %v3303
        %v3315 = vmul.f32 %v2151, %v3303
        %v3316 = vmul.f32 %v2153, %v3303
        %v3317 = vmul.f32 %v2154, %v3303
        %v3318 = vmul.f32 %v2156, %v3303
        %v3319 = vmul.f32 %v2157, %v3303
        %v3320 = vmul.f32 %v2159, %v3303
        %v3321 = vmul.f32 %v2160, %v3303
        %v3322 = vmul.f32 %v2162, %v3303
        %v3323 = vmul.f32 %v2163, %v3303
        %v3324 = vmul.f32 %v2165, %v3303
        %v3325 = vmul.f32 %v2166, %v3303
        %v3326 = vmul.f32 %v2168, %v3303
        %v3327 = vmul.f32 %v2169, %v3303
        %v3328 = vmul.f32 %v2171, %v3303
        %v3329 = vmul.f32 %v2172, %v3303
        %v3330 = vmul.f32 %v2174, %v3303
        %v3331 = vmul.f32 %v2175, %v3303
        %v3332 = vmul.f32 %v2177, %v3303
        %v3333 = vmul.f32 %v2178, %v3303
        %v3334 = vmul.f32 %v2180, %v3303
        %v3335 = vmul.f32 %v2181, %v3303
        %v3336 = vadd.f32 %v3268, %v3304
        %v3337 = vadd.f32 %v3269, %v3305
        %v3338 = vadd.f32 %v3270, %v3306
        %v3339 = vadd.f32 %v3271, %v3307
        %v3340 = vadd.f32 %v3272, %v3308
        %v3341 = vadd.f32 %v3273, %v3309
        %v3342 = vadd.f32 %v3274, %v3310
        %v3343 = vadd.f32 %v3275, %v3311
        %v3344 = vadd.f32 %v3276, %v3312
        %v3345 = vadd.f32 %v3277, %v3313
        %v3346 = vadd.f32 %v3278, %v3314
        %v3347 = vadd.f32 %v3279, %v3315
        %v3348 = vadd.f32 %v3280, %v3316
        %v3349 = vadd.f32 %v3281, %v3317
        %v3350 = vadd.f32 %v3282, %v3318
        %v3351 = vadd.f32 %v3283, %v3319
        %v3352 = vadd.f32 %v3284, %v3320
        %v3353 = vadd.f32 %v3285, %v3321
        %v3354 = vadd.f32 %v3286, %v3322
        %v3355 = vadd.f32 %v3287, %v3323
        %v3356 = vadd.f32 %v3288, %v3324
        %v3357 = vadd.f32 %v3289, %v3325
        %v3358 = vadd.f32 %v3290, %v3326
        %v3359 = vadd.f32 %v3291, %v3327
        %v3360 = vadd.f32 %v3292, %v3328
        %v3361 = vadd.f32 %v3293, %v3329
        %v3362 = vadd.f32 %v3294, %v3330
        %v3363 = vadd.f32 %v3295, %v3331
        %v3364 = vadd.f32 %v3296, %v3332
        %v3365 = vadd.f32 %v3297, %v3333
        %v3366 = vadd.f32 %v3298, %v3334
        %v3367 = vadd.f32 %v3299, %v3335
        %v3368 = vlaneseq
        %v3369 = vshrl.u32 %v3368, 7
        %v3370 = vsub.s32 1, %v3369
        %v3371 = vrot.slane %v2185, %v3370
        %v3372 = vmul.f32 %v2135, %v3371
        %v3373 = vmul.f32 %v2136, %v3371
        %v3374 = vmul.f32 %v2137, %v3371
        %v3375 = vmul.f32 %v2138, %v3371
        %v3376 = vmul.f32 %v2139, %v3371
        %v3377 = vmul.f32 %v2140, %v3371
        %v3378 = vmul.f32 %v2141, %v3371
        %v3379 = vmul.f32 %v2142, %v3371
        %v3380 = vmul.f32 %v2143, %v3371
        %v3381 = vmul.f32 %v2144, %v3371
        %v3382 = vmul.f32 %v2145, %v3371
        %v3383 = vmul.f32 %v2146, %v3371
        %v3384 = vmul.f32 %v2147, %v3371
        %v3385 = vmul.f32 %v2148, %v3371
        %v3386 = vmul.f32 %v2149, %v3371
        %v3387 = vmul.f32 %v2150, %v3371
        %v3388 = vmul.f32 %v2151, %v3371
        %v3389 = vmul.f32 %v2152, %v3371
        %v3390 = vmul.f32 %v2153, %v3371
        %v3391 = vmul.f32 %v2154, %v3371
        %v3392 = vmul.f32 %v2155, %v3371
        %v3393 = vmul.f32 %v2156, %v3371
        %v3394 = vmul.f32 %v2157, %v3371
        %v3395 = vmul.f32 %v2158, %v3371
        %v3396 = vmul.f32 %v2159, %v3371
        %v3397 = vmul.f32 %v2160, %v3371
        %v3398 = vmul.f32 %v2161, %v3371
        %v3399 = vmul.f32 %v2162, %v3371
        %v3400 = vmul.f32 %v2163, %v3371
        %v3401 = vmul.f32 %v2164, %v3371
        %v3402 = vmul.f32 %v2165, %v3371
        %v3403 = vmul.f32 %v2166, %v3371
        %v3404 = vmul.f32 %v2167, %v3371
        %v3405 = vmul.f32 %v2168, %v3371
        %v3406 = vmul.f32 %v2169, %v3371
        %v3407 = vmul.f32 %v2170, %v3371
        %v3408 = vmul.f32 %v2171, %v3371
        %v3409 = vmul.f32 %v2172, %v3371
        %v3410 = vmul.f32 %v2173, %v3371
        %v3411 = vmul.f32 %v2174, %v3371
        %v3412 = vmul.f32 %v2175, %v3371
        %v3413 = vmul.f32 %v2176, %v3371
        %v3414 = vmul.f32 %v2177, %v3371
        %v3415 = vmul.f32 %v2178, %v3371
        %v3416 = vmul.f32 %v2179, %v3371
        %v3417 = vmul.f32 %v2180, %v3371
        %v3418 = vmul.f32 %v2181, %v3371
        %v3419 = vmul.f32 %v2182, %v3371
        %v3468 = vrot.slane %v3372, 1
        %v3469 = vrot.slane %v3373, 1
        %v3470 = vsel %vm2354, %v3468, %v3469
        %v3471 = vrot.slane %v3374, 1
        %v3472 = vsel %vm2354, %v3469, %v3471
        %v3473 = vrot.slane %v3375, 1
        %v3474 = vrot.slane %v3376, 1
        %v3475 = vsel %vm2354, %v3473, %v3474
        %v3476 = vrot.slane %v3377, 1
        %v3477 = vsel %vm2354, %v3474, %v3476
        %v3478 = vrot.slane %v3378, 1
        %v3479 = vrot.slane %v3379, 1
        %v3480 = vsel %vm2354, %v3478, %v3479
        %v3481 = vrot.slane %v3380, 1
        %v3482 = vsel %vm2354, %v3479, %v3481
        %v3483 = vrot.slane %v3381, 1
        %v3484 = vrot.slane %v3382, 1
        %v3485 = vsel %vm2354, %v3483, %v3484
        %v3486 = vrot.slane %v3383, 1
        %v3487 = vsel %vm2354, %v3484, %v3486
        %v3488 = vrot.slane %v3384, 1
        %v3489 = vrot.slane %v3385, 1
        %v3490 = vsel %vm2354, %v3488, %v3489
        %v3491 = vrot.slane %v3386, 1
        %v3492 = vsel %vm2354, %v3489, %v3491
        %v3493 = vrot.slane %v3387, 1
        %v3494 = vrot.slane %v3388, 1
        %v3495 = vsel %vm2354, %v3493, %v3494
        %v3496 = vrot.slane %v3389, 1
        %v3497 = vsel %vm2354, %v3494, %v3496
        %v3498 = vrot.slane %v3390, 1
        %v3499 = vrot.slane %v3391, 1
        %v3500 = vsel %vm2354, %v3498, %v3499
        %v3501 = vrot.slane %v3392, 1
        %v3502 = vsel %vm2354, %v3499, %v3501
        %v3503 = vrot.slane %v3393, 1
        %v3504 = vrot.slane %v3394, 1
        %v3505 = vsel %vm2354, %v3503, %v3504
        %v3506 = vrot.slane %v3395, 1
        %v3507 = vsel %vm2354, %v3504, %v3506
        %v3508 = vrot.slane %v3396, 1
        %v3509 = vrot.slane %v3397, 1
        %v3510 = vsel %vm2354, %v3508, %v3509
        %v3511 = vrot.slane %v3398, 1
        %v3512 = vsel %vm2354, %v3509, %v3511
        %v3513 = vrot.slane %v3399, 1
        %v3514 = vrot.slane %v3400, 1
        %v3515 = vsel %vm2354, %v3513, %v3514
        %v3516 = vrot.slane %v3401, 1
        %v3517 = vsel %vm2354, %v3514, %v3516
        %v3518 = vrot.slane %v3402, 1
        %v3519 = vrot.slane %v3403, 1
        %v3520 = vsel %vm2354, %v3518, %v3519
        %v3521 = vrot.slane %v3404, 1
        %v3522 = vsel %vm2354, %v3519, %v3521
        %v3523 = vrot.slane %v3405, 1
        %v3524 = vrot.slane %v3406, 1
        %v3525 = vsel %vm2354, %v3523, %v3524
        %v3526 = vrot.slane %v3407, 1
        %v3527 = vsel %vm2354, %v3524, %v3526
        %v3528 = vrot.slane %v3408, 1
        %v3529 = vrot.slane %v3409, 1
        %v3530 = vsel %vm2354, %v3528, %v3529
        %v3531 = vrot.slane %v3410, 1
        %v3532 = vsel %vm2354, %v3529, %v3531
        %v3533 = vrot.slane %v3411, 1
        %v3534 = vrot.slane %v3412, 1
        %v3535 = vsel %vm2354, %v3533, %v3534
        %v3536 = vrot.slane %v3413, 1
        %v3537 = vsel %vm2354, %v3534, %v3536
        %v3538 = vrot.slane %v3414, 1
        %v3539 = vrot.slane %v3415, 1
        %v3540 = vsel %vm2354, %v3538, %v3539
        %v3541 = vrot.slane %v3416, 1
        %v3542 = vsel %vm2354, %v3539, %v3541
        %v3543 = vrot.slane %v3417, 1
        %v3544 = vrot.slane %v3418, 1
        %v3545 = vsel %vm2354, %v3543, %v3544
        %v3546 = vrot.slane %v3419, 1
        %v3547 = vsel %vm2354, %v3544, %v3546
        %v3580 = vadd.f32 %v3336, %v3470
        %v3581 = vadd.f32 %v3337, %v3472
        %v3582 = vadd.f32 %v3338, %v3475
        %v3583 = vadd.f32 %v3339, %v3477
        %v3584 = vadd.f32 %v3340, %v3480
        %v3585 = vadd.f32 %v3341, %v3482
        %v3586 = vadd.f32 %v3342, %v3485
        %v3587 = vadd.f32 %v3343, %v3487
        %v3588 = vadd.f32 %v3344, %v3490
        %v3589 = vadd.f32 %v3345, %v3492
        %v3590 = vadd.f32 %v3346, %v3495
        %v3591 = vadd.f32 %v3347, %v3497
        %v3592 = vadd.f32 %v3348, %v3500
        %v3593 = vadd.f32 %v3349, %v3502
        %v3594 = vadd.f32 %v3350, %v3505
        %v3595 = vadd.f32 %v3351, %v3507
        %v3596 = vadd.f32 %v3352, %v3510
        %v3597 = vadd.f32 %v3353, %v3512
        %v3598 = vadd.f32 %v3354, %v3515
        %v3599 = vadd.f32 %v3355, %v3517
        %v3600 = vadd.f32 %v3356, %v3520
        %v3601 = vadd.f32 %v3357, %v3522
        %v3602 = vadd.f32 %v3358, %v3525
        %v3603 = vadd.f32 %v3359, %v3527
        %v3604 = vadd.f32 %v3360, %v3530
        %v3605 = vadd.f32 %v3361, %v3532
        %v3606 = vadd.f32 %v3362, %v3535
        %v3607 = vadd.f32 %v3363, %v3537
        %v3608 = vadd.f32 %v3364, %v3540
        %v3609 = vadd.f32 %v3365, %v3542
        %v3610 = vadd.f32 %v3366, %v3545
        %v3611 = vadd.f32 %v3367, %v3547
        %v3612 = vlaneseq
        %v3613 = vshrl.u32 %v3612, 7
        %v3614 = vsub.s32 2, %v3613
        %v3615 = vrot.slane %v2185, %v3614
        %v3616 = vmul.f32 %v2135, %v3615
        %v3617 = vmul.f32 %v2136, %v3615
        %v3618 = vmul.f32 %v2137, %v3615
        %v3619 = vmul.f32 %v2138, %v3615
        %v3620 = vmul.f32 %v2139, %v3615
        %v3621 = vmul.f32 %v2140, %v3615
        %v3622 = vmul.f32 %v2141, %v3615
        %v3623 = vmul.f32 %v2142, %v3615
        %v3624 = vmul.f32 %v2143, %v3615
        %v3625 = vmul.f32 %v2144, %v3615
        %v3626 = vmul.f32 %v2145, %v3615
        %v3627 = vmul.f32 %v2146, %v3615
        %v3628 = vmul.f32 %v2147, %v3615
        %v3629 = vmul.f32 %v2148, %v3615
        %v3630 = vmul.f32 %v2149, %v3615
        %v3631 = vmul.f32 %v2150, %v3615
        %v3632 = vmul.f32 %v2151, %v3615
        %v3633 = vmul.f32 %v2152, %v3615
        %v3634 = vmul.f32 %v2153, %v3615
        %v3635 = vmul.f32 %v2154, %v3615
        %v3636 = vmul.f32 %v2155, %v3615
        %v3637 = vmul.f32 %v2156, %v3615
        %v3638 = vmul.f32 %v2157, %v3615
        %v3639 = vmul.f32 %v2158, %v3615
        %v3640 = vmul.f32 %v2159, %v3615
        %v3641 = vmul.f32 %v2160, %v3615
        %v3642 = vmul.f32 %v2161, %v3615
        %v3643 = vmul.f32 %v2162, %v3615
        %v3644 = vmul.f32 %v2163, %v3615
        %v3645 = vmul.f32 %v2164, %v3615
        %v3646 = vmul.f32 %v2165, %v3615
        %v3647 = vmul.f32 %v2166, %v3615
        %v3648 = vmul.f32 %v2167, %v3615
        %v3649 = vmul.f32 %v2168, %v3615
        %v3650 = vmul.f32 %v2169, %v3615
        %v3651 = vmul.f32 %v2170, %v3615
        %v3652 = vmul.f32 %v2171, %v3615
        %v3653 = vmul.f32 %v2172, %v3615
        %v3654 = vmul.f32 %v2173, %v3615
        %v3655 = vmul.f32 %v2174, %v3615
        %v3656 = vmul.f32 %v2175, %v3615
        %v3657 = vmul.f32 %v2176, %v3615
        %v3658 = vmul.f32 %v2177, %v3615
        %v3659 = vmul.f32 %v2178, %v3615
        %v3660 = vmul.f32 %v2179, %v3615
        %v3661 = vmul.f32 %v2180, %v3615
        %v3662 = vmul.f32 %v2181, %v3615
        %v3663 = vmul.f32 %v2182, %v3615
        %v3712 = vrot.slane %v3616, 2
        %v3713 = vrot.slane %v3617, 2
        %v3714 = vsel %vm2599, %v3712, %v3713
        %v3715 = vrot.slane %v3618, 2
        %v3716 = vsel %vm2599, %v3713, %v3715
        %v3717 = vrot.slane %v3619, 2
        %v3718 = vrot.slane %v3620, 2
        %v3719 = vsel %vm2599, %v3717, %v3718
        %v3720 = vrot.slane %v3621, 2
        %v3721 = vsel %vm2599, %v3718, %v3720
        %v3722 = vrot.slane %v3622, 2
        %v3723 = vrot.slane %v3623, 2
        %v3724 = vsel %vm2599, %v3722, %v3723
        %v3725 = vrot.slane %v3624, 2
        %v3726 = vsel %vm2599, %v3723, %v3725
        %v3727 = vrot.slane %v3625, 2
        %v3728 = vrot.slane %v3626, 2
        %v3729 = vsel %vm2599, %v3727, %v3728
        %v3730 = vrot.slane %v3627, 2
        %v3731 = vsel %vm2599, %v3728, %v3730
        %v3732 = vrot.slane %v3628, 2
        %v3733 = vrot.slane %v3629, 2
        %v3734 = vsel %vm2599, %v3732, %v3733
        %v3735 = vrot.slane %v3630, 2
        %v3736 = vsel %vm2599, %v3733, %v3735
        %v3737 = vrot.slane %v3631, 2
        %v3738 = vrot.slane %v3632, 2
        %v3739 = vsel %vm2599, %v3737, %v3738
        %v3740 = vrot.slane %v3633, 2
        %v3741 = vsel %vm2599, %v3738, %v3740
        %v3742 = vrot.slane %v3634, 2
        %v3743 = vrot.slane %v3635, 2
        %v3744 = vsel %vm2599, %v3742, %v3743
        %v3745 = vrot.slane %v3636, 2
        %v3746 = vsel %vm2599, %v3743, %v3745
        %v3747 = vrot.slane %v3637, 2
        %v3748 = vrot.slane %v3638, 2
        %v3749 = vsel %vm2599, %v3747, %v3748
        %v3750 = vrot.slane %v3639, 2
        %v3751 = vsel %vm2599, %v3748, %v3750
        %v3752 = vrot.slane %v3640, 2
        %v3753 = vrot.slane %v3641, 2
        %v3754 = vsel %vm2599, %v3752, %v3753
        %v3755 = vrot.slane %v3642, 2
        %v3756 = vsel %vm2599, %v3753, %v3755
        %v3757 = vrot.slane %v3643, 2
        %v3758 = vrot.slane %v3644, 2
        %v3759 = vsel %vm2599, %v3757, %v3758
        %v3760 = vrot.slane %v3645, 2
        %v3761 = vsel %vm2599, %v3758, %v3760
        %v3762 = vrot.slane %v3646, 2
        %v3763 = vrot.slane %v3647, 2
        %v3764 = vsel %vm2599, %v3762, %v3763
        %v3765 = vrot.slane %v3648, 2
        %v3766 = vsel %vm2599, %v3763, %v3765
        %v3767 = vrot.slane %v3649, 2
        %v3768 = vrot.slane %v3650, 2
        %v3769 = vsel %vm2599, %v3767, %v3768
        %v3770 = vrot.slane %v3651, 2
        %v3771 = vsel %vm2599, %v3768, %v3770
        %v3772 = vrot.slane %v3652, 2
        %v3773 = vrot.slane %v3653, 2
        %v3774 = vsel %vm2599, %v3772, %v3773
        %v3775 = vrot.slane %v3654, 2
        %v3776 = vsel %vm2599, %v3773, %v3775
        %v3777 = vrot.slane %v3655, 2
        %v3778 = vrot.slane %v3656, 2
        %v3779 = vsel %vm2599, %v3777, %v3778
        %v3780 = vrot.slane %v3657, 2
        %v3781 = vsel %vm2599, %v3778, %v3780
        %v3782 = vrot.slane %v3658, 2
        %v3783 = vrot.slane %v3659, 2
        %v3784 = vsel %vm2599, %v3782, %v3783
        %v3785 = vrot.slane %v3660, 2
        %v3786 = vsel %vm2599, %v3783, %v3785
        %v3787 = vrot.slane %v3661, 2
        %v3788 = vrot.slane %v3662, 2
        %v3789 = vsel %vm2599, %v3787, %v3788
        %v3790 = vrot.slane %v3663, 2
        %v3791 = vsel %vm2599, %v3788, %v3790
        %v3824 = vadd.f32 %v3580, %v3714
        %v3825 = vadd.f32 %v3581, %v3716
        %v3826 = vadd.f32 %v3582, %v3719
        %v3827 = vadd.f32 %v3583, %v3721
        %v3828 = vadd.f32 %v3584, %v3724
        %v3829 = vadd.f32 %v3585, %v3726
        %v3830 = vadd.f32 %v3586, %v3729
        %v3831 = vadd.f32 %v3587, %v3731
        %v3832 = vadd.f32 %v3588, %v3734
        %v3833 = vadd.f32 %v3589, %v3736
        %v3834 = vadd.f32 %v3590, %v3739
        %v3835 = vadd.f32 %v3591, %v3741
        %v3836 = vadd.f32 %v3592, %v3744
        %v3837 = vadd.f32 %v3593, %v3746
        %v3838 = vadd.f32 %v3594, %v3749
        %v3839 = vadd.f32 %v3595, %v3751
        %v3840 = vadd.f32 %v3596, %v3754
        %v3841 = vadd.f32 %v3597, %v3756
        %v3842 = vadd.f32 %v3598, %v3759
        %v3843 = vadd.f32 %v3599, %v3761
        %v3844 = vadd.f32 %v3600, %v3764
        %v3845 = vadd.f32 %v3601, %v3766
        %v3846 = vadd.f32 %v3602, %v3769
        %v3847 = vadd.f32 %v3603, %v3771
        %v3848 = vadd.f32 %v3604, %v3774
        %v3849 = vadd.f32 %v3605, %v3776
        %v3850 = vadd.f32 %v3606, %v3779
        %v3851 = vadd.f32 %v3607, %v3781
        %v3852 = vadd.f32 %v3608, %v3784
        %v3853 = vadd.f32 %v3609, %v3786
        %v3854 = vadd.f32 %v3610, %v3789
        %v3855 = vadd.f32 %v3611, %v3791
        %v3856 = vld [vmem:[%s4] sm:$0x1]
        %v3858 = vlaneseq
        %v3859 = vshrl.u32 %v3858, 7
        %v3860 = vsub.s32 0, %v3859
        %v3861 = vrot.slane %v3856, %v3860
        %v3863 = vadd.f32 %v3824, %v3861
        %v3864 = vadd.f32 %v3825, %v3861
        %v3865 = vadd.f32 %v3826, %v3861
        %v3866 = vadd.f32 %v3827, %v3861
        %v3867 = vadd.f32 %v3828, %v3861
        %v3868 = vadd.f32 %v3829, %v3861
        %v3869 = vadd.f32 %v3830, %v3861
        %v3870 = vadd.f32 %v3831, %v3861
        %v3871 = vadd.f32 %v3832, %v3861
        %v3872 = vadd.f32 %v3833, %v3861
        %v3873 = vadd.f32 %v3834, %v3861
        %v3874 = vadd.f32 %v3835, %v3861
        %v3875 = vadd.f32 %v3836, %v3861
        %v3876 = vadd.f32 %v3837, %v3861
        %v3877 = vadd.f32 %v3838, %v3861
        %v3878 = vadd.f32 %v3839, %v3861
        %v3879 = vadd.f32 %v3840, %v3861
        %v3880 = vadd.f32 %v3841, %v3861
        %v3881 = vadd.f32 %v3842, %v3861
        %v3882 = vadd.f32 %v3843, %v3861
        %v3883 = vadd.f32 %v3844, %v3861
        %v3884 = vadd.f32 %v3845, %v3861
        %v3885 = vadd.f32 %v3846, %v3861
        %v3886 = vadd.f32 %v3847, %v3861
        %v3887 = vadd.f32 %v3848, %v3861
        %v3888 = vadd.f32 %v3849, %v3861
        %v3889 = vadd.f32 %v3850, %v3861
        %v3890 = vadd.f32 %v3851, %v3861
        %v3891 = vadd.f32 %v3852, %v3861
        %v3892 = vadd.f32 %v3853, %v3861
        %v3893 = vadd.f32 %v3854, %v3861
        %v3894 = vadd.f32 %v3855, %v3861
        %v3895 = vmax.f32 %v3863, 0.0
        %v3896 = vmax.f32 %v3864, 0.0
        %v3897 = vmax.f32 %v3865, 0.0
        %v3898 = vmax.f32 %v3866, 0.0
        %v3899 = vmax.f32 %v3867, 0.0
        %v3900 = vmax.f32 %v3868, 0.0
        %v3901 = vmax.f32 %v3869, 0.0
        %v3902 = vmax.f32 %v3870, 0.0
        %v3903 = vmax.f32 %v3871, 0.0
        %v3904 = vmax.f32 %v3872, 0.0
        %v3905 = vmax.f32 %v3873, 0.0
        %v3906 = vmax.f32 %v3874, 0.0
        %v3907 = vmax.f32 %v3875, 0.0
        %v3908 = vmax.f32 %v3876, 0.0
        %v3909 = vmax.f32 %v3877, 0.0
        %v3910 = vmax.f32 %v3878, 0.0
        %v3911 = vmax.f32 %v3879, 0.0
        %v3912 = vmax.f32 %v3880, 0.0
        %v3913 = vmax.f32 %v3881, 0.0
        %v3914 = vmax.f32 %v3882, 0.0
        %v3915 = vmax.f32 %v3883, 0.0
        %v3916 = vmax.f32 %v3884, 0.0
        %v3917 = vmax.f32 %v3885, 0.0
        %v3918 = vmax.f32 %v3886, 0.0
        %v3919 = vmax.f32 %v3887, 0.0
        %v3920 = vmax.f32 %v3888, 0.0
        %v3921 = vmax.f32 %v3889, 0.0
        %v3922 = vmax.f32 %v3890, 0.0
        %v3923 = vmax.f32 %v3891, 0.0
        %v3924 = vmax.f32 %v3892, 0.0
        %v3925 = vmax.f32 %v3893, 0.0
        %v3926 = vmax.f32 %v3894, 0.0
        %v3927 = vld [vmem:[%s5] sm:$0xff]
        %v3928 = vld [vmem:[%s6] sm:$0xff]
        %3930 = vset.pattern.permute.xlu0 0
        %3931 = vperm.xlu0 %3930, %v3928
        %v3932 = vpop.permute.xlu0 %3931
        %vm3934 = vcmask 195584
        %v3936 = vsel %vm3934, %v3927, 0
        %v3939 = vsel %vm3934, %v3895, 0
        %v3942 = vsel %vm3934, %v3896, 0
        %v3945 = vsel %vm3934, %v3897, 0
        %v3948 = vsel %vm3934, %v3898, 0
        %v3951 = vsel %vm3934, %v3899, 0
        %v3954 = vsel %vm3934, %v3900, 0
        %v3957 = vsel %vm3934, %v3901, 0
        %v3960 = vsel %vm3934, %v3902, 0
        %v3963 = vsel %vm3934, %v3903, 0
        %v3966 = vsel %vm3934, %v3904, 0
        %v3969 = vsel %vm3934, %v3905, 0
        %v3972 = vsel %vm3934, %v3906, 0
        %v3975 = vsel %vm3934, %v3907, 0
        %v3978 = vsel %vm3934, %v3908, 0
        %v3981 = vsel %vm3934, %v3909, 0
        %v3984 = vsel %vm3934, %v3910, 0
        %v3987 = vsel %vm3934, %v3911, 0
        %v3990 = vsel %vm3934, %v3912, 0
        %v3993 = vsel %vm3934, %v3913, 0
        %v3996 = vsel %vm3934, %v3914, 0
        %v3999 = vsel %vm3934, %v3915, 0
        %v4002 = vsel %vm3934, %v3916, 0
        %v4005 = vsel %vm3934, %v3917, 0
        %v4008 = vsel %vm3934, %v3918, 0
        %v4011 = vsel %vm3934, %v3919, 0
        %v4014 = vsel %vm3934, %v3920, 0
        %v4017 = vsel %vm3934, %v3921, 0
        %v4020 = vsel %vm3934, %v3922, 0
        %v4023 = vsel %vm3934, %v3923, 0
        %v4026 = vsel %vm3934, %v3924, 0
        %v4029 = vsel %vm3934, %v3925, 0
        %v4032 = vsel %vm3934, %v3926, 0
        %4034 = vmatprep.subr.mxu0 0.0
        %v4035 = vand.u32 %v3939, 4294901760
        %4036 = vmatpush1.xpose.msra.mxu0 %v4035
        %4037 = vmatprep.subr.mxu0 0.0
        %v4038 = vand.u32 %v3942, 4294901760
        %4039 = vmatpush1.xpose.msra.mxu0 %v4038
        %4040 = vmatprep.subr.mxu0 0.0
        %v4041 = vand.u32 %v3945, 4294901760
        %4042 = vmatpush1.xpose.msra.mxu0 %v4041
        %4043 = vmatprep.subr.mxu0 0.0
        %v4044 = vand.u32 %v3948, 4294901760
        %4045 = vmatpush1.xpose.msra.mxu0 %v4044
        %4046 = vmatprep.subr.mxu0 0.0
        %v4047 = vand.u32 %v3951, 4294901760
        %4048 = vmatpush1.xpose.msra.mxu0 %v4047
        %4049 = vmatprep.subr.mxu0 0.0
        %v4050 = vand.u32 %v3954, 4294901760
        %4051 = vmatpush1.xpose.msra.mxu0 %v4050
        %4052 = vmatprep.subr.mxu0 0.0
        %v4053 = vand.u32 %v3957, 4294901760
        %4054 = vmatpush1.xpose.msra.mxu0 %v4053
        %4055 = vmatprep.subr.mxu0 0.0
        %v4056 = vand.u32 %v3960, 4294901760
        %4057 = vmatpush1.xpose.msra.mxu0 %v4056
        %4058 = vmatprep.subr.mxu0 0.0
        %v4059 = vand.u32 %v3963, 4294901760
        %4060 = vmatpush1.xpose.msra.mxu0 %v4059
        %4061 = vmatprep.subr.mxu0 0.0
        %v4062 = vand.u32 %v3966, 4294901760
        %4063 = vmatpush1.xpose.msra.mxu0 %v4062
        %4064 = vmatprep.subr.mxu0 0.0
        %v4065 = vand.u32 %v3969, 4294901760
        %4066 = vmatpush1.xpose.msra.mxu0 %v4065
        %4067 = vmatprep.subr.mxu0 0.0
        %v4068 = vand.u32 %v3972, 4294901760
        %4069 = vmatpush1.xpose.msra.mxu0 %v4068
        %4070 = vmatprep.subr.mxu0 0.0
        %v4071 = vand.u32 %v3975, 4294901760
        %4072 = vmatpush1.xpose.msra.mxu0 %v4071
        %4073 = vmatprep.subr.mxu0 0.0
        %v4074 = vand.u32 %v3978, 4294901760
        %4075 = vmatpush1.xpose.msra.mxu0 %v4074
        %4076 = vmatprep.subr.mxu0 0.0
        %v4077 = vand.u32 %v3981, 4294901760
        %4078 = vmatpush1.xpose.msra.mxu0 %v4077
        %4079 = vmatprep.subr.mxu0 0.0
        %v4080 = vand.u32 %v3984, 4294901760
        %4081 = vmatpush1.xpose.msra.mxu0 %v4080
        %4082 = vmatprep.subr.mxu0 0.0
        %v4083 = vand.u32 %v3987, 4294901760
        %4084 = vmatpush1.xpose.msra.mxu0 %v4083
        %4085 = vmatprep.subr.mxu0 0.0
        %v4086 = vand.u32 %v3990, 4294901760
        %4087 = vmatpush1.xpose.msra.mxu0 %v4086
        %4088 = vmatprep.subr.mxu0 0.0
        %v4089 = vand.u32 %v3993, 4294901760
        %4090 = vmatpush1.xpose.msra.mxu0 %v4089
        %4091 = vmatprep.subr.mxu0 0.0
        %v4092 = vand.u32 %v3996, 4294901760
        %4093 = vmatpush1.xpose.msra.mxu0 %v4092
        %4094 = vmatprep.subr.mxu0 0.0
        %v4095 = vand.u32 %v3999, 4294901760
        %4096 = vmatpush1.xpose.msra.mxu0 %v4095
        %4097 = vmatprep.subr.mxu0 0.0
        %v4098 = vand.u32 %v4002, 4294901760
        %4099 = vmatpush1.xpose.msra.mxu0 %v4098
        %4100 = vmatprep.subr.mxu0 0.0
        %v4101 = vand.u32 %v4005, 4294901760
        %4102 = vmatpush1.xpose.msra.mxu0 %v4101
        %4103 = vmatprep.subr.mxu0 0.0
        %v4104 = vand.u32 %v4008, 4294901760
        %4105 = vmatpush1.xpose.msra.mxu0 %v4104
        %4106 = vmatprep.subr.mxu0 0.0
        %v4107 = vand.u32 %v4011, 4294901760
        %4108 = vmatpush1.xpose.msra.mxu0 %v4107
        %4109 = vmatprep.subr.mxu0 0.0
        %v4110 = vand.u32 %v4014, 4294901760
        %4111 = vmatpush1.xpose.msra.mxu0 %v4110
        %4112 = vmatprep.subr.mxu0 0.0
        %v4113 = vand.u32 %v4017, 4294901760
        %4114 = vmatpush1.xpose.msra.mxu0 %v4113
        %4115 = vmatprep.subr.mxu0 0.0
        %v4116 = vand.u32 %v4020, 4294901760
        %4117 = vmatpush1.xpose.msra.mxu0 %v4116
        %4118 = vmatprep.subr.mxu0 0.0
        %v4119 = vand.u32 %v4023, 4294901760
        %4120 = vmatpush1.xpose.msra.mxu0 %v4119
        %4121 = vmatprep.subr.mxu0 0.0
        %v4122 = vand.u32 %v4026, 4294901760
        %4123 = vmatpush1.xpose.msra.mxu0 %v4122
        %4124 = vmatprep.subr.mxu0 0.0
        %v4125 = vand.u32 %v4029, 4294901760
        %4126 = vmatpush1.xpose.msra.mxu0 %v4125
        %4127 = vmatprep.subr.mxu0 0.0
        %v4128 = vand.u32 %v4032, 4294901760
        %4129 = vmatpush1.xpose.msra.mxu0 %v4128
        %4130 = vmatprep.mubr.f32.mxu0 0.0
        %v4131 = vand.u32 %v3936, 4294901760
        %v4132 = vsub.f32 %v3936, %v4131
        %v4133 = vand.u32 %v4132, 4294901760
        %v4134 = vsub.f32 %v4132, %v4133
        %v4135 = vand.u32 %v4134, 4294901760
        %4136 = vmatmul.mubr.f32.gmra.mrb[0].mxu0 %v4135
        %v4137 = vpop.f32.mrb[0].mxu0
        %v4138 = vadd.f32 %v3932, %v4137
        %v4139 = vpop.f32.mrb[0].mxu0
        %v4140 = vadd.f32 %v3932, %v4139
        %4141 = vdwg.mxu0
        %4142 = vmatprep.subr.mxu0 0.0
        %v4143 = vand.u32 %v3939, 4294901760
        %v4144 = vsub.f32 %v3939, %v4143
        %v4145 = vand.u32 %v4144, 4294901760
        %v4146 = vsub.f32 %v4144, %v4145
        %v4147 = vand.u32 %v4146, 4294901760
        %4148 = vmatpush1.xpose.msra.mxu0 %v4147
        %4149 = vmatprep.subr.mxu0 0.0
        %v4150 = vand.u32 %v3942, 4294901760
        %v4151 = vsub.f32 %v3942, %v4150
        %v4152 = vand.u32 %v4151, 4294901760
        %v4153 = vsub.f32 %v4151, %v4152
        %v4154 = vand.u32 %v4153, 4294901760
        %4155 = vmatpush1.xpose.msra.mxu0 %v4154
        %4156 = vmatprep.subr.mxu0 0.0
        %v4157 = vand.u32 %v3945, 4294901760
        %v4158 = vsub.f32 %v3945, %v4157
        %v4159 = vand.u32 %v4158, 4294901760
        %v4160 = vsub.f32 %v4158, %v4159
        %v4161 = vand.u32 %v4160, 4294901760
        %4162 = vmatpush1.xpose.msra.mxu0 %v4161
        %4163 = vmatprep.subr.mxu0 0.0
        %v4164 = vand.u32 %v3948, 4294901760
        %v4165 = vsub.f32 %v3948, %v4164
        %v4166 = vand.u32 %v4165, 4294901760
        %v4167 = vsub.f32 %v4165, %v4166
        %v4168 = vand.u32 %v4167, 4294901760
        %4169 = vmatpush1.xpose.msra.mxu0 %v4168
        %4170 = vmatprep.subr.mxu0 0.0
        %v4171 = vand.u32 %v3951, 4294901760
        %v4172 = vsub.f32 %v3951, %v4171
        %v4173 = vand.u32 %v4172, 4294901760
        %v4174 = vsub.f32 %v4172, %v4173
        %v4175 = vand.u32 %v4174, 4294901760
        %4176 = vmatpush1.xpose.msra.mxu0 %v4175
        %4177 = vmatprep.subr.mxu0 0.0
        %v4178 = vand.u32 %v3954, 4294901760
        %v4179 = vsub.f32 %v3954, %v4178
        %v4180 = vand.u32 %v4179, 4294901760
        %v4181 = vsub.f32 %v4179, %v4180
        %v4182 = vand.u32 %v4181, 4294901760
        %4183 = vmatpush1.xpose.msra.mxu0 %v4182
        %4184 = vmatprep.subr.mxu0 0.0
        %v4185 = vand.u32 %v3957, 4294901760
        %v4186 = vsub.f32 %v3957, %v4185
        %v4187 = vand.u32 %v4186, 4294901760
        %v4188 = vsub.f32 %v4186, %v4187
        %v4189 = vand.u32 %v4188, 4294901760
        %4190 = vmatpush1.xpose.msra.mxu0 %v4189
        %4191 = vmatprep.subr.mxu0 0.0
        %v4192 = vand.u32 %v3960, 4294901760
        %v4193 = vsub.f32 %v3960, %v4192
        %v4194 = vand.u32 %v4193, 4294901760
        %v4195 = vsub.f32 %v4193, %v4194
        %v4196 = vand.u32 %v4195, 4294901760
        %4197 = vmatpush1.xpose.msra.mxu0 %v4196
        %4198 = vmatprep.subr.mxu0 0.0
        %v4199 = vand.u32 %v3963, 4294901760
        %v4200 = vsub.f32 %v3963, %v4199
        %v4201 = vand.u32 %v4200, 4294901760
        %v4202 = vsub.f32 %v4200, %v4201
        %v4203 = vand.u32 %v4202, 4294901760
        %4204 = vmatpush1.xpose.msra.mxu0 %v4203
        %4205 = vmatprep.subr.mxu0 0.0
        %v4206 = vand.u32 %v3966, 4294901760
        %v4207 = vsub.f32 %v3966, %v4206
        %v4208 = vand.u32 %v4207, 4294901760
        %v4209 = vsub.f32 %v4207, %v4208
        %v4210 = vand.u32 %v4209, 4294901760
        %4211 = vmatpush1.xpose.msra.mxu0 %v4210
        %4212 = vmatprep.subr.mxu0 0.0
        %v4213 = vand.u32 %v3969, 4294901760
        %v4214 = vsub.f32 %v3969, %v4213
        %v4215 = vand.u32 %v4214, 4294901760
        %v4216 = vsub.f32 %v4214, %v4215
        %v4217 = vand.u32 %v4216, 4294901760
        %4218 = vmatpush1.xpose.msra.mxu0 %v4217
        %4219 = vmatprep.subr.mxu0 0.0
        %v4220 = vand.u32 %v3972, 4294901760
        %v4221 = vsub.f32 %v3972, %v4220
        %v4222 = vand.u32 %v4221, 4294901760
        %v4223 = vsub.f32 %v4221, %v4222
        %v4224 = vand.u32 %v4223, 4294901760
        %4225 = vmatpush1.xpose.msra.mxu0 %v4224
        %4226 = vmatprep.subr.mxu0 0.0
        %v4227 = vand.u32 %v3975, 4294901760
        %v4228 = vsub.f32 %v3975, %v4227
        %v4229 = vand.u32 %v4228, 4294901760
        %v4230 = vsub.f32 %v4228, %v4229
        %v4231 = vand.u32 %v4230, 4294901760
        %4232 = vmatpush1.xpose.msra.mxu0 %v4231
        %4233 = vmatprep.subr.mxu0 0.0
        %v4234 = vand.u32 %v3978, 4294901760
        %v4235 = vsub.f32 %v3978, %v4234
        %v4236 = vand.u32 %v4235, 4294901760
        %v4237 = vsub.f32 %v4235, %v4236
        %v4238 = vand.u32 %v4237, 4294901760
        %4239 = vmatpush1.xpose.msra.mxu0 %v4238
        %4240 = vmatprep.subr.mxu0 0.0
        %v4241 = vand.u32 %v3981, 4294901760
        %v4242 = vsub.f32 %v3981, %v4241
        %v4243 = vand.u32 %v4242, 4294901760
        %v4244 = vsub.f32 %v4242, %v4243
        %v4245 = vand.u32 %v4244, 4294901760
        %4246 = vmatpush1.xpose.msra.mxu0 %v4245
        %4247 = vmatprep.subr.mxu0 0.0
        %v4248 = vand.u32 %v3984, 4294901760
        %v4249 = vsub.f32 %v3984, %v4248
        %v4250 = vand.u32 %v4249, 4294901760
        %v4251 = vsub.f32 %v4249, %v4250
        %v4252 = vand.u32 %v4251, 4294901760
        %4253 = vmatpush1.xpose.msra.mxu0 %v4252
        %4254 = vmatprep.subr.mxu0 0.0
        %v4255 = vand.u32 %v3987, 4294901760
        %v4256 = vsub.f32 %v3987, %v4255
        %v4257 = vand.u32 %v4256, 4294901760
        %v4258 = vsub.f32 %v4256, %v4257
        %v4259 = vand.u32 %v4258, 4294901760
        %4260 = vmatpush1.xpose.msra.mxu0 %v4259
        %4261 = vmatprep.subr.mxu0 0.0
        %v4262 = vand.u32 %v3990, 4294901760
        %v4263 = vsub.f32 %v3990, %v4262
        %v4264 = vand.u32 %v4263, 4294901760
        %v4265 = vsub.f32 %v4263, %v4264
        %v4266 = vand.u32 %v4265, 4294901760
        %4267 = vmatpush1.xpose.msra.mxu0 %v4266
        %4268 = vmatprep.subr.mxu0 0.0
        %v4269 = vand.u32 %v3993, 4294901760
        %v4270 = vsub.f32 %v3993, %v4269
        %v4271 = vand.u32 %v4270, 4294901760
        %v4272 = vsub.f32 %v4270, %v4271
        %v4273 = vand.u32 %v4272, 4294901760
        %4274 = vmatpush1.xpose.msra.mxu0 %v4273
        %4275 = vmatprep.subr.mxu0 0.0
        %v4276 = vand.u32 %v3996, 4294901760
        %v4277 = vsub.f32 %v3996, %v4276
        %v4278 = vand.u32 %v4277, 4294901760
        %v4279 = vsub.f32 %v4277, %v4278
        %v4280 = vand.u32 %v4279, 4294901760
        %4281 = vmatpush1.xpose.msra.mxu0 %v4280
        %4282 = vmatprep.subr.mxu0 0.0
        %v4283 = vand.u32 %v3999, 4294901760
        %v4284 = vsub.f32 %v3999, %v4283
        %v4285 = vand.u32 %v4284, 4294901760
        %v4286 = vsub.f32 %v4284, %v4285
        %v4287 = vand.u32 %v4286, 4294901760
        %4288 = vmatpush1.xpose.msra.mxu0 %v4287
        %4289 = vmatprep.subr.mxu0 0.0
        %v4290 = vand.u32 %v4002, 4294901760
        %v4291 = vsub.f32 %v4002, %v4290
        %v4292 = vand.u32 %v4291, 4294901760
        %v4293 = vsub.f32 %v4291, %v4292
        %v4294 = vand.u32 %v4293, 4294901760
        %4295 = vmatpush1.xpose.msra.mxu0 %v4294
        %4296 = vmatprep.subr.mxu0 0.0
        %v4297 = vand.u32 %v4005, 4294901760
        %v4298 = vsub.f32 %v4005, %v4297
        %v4299 = vand.u32 %v4298, 4294901760
        %v4300 = vsub.f32 %v4298, %v4299
        %v4301 = vand.u32 %v4300, 4294901760
        %4302 = vmatpush1.xpose.msra.mxu0 %v4301
        %4303 = vmatprep.subr.mxu0 0.0
        %v4304 = vand.u32 %v4008, 4294901760
        %v4305 = vsub.f32 %v4008, %v4304
        %v4306 = vand.u32 %v4305, 4294901760
        %v4307 = vsub.f32 %v4305, %v4306
        %v4308 = vand.u32 %v4307, 4294901760
        %4309 = vmatpush1.xpose.msra.mxu0 %v4308
        %4310 = vmatprep.subr.mxu0 0.0
        %v4311 = vand.u32 %v4011, 4294901760
        %v4312 = vsub.f32 %v4011, %v4311
        %v4313 = vand.u32 %v4312, 4294901760
        %v4314 = vsub.f32 %v4312, %v4313
        %v4315 = vand.u32 %v4314, 4294901760
        %4316 = vmatpush1.xpose.msra.mxu0 %v4315
        %4317 = vmatprep.subr.mxu0 0.0
        %v4318 = vand.u32 %v4014, 4294901760
        %v4319 = vsub.f32 %v4014, %v4318
        %v4320 = vand.u32 %v4319, 4294901760
        %v4321 = vsub.f32 %v4319, %v4320
        %v4322 = vand.u32 %v4321, 4294901760
        %4323 = vmatpush1.xpose.msra.mxu0 %v4322
        %4324 = vmatprep.subr.mxu0 0.0
        %v4325 = vand.u32 %v4017, 4294901760
        %v4326 = vsub.f32 %v4017, %v4325
        %v4327 = vand.u32 %v4326, 4294901760
        %v4328 = vsub.f32 %v4326, %v4327
        %v4329 = vand.u32 %v4328, 4294901760
        %4330 = vmatpush1.xpose.msra.mxu0 %v4329
        %4331 = vmatprep.subr.mxu0 0.0
        %v4332 = vand.u32 %v4020, 4294901760
        %v4333 = vsub.f32 %v4020, %v4332
        %v4334 = vand.u32 %v4333, 4294901760
        %v4335 = vsub.f32 %v4333, %v4334
        %v4336 = vand.u32 %v4335, 4294901760
        %4337 = vmatpush1.xpose.msra.mxu0 %v4336
        %4338 = vmatprep.subr.mxu0 0.0
        %v4339 = vand.u32 %v4023, 4294901760
        %v4340 = vsub.f32 %v4023, %v4339
        %v4341 = vand.u32 %v4340, 4294901760
        %v4342 = vsub.f32 %v4340, %v4341
        %v4343 = vand.u32 %v4342, 4294901760
        %4344 = vmatpush1.xpose.msra.mxu0 %v4343
        %4345 = vmatprep.subr.mxu0 0.0
        %v4346 = vand.u32 %v4026, 4294901760
        %v4347 = vsub.f32 %v4026, %v4346
        %v4348 = vand.u32 %v4347, 4294901760
        %v4349 = vsub.f32 %v4347, %v4348
        %v4350 = vand.u32 %v4349, 4294901760
        %4351 = vmatpush1.xpose.msra.mxu0 %v4350
        %4352 = vmatprep.subr.mxu0 0.0
        %v4353 = vand.u32 %v4029, 4294901760
        %v4354 = vsub.f32 %v4029, %v4353
        %v4355 = vand.u32 %v4354, 4294901760
        %v4356 = vsub.f32 %v4354, %v4355
        %v4357 = vand.u32 %v4356, 4294901760
        %4358 = vmatpush1.xpose.msra.mxu0 %v4357
        %4359 = vmatprep.subr.mxu0 0.0
        %v4360 = vand.u32 %v4032, 4294901760
        %v4361 = vsub.f32 %v4032, %v4360
        %v4362 = vand.u32 %v4361, 4294901760
        %v4363 = vsub.f32 %v4361, %v4362
        %v4364 = vand.u32 %v4363, 4294901760
        %4365 = vmatpush1.xpose.msra.mxu0 %v4364
        %4366 = vmatprep.mubr.f32.mxu0 0.0
        %v4367 = vand.u32 %v3936, 4294901760
        %4368 = vmatmul.mubr.f32.gmra.mrb[0].mxu0 %v4367
        %v4369 = vpop.f32.mrb[0].mxu0
        %v4370 = vadd.f32 %v4138, %v4369
        %v4371 = vpop.f32.mrb[0].mxu0
        %v4372 = vadd.f32 %v4140, %v4371
        %4373 = vdwg.mxu0
        %4374 = vmatprep.subr.mxu0 0.0
        %v4375 = vand.u32 %v3939, 4294901760
        %v4376 = vsub.f32 %v3939, %v4375
        %4377 = vmatpush1.xpose.msra.mxu0 %v4376
        %4378 = vmatprep.subr.mxu0 0.0
        %v4379 = vand.u32 %v3942, 4294901760
        %v4380 = vsub.f32 %v3942, %v4379
        %4381 = vmatpush1.xpose.msra.mxu0 %v4380
        %4382 = vmatprep.subr.mxu0 0.0
        %v4383 = vand.u32 %v3945, 4294901760
        %v4384 = vsub.f32 %v3945, %v4383
        %4385 = vmatpush1.xpose.msra.mxu0 %v4384
        %4386 = vmatprep.subr.mxu0 0.0
        %v4387 = vand.u32 %v3948, 4294901760
        %v4388 = vsub.f32 %v3948, %v4387
        %4389 = vmatpush1.xpose.msra.mxu0 %v4388
        %4390 = vmatprep.subr.mxu0 0.0
        %v4391 = vand.u32 %v3951, 4294901760
        %v4392 = vsub.f32 %v3951, %v4391
        %4393 = vmatpush1.xpose.msra.mxu0 %v4392
        %4394 = vmatprep.subr.mxu0 0.0
        %v4395 = vand.u32 %v3954, 4294901760
        %v4396 = vsub.f32 %v3954, %v4395
        %4397 = vmatpush1.xpose.msra.mxu0 %v4396
        %4398 = vmatprep.subr.mxu0 0.0
        %v4399 = vand.u32 %v3957, 4294901760
        %v4400 = vsub.f32 %v3957, %v4399
        %4401 = vmatpush1.xpose.msra.mxu0 %v4400
        %4402 = vmatprep.subr.mxu0 0.0
        %v4403 = vand.u32 %v3960, 4294901760
        %v4404 = vsub.f32 %v3960, %v4403
        %4405 = vmatpush1.xpose.msra.mxu0 %v4404
        %4406 = vmatprep.subr.mxu0 0.0
        %v4407 = vand.u32 %v3963, 4294901760
        %v4408 = vsub.f32 %v3963, %v4407
        %4409 = vmatpush1.xpose.msra.mxu0 %v4408
        %4410 = vmatprep.subr.mxu0 0.0
        %v4411 = vand.u32 %v3966, 4294901760
        %v4412 = vsub.f32 %v3966, %v4411
        %4413 = vmatpush1.xpose.msra.mxu0 %v4412
        %4414 = vmatprep.subr.mxu0 0.0
        %v4415 = vand.u32 %v3969, 4294901760
        %v4416 = vsub.f32 %v3969, %v4415
        %4417 = vmatpush1.xpose.msra.mxu0 %v4416
        %4418 = vmatprep.subr.mxu0 0.0
        %v4419 = vand.u32 %v3972, 4294901760
        %v4420 = vsub.f32 %v3972, %v4419
        %4421 = vmatpush1.xpose.msra.mxu0 %v4420
        %4422 = vmatprep.subr.mxu0 0.0
        %v4423 = vand.u32 %v3975, 4294901760
        %v4424 = vsub.f32 %v3975, %v4423
        %4425 = vmatpush1.xpose.msra.mxu0 %v4424
        %4426 = vmatprep.subr.mxu0 0.0
        %v4427 = vand.u32 %v3978, 4294901760
        %v4428 = vsub.f32 %v3978, %v4427
        %4429 = vmatpush1.xpose.msra.mxu0 %v4428
        %4430 = vmatprep.subr.mxu0 0.0
        %v4431 = vand.u32 %v3981, 4294901760
        %v4432 = vsub.f32 %v3981, %v4431
        %4433 = vmatpush1.xpose.msra.mxu0 %v4432
        %4434 = vmatprep.subr.mxu0 0.0
        %v4435 = vand.u32 %v3984, 4294901760
        %v4436 = vsub.f32 %v3984, %v4435
        %4437 = vmatpush1.xpose.msra.mxu0 %v4436
        %4438 = vmatprep.subr.mxu0 0.0
        %v4439 = vand.u32 %v3987, 4294901760
        %v4440 = vsub.f32 %v3987, %v4439
        %4441 = vmatpush1.xpose.msra.mxu0 %v4440
        %4442 = vmatprep.subr.mxu0 0.0
        %v4443 = vand.u32 %v3990, 4294901760
        %v4444 = vsub.f32 %v3990, %v4443
        %4445 = vmatpush1.xpose.msra.mxu0 %v4444
        %4446 = vmatprep.subr.mxu0 0.0
        %v4447 = vand.u32 %v3993, 4294901760
        %v4448 = vsub.f32 %v3993, %v4447
        %4449 = vmatpush1.xpose.msra.mxu0 %v4448
        %4450 = vmatprep.subr.mxu0 0.0
        %v4451 = vand.u32 %v3996, 4294901760
        %v4452 = vsub.f32 %v3996, %v4451
        %4453 = vmatpush1.xpose.msra.mxu0 %v4452
        %4454 = vmatprep.subr.mxu0 0.0
        %v4455 = vand.u32 %v3999, 4294901760
        %v4456 = vsub.f32 %v3999, %v4455
        %4457 = vmatpush1.xpose.msra.mxu0 %v4456
        %4458 = vmatprep.subr.mxu0 0.0
        %v4459 = vand.u32 %v4002, 4294901760
        %v4460 = vsub.f32 %v4002, %v4459
        %4461 = vmatpush1.xpose.msra.mxu0 %v4460
        %4462 = vmatprep.subr.mxu0 0.0
        %v4463 = vand.u32 %v4005, 4294901760
        %v4464 = vsub.f32 %v4005, %v4463
        %4465 = vmatpush1.xpose.msra.mxu0 %v4464
        %4466 = vmatprep.subr.mxu0 0.0
        %v4467 = vand.u32 %v4008, 4294901760
        %v4468 = vsub.f32 %v4008, %v4467
        %4469 = vmatpush1.xpose.msra.mxu0 %v4468
        %4470 = vmatprep.subr.mxu0 0.0
        %v4471 = vand.u32 %v4011, 4294901760
        %v4472 = vsub.f32 %v4011, %v4471
        %4473 = vmatpush1.xpose.msra.mxu0 %v4472
        %4474 = vmatprep.subr.mxu0 0.0
        %v4475 = vand.u32 %v4014, 4294901760
        %v4476 = vsub.f32 %v4014, %v4475
        %4477 = vmatpush1.xpose.msra.mxu0 %v4476
        %4478 = vmatprep.subr.mxu0 0.0
        %v4479 = vand.u32 %v4017, 4294901760
        %v4480 = vsub.f32 %v4017, %v4479
        %4481 = vmatpush1.xpose.msra.mxu0 %v4480
        %4482 = vmatprep.subr.mxu0 0.0
        %v4483 = vand.u32 %v4020, 4294901760
        %v4484 = vsub.f32 %v4020, %v4483
        %4485 = vmatpush1.xpose.msra.mxu0 %v4484
        %4486 = vmatprep.subr.mxu0 0.0
        %v4487 = vand.u32 %v4023, 4294901760
        %v4488 = vsub.f32 %v4023, %v4487
        %4489 = vmatpush1.xpose.msra.mxu0 %v4488
        %4490 = vmatprep.subr.mxu0 0.0
        %v4491 = vand.u32 %v4026, 4294901760
        %v4492 = vsub.f32 %v4026, %v4491
        %4493 = vmatpush1.xpose.msra.mxu0 %v4492
        %4494 = vmatprep.subr.mxu0 0.0
        %v4495 = vand.u32 %v4029, 4294901760
        %v4496 = vsub.f32 %v4029, %v4495
        %4497 = vmatpush1.xpose.msra.mxu0 %v4496
        %4498 = vmatprep.subr.mxu0 0.0
        %v4499 = vand.u32 %v4032, 4294901760
        %v4500 = vsub.f32 %v4032, %v4499
        %4501 = vmatpush1.xpose.msra.mxu0 %v4500
        %4502 = vmatprep.mubr.f32.mxu0 0.0
        %v4503 = vand.u32 %v3936, 4294901760
        %v4504 = vsub.f32 %v3936, %v4503
        %4505 = vmatmul.mubr.f32.gmra.mrb[0].mxu0 %v4504
        %v4506 = vpop.f32.mrb[0].mxu0
        %v4507 = vadd.f32 %v4370, %v4506
        %v4508 = vpop.f32.mrb[0].mxu0
        %v4509 = vadd.f32 %v4372, %v4508
        %4510 = vdwg.mxu0
        %4511 = vmatprep.subr.mxu0 0.0
        %v4512 = vand.u32 %v3939, 4294901760
        %4513 = vmatpush1.xpose.msra.mxu0 %v4512
        %4514 = vmatprep.subr.mxu0 0.0
        %v4515 = vand.u32 %v3942, 4294901760
        %4516 = vmatpush1.xpose.msra.mxu0 %v4515
        %4517 = vmatprep.subr.mxu0 0.0
        %v4518 = vand.u32 %v3945, 4294901760
        %4519 = vmatpush1.xpose.msra.mxu0 %v4518
        %4520 = vmatprep.subr.mxu0 0.0
        %v4521 = vand.u32 %v3948, 4294901760
        %4522 = vmatpush1.xpose.msra.mxu0 %v4521
        %4523 = vmatprep.subr.mxu0 0.0
        %v4524 = vand.u32 %v3951, 4294901760
        %4525 = vmatpush1.xpose.msra.mxu0 %v4524
        %4526 = vmatprep.subr.mxu0 0.0
        %v4527 = vand.u32 %v3954, 4294901760
        %4528 = vmatpush1.xpose.msra.mxu0 %v4527
        %4529 = vmatprep.subr.mxu0 0.0
        %v4530 = vand.u32 %v3957, 4294901760
        %4531 = vmatpush1.xpose.msra.mxu0 %v4530
        %4532 = vmatprep.subr.mxu0 0.0
        %v4533 = vand.u32 %v3960, 4294901760
        %4534 = vmatpush1.xpose.msra.mxu0 %v4533
        %4535 = vmatprep.subr.mxu0 0.0
        %v4536 = vand.u32 %v3963, 4294901760
        %4537 = vmatpush1.xpose.msra.mxu0 %v4536
        %4538 = vmatprep.subr.mxu0 0.0
        %v4539 = vand.u32 %v3966, 4294901760
        %4540 = vmatpush1.xpose.msra.mxu0 %v4539
        %4541 = vmatprep.subr.mxu0 0.0
        %v4542 = vand.u32 %v3969, 4294901760
        %4543 = vmatpush1.xpose.msra.mxu0 %v4542
        %4544 = vmatprep.subr.mxu0 0.0
        %v4545 = vand.u32 %v3972, 4294901760
        %4546 = vmatpush1.xpose.msra.mxu0 %v4545
        %4547 = vmatprep.subr.mxu0 0.0
        %v4548 = vand.u32 %v3975, 4294901760
        %4549 = vmatpush1.xpose.msra.mxu0 %v4548
        %4550 = vmatprep.subr.mxu0 0.0
        %v4551 = vand.u32 %v3978, 4294901760
        %4552 = vmatpush1.xpose.msra.mxu0 %v4551
        %4553 = vmatprep.subr.mxu0 0.0
        %v4554 = vand.u32 %v3981, 4294901760
        %4555 = vmatpush1.xpose.msra.mxu0 %v4554
        %4556 = vmatprep.subr.mxu0 0.0
        %v4557 = vand.u32 %v3984, 4294901760
        %4558 = vmatpush1.xpose.msra.mxu0 %v4557
        %4559 = vmatprep.subr.mxu0 0.0
        %v4560 = vand.u32 %v3987, 4294901760
        %4561 = vmatpush1.xpose.msra.mxu0 %v4560
        %4562 = vmatprep.subr.mxu0 0.0
        %v4563 = vand.u32 %v3990, 4294901760
        %4564 = vmatpush1.xpose.msra.mxu0 %v4563
        %4565 = vmatprep.subr.mxu0 0.0
        %v4566 = vand.u32 %v3993, 4294901760
        %4567 = vmatpush1.xpose.msra.mxu0 %v4566
        %4568 = vmatprep.subr.mxu0 0.0
        %v4569 = vand.u32 %v3996, 4294901760
        %4570 = vmatpush1.xpose.msra.mxu0 %v4569
        %4571 = vmatprep.subr.mxu0 0.0
        %v4572 = vand.u32 %v3999, 4294901760
        %4573 = vmatpush1.xpose.msra.mxu0 %v4572
        %4574 = vmatprep.subr.mxu0 0.0
        %v4575 = vand.u32 %v4002, 4294901760
        %4576 = vmatpush1.xpose.msra.mxu0 %v4575
        %4577 = vmatprep.subr.mxu0 0.0
        %v4578 = vand.u32 %v4005, 4294901760
        %4579 = vmatpush1.xpose.msra.mxu0 %v4578
        %4580 = vmatprep.subr.mxu0 0.0
        %v4581 = vand.u32 %v4008, 4294901760
        %4582 = vmatpush1.xpose.msra.mxu0 %v4581
        %4583 = vmatprep.subr.mxu0 0.0
        %v4584 = vand.u32 %v4011, 4294901760
        %4585 = vmatpush1.xpose.msra.mxu0 %v4584
        %4586 = vmatprep.subr.mxu0 0.0
        %v4587 = vand.u32 %v4014, 4294901760
        %4588 = vmatpush1.xpose.msra.mxu0 %v4587
        %4589 = vmatprep.subr.mxu0 0.0
        %v4590 = vand.u32 %v4017, 4294901760
        %4591 = vmatpush1.xpose.msra.mxu0 %v4590
        %4592 = vmatprep.subr.mxu0 0.0
        %v4593 = vand.u32 %v4020, 4294901760
        %4594 = vmatpush1.xpose.msra.mxu0 %v4593
        %4595 = vmatprep.subr.mxu0 0.0
        %v4596 = vand.u32 %v4023, 4294901760
        %4597 = vmatpush1.xpose.msra.mxu0 %v4596
        %4598 = vmatprep.subr.mxu0 0.0
        %v4599 = vand.u32 %v4026, 4294901760
        %4600 = vmatpush1.xpose.msra.mxu0 %v4599
        %4601 = vmatprep.subr.mxu0 0.0
        %v4602 = vand.u32 %v4029, 4294901760
        %4603 = vmatpush1.xpose.msra.mxu0 %v4602
        %4604 = vmatprep.subr.mxu0 0.0
        %v4605 = vand.u32 %v4032, 4294901760
        %4606 = vmatpush1.xpose.msra.mxu0 %v4605
        %4607 = vmatprep.mubr.f32.mxu0 0.0
        %v4608 = vand.u32 %v3936, 4294901760
        %v4609 = vsub.f32 %v3936, %v4608
        %v4610 = vand.u32 %v4609, 4294901760
        %4611 = vmatmul.mubr.f32.gmra.mrb[0].mxu0 %v4610
        %v4612 = vpop.f32.mrb[0].mxu0
        %v4613 = vadd.f32 %v4507, %v4612
        %v4614 = vpop.f32.mrb[0].mxu0
        %v4615 = vadd.f32 %v4509, %v4614
        %4616 = vdwg.mxu0
        %4617 = vmatprep.subr.mxu0 0.0
        %v4618 = vand.u32 %v3939, 4294901760
        %v4619 = vsub.f32 %v3939, %v4618
        %v4620 = vand.u32 %v4619, 4294901760
        %4621 = vmatpush1.xpose.msra.mxu0 %v4620
        %4622 = vmatprep.subr.mxu0 0.0
        %v4623 = vand.u32 %v3942, 4294901760
        %v4624 = vsub.f32 %v3942, %v4623
        %v4625 = vand.u32 %v4624, 4294901760
        %4626 = vmatpush1.xpose.msra.mxu0 %v4625
        %4627 = vmatprep.subr.mxu0 0.0
        %v4628 = vand.u32 %v3945, 4294901760
        %v4629 = vsub.f32 %v3945, %v4628
        %v4630 = vand.u32 %v4629, 4294901760
        %4631 = vmatpush1.xpose.msra.mxu0 %v4630
        %4632 = vmatprep.subr.mxu0 0.0
        %v4633 = vand.u32 %v3948, 4294901760
        %v4634 = vsub.f32 %v3948, %v4633
        %v4635 = vand.u32 %v4634, 4294901760
        %4636 = vmatpush1.xpose.msra.mxu0 %v4635
        %4637 = vmatprep.subr.mxu0 0.0
        %v4638 = vand.u32 %v3951, 4294901760
        %v4639 = vsub.f32 %v3951, %v4638
        %v4640 = vand.u32 %v4639, 4294901760
        %4641 = vmatpush1.xpose.msra.mxu0 %v4640
        %4642 = vmatprep.subr.mxu0 0.0
        %v4643 = vand.u32 %v3954, 4294901760
        %v4644 = vsub.f32 %v3954, %v4643
        %v4645 = vand.u32 %v4644, 4294901760
        %4646 = vmatpush1.xpose.msra.mxu0 %v4645
        %4647 = vmatprep.subr.mxu0 0.0
        %v4648 = vand.u32 %v3957, 4294901760
        %v4649 = vsub.f32 %v3957, %v4648
        %v4650 = vand.u32 %v4649, 4294901760
        %4651 = vmatpush1.xpose.msra.mxu0 %v4650
        %4652 = vmatprep.subr.mxu0 0.0
        %v4653 = vand.u32 %v3960, 4294901760
        %v4654 = vsub.f32 %v3960, %v4653
        %v4655 = vand.u32 %v4654, 4294901760
        %4656 = vmatpush1.xpose.msra.mxu0 %v4655
        %4657 = vmatprep.subr.mxu0 0.0
        %v4658 = vand.u32 %v3963, 4294901760
        %v4659 = vsub.f32 %v3963, %v4658
        %v4660 = vand.u32 %v4659, 4294901760
        %4661 = vmatpush1.xpose.msra.mxu0 %v4660
        %4662 = vmatprep.subr.mxu0 0.0
        %v4663 = vand.u32 %v3966, 4294901760
        %v4664 = vsub.f32 %v3966, %v4663
        %v4665 = vand.u32 %v4664, 4294901760
        %4666 = vmatpush1.xpose.msra.mxu0 %v4665
        %4667 = vmatprep.subr.mxu0 0.0
        %v4668 = vand.u32 %v3969, 4294901760
        %v4669 = vsub.f32 %v3969, %v4668
        %v4670 = vand.u32 %v4669, 4294901760
        %4671 = vmatpush1.xpose.msra.mxu0 %v4670
        %4672 = vmatprep.subr.mxu0 0.0
        %v4673 = vand.u32 %v3972, 4294901760
        %v4674 = vsub.f32 %v3972, %v4673
        %v4675 = vand.u32 %v4674, 4294901760
        %4676 = vmatpush1.xpose.msra.mxu0 %v4675
        %4677 = vmatprep.subr.mxu0 0.0
        %v4678 = vand.u32 %v3975, 4294901760
        %v4679 = vsub.f32 %v3975, %v4678
        %v4680 = vand.u32 %v4679, 4294901760
        %4681 = vmatpush1.xpose.msra.mxu0 %v4680
        %4682 = vmatprep.subr.mxu0 0.0
        %v4683 = vand.u32 %v3978, 4294901760
        %v4684 = vsub.f32 %v3978, %v4683
        %v4685 = vand.u32 %v4684, 4294901760
        %4686 = vmatpush1.xpose.msra.mxu0 %v4685
        %4687 = vmatprep.subr.mxu0 0.0
        %v4688 = vand.u32 %v3981, 4294901760
        %v4689 = vsub.f32 %v3981, %v4688
        %v4690 = vand.u32 %v4689, 4294901760
        %4691 = vmatpush1.xpose.msra.mxu0 %v4690
        %4692 = vmatprep.subr.mxu0 0.0
        %v4693 = vand.u32 %v3984, 4294901760
        %v4694 = vsub.f32 %v3984, %v4693
        %v4695 = vand.u32 %v4694, 4294901760
        %4696 = vmatpush1.xpose.msra.mxu0 %v4695
        %4697 = vmatprep.subr.mxu0 0.0
        %v4698 = vand.u32 %v3987, 4294901760
        %v4699 = vsub.f32 %v3987, %v4698
        %v4700 = vand.u32 %v4699, 4294901760
        %4701 = vmatpush1.xpose.msra.mxu0 %v4700
        %4702 = vmatprep.subr.mxu0 0.0
        %v4703 = vand.u32 %v3990, 4294901760
        %v4704 = vsub.f32 %v3990, %v4703
        %v4705 = vand.u32 %v4704, 4294901760
        %4706 = vmatpush1.xpose.msra.mxu0 %v4705
        %4707 = vmatprep.subr.mxu0 0.0
        %v4708 = vand.u32 %v3993, 4294901760
        %v4709 = vsub.f32 %v3993, %v4708
        %v4710 = vand.u32 %v4709, 4294901760
        %4711 = vmatpush1.xpose.msra.mxu0 %v4710
        %4712 = vmatprep.subr.mxu0 0.0
        %v4713 = vand.u32 %v3996, 4294901760
        %v4714 = vsub.f32 %v3996, %v4713
        %v4715 = vand.u32 %v4714, 4294901760
        %4716 = vmatpush1.xpose.msra.mxu0 %v4715
        %4717 = vmatprep.subr.mxu0 0.0
        %v4718 = vand.u32 %v3999, 4294901760
        %v4719 = vsub.f32 %v3999, %v4718
        %v4720 = vand.u32 %v4719, 4294901760
        %4721 = vmatpush1.xpose.msra.mxu0 %v4720
        %4722 = vmatprep.subr.mxu0 0.0
        %v4723 = vand.u32 %v4002, 4294901760
        %v4724 = vsub.f32 %v4002, %v4723
        %v4725 = vand.u32 %v4724, 4294901760
        %4726 = vmatpush1.xpose.msra.mxu0 %v4725
        %4727 = vmatprep.subr.mxu0 0.0
        %v4728 = vand.u32 %v4005, 4294901760
        %v4729 = vsub.f32 %v4005, %v4728
        %v4730 = vand.u32 %v4729, 4294901760
        %4731 = vmatpush1.xpose.msra.mxu0 %v4730
        %4732 = vmatprep.subr.mxu0 0.0
        %v4733 = vand.u32 %v4008, 4294901760
        %v4734 = vsub.f32 %v4008, %v4733
        %v4735 = vand.u32 %v4734, 4294901760
        %4736 = vmatpush1.xpose.msra.mxu0 %v4735
        %4737 = vmatprep.subr.mxu0 0.0
        %v4738 = vand.u32 %v4011, 4294901760
        %v4739 = vsub.f32 %v4011, %v4738
        %v4740 = vand.u32 %v4739, 4294901760
        %4741 = vmatpush1.xpose.msra.mxu0 %v4740
        %4742 = vmatprep.subr.mxu0 0.0
        %v4743 = vand.u32 %v4014, 4294901760
        %v4744 = vsub.f32 %v4014, %v4743
        %v4745 = vand.u32 %v4744, 4294901760
        %4746 = vmatpush1.xpose.msra.mxu0 %v4745
        %4747 = vmatprep.subr.mxu0 0.0
        %v4748 = vand.u32 %v4017, 4294901760
        %v4749 = vsub.f32 %v4017, %v4748
        %v4750 = vand.u32 %v4749, 4294901760
        %4751 = vmatpush1.xpose.msra.mxu0 %v4750
        %4752 = vmatprep.subr.mxu0 0.0
        %v4753 = vand.u32 %v4020, 4294901760
        %v4754 = vsub.f32 %v4020, %v4753
        %v4755 = vand.u32 %v4754, 4294901760
        %4756 = vmatpush1.xpose.msra.mxu0 %v4755
        %4757 = vmatprep.subr.mxu0 0.0
        %v4758 = vand.u32 %v4023, 4294901760
        %v4759 = vsub.f32 %v4023, %v4758
        %v4760 = vand.u32 %v4759, 4294901760
        %4761 = vmatpush1.xpose.msra.mxu0 %v4760
        %4762 = vmatprep.subr.mxu0 0.0
        %v4763 = vand.u32 %v4026, 4294901760
        %v4764 = vsub.f32 %v4026, %v4763
        %v4765 = vand.u32 %v4764, 4294901760
        %4766 = vmatpush1.xpose.msra.mxu0 %v4765
        %4767 = vmatprep.subr.mxu0 0.0
        %v4768 = vand.u32 %v4029, 4294901760
        %v4769 = vsub.f32 %v4029, %v4768
        %v4770 = vand.u32 %v4769, 4294901760
        %4771 = vmatpush1.xpose.msra.mxu0 %v4770
        %4772 = vmatprep.subr.mxu0 0.0
        %v4773 = vand.u32 %v4032, 4294901760
        %v4774 = vsub.f32 %v4032, %v4773
        %v4775 = vand.u32 %v4774, 4294901760
        %4776 = vmatpush1.xpose.msra.mxu0 %v4775
        %4777 = vmatprep.mubr.f32.mxu0 0.0
        %v4778 = vand.u32 %v3936, 4294901760
        %4779 = vmatmul.mubr.f32.gmra.mrb[0].mxu0 %v4778
        %v4780 = vpop.f32.mrb[0].mxu0
        %v4781 = vadd.f32 %v4613, %v4780
        %v4782 = vpop.f32.mrb[0].mxu0
        %v4783 = vadd.f32 %v4615, %v4782
        %4784 = vdwg.mxu0
        %4785 = vmatprep.subr.mxu0 0.0
        %v4786 = vand.u32 %v3939, 4294901760
        %4787 = vmatpush1.xpose.msra.mxu0 %v4786
        %4788 = vmatprep.subr.mxu0 0.0
        %v4789 = vand.u32 %v3942, 4294901760
        %4790 = vmatpush1.xpose.msra.mxu0 %v4789
        %4791 = vmatprep.subr.mxu0 0.0
        %v4792 = vand.u32 %v3945, 4294901760
        %4793 = vmatpush1.xpose.msra.mxu0 %v4792
        %4794 = vmatprep.subr.mxu0 0.0
        %v4795 = vand.u32 %v3948, 4294901760
        %4796 = vmatpush1.xpose.msra.mxu0 %v4795
        %4797 = vmatprep.subr.mxu0 0.0
        %v4798 = vand.u32 %v3951, 4294901760
        %4799 = vmatpush1.xpose.msra.mxu0 %v4798
        %4800 = vmatprep.subr.mxu0 0.0
        %v4801 = vand.u32 %v3954, 4294901760
        %4802 = vmatpush1.xpose.msra.mxu0 %v4801
        %4803 = vmatprep.subr.mxu0 0.0
        %v4804 = vand.u32 %v3957, 4294901760
        %4805 = vmatpush1.xpose.msra.mxu0 %v4804
        %4806 = vmatprep.subr.mxu0 0.0
        %v4807 = vand.u32 %v3960, 4294901760
        %4808 = vmatpush1.xpose.msra.mxu0 %v4807
        %4809 = vmatprep.subr.mxu0 0.0
        %v4810 = vand.u32 %v3963, 4294901760
        %4811 = vmatpush1.xpose.msra.mxu0 %v4810
        %4812 = vmatprep.subr.mxu0 0.0
        %v4813 = vand.u32 %v3966, 4294901760
        %4814 = vmatpush1.xpose.msra.mxu0 %v4813
        %4815 = vmatprep.subr.mxu0 0.0
        %v4816 = vand.u32 %v3969, 4294901760
        %4817 = vmatpush1.xpose.msra.mxu0 %v4816
        %4818 = vmatprep.subr.mxu0 0.0
        %v4819 = vand.u32 %v3972, 4294901760
        %4820 = vmatpush1.xpose.msra.mxu0 %v4819
        %4821 = vmatprep.subr.mxu0 0.0
        %v4822 = vand.u32 %v3975, 4294901760
        %4823 = vmatpush1.xpose.msra.mxu0 %v4822
        %4824 = vmatprep.subr.mxu0 0.0
        %v4825 = vand.u32 %v3978, 4294901760
        %4826 = vmatpush1.xpose.msra.mxu0 %v4825
        %4827 = vmatprep.subr.mxu0 0.0
        %v4828 = vand.u32 %v3981, 4294901760
        %4829 = vmatpush1.xpose.msra.mxu0 %v4828
        %4830 = vmatprep.subr.mxu0 0.0
        %v4831 = vand.u32 %v3984, 4294901760
        %4832 = vmatpush1.xpose.msra.mxu0 %v4831
        %4833 = vmatprep.subr.mxu0 0.0
        %v4834 = vand.u32 %v3987, 4294901760
        %4835 = vmatpush1.xpose.msra.mxu0 %v4834
        %4836 = vmatprep.subr.mxu0 0.0
        %v4837 = vand.u32 %v3990, 4294901760
        %4838 = vmatpush1.xpose.msra.mxu0 %v4837
        %4839 = vmatprep.subr.mxu0 0.0
        %v4840 = vand.u32 %v3993, 4294901760
        %4841 = vmatpush1.xpose.msra.mxu0 %v4840
        %4842 = vmatprep.subr.mxu0 0.0
        %v4843 = vand.u32 %v3996, 4294901760
        %4844 = vmatpush1.xpose.msra.mxu0 %v4843
        %4845 = vmatprep.subr.mxu0 0.0
        %v4846 = vand.u32 %v3999, 4294901760
        %4847 = vmatpush1.xpose.msra.mxu0 %v4846
        %4848 = vmatprep.subr.mxu0 0.0
        %v4849 = vand.u32 %v4002, 4294901760
        %4850 = vmatpush1.xpose.msra.mxu0 %v4849
        %4851 = vmatprep.subr.mxu0 0.0
        %v4852 = vand.u32 %v4005, 4294901760
        %4853 = vmatpush1.xpose.msra.mxu0 %v4852
        %4854 = vmatprep.subr.mxu0 0.0
        %v4855 = vand.u32 %v4008, 4294901760
        %4856 = vmatpush1.xpose.msra.mxu0 %v4855
        %4857 = vmatprep.subr.mxu0 0.0
        %v4858 = vand.u32 %v4011, 4294901760
        %4859 = vmatpush1.xpose.msra.mxu0 %v4858
        %4860 = vmatprep.subr.mxu0 0.0
        %v4861 = vand.u32 %v4014, 4294901760
        %4862 = vmatpush1.xpose.msra.mxu0 %v4861
        %4863 = vmatprep.subr.mxu0 0.0
        %v4864 = vand.u32 %v4017, 4294901760
        %4865 = vmatpush1.xpose.msra.mxu0 %v4864
        %4866 = vmatprep.subr.mxu0 0.0
        %v4867 = vand.u32 %v4020, 4294901760
        %4868 = vmatpush1.xpose.msra.mxu0 %v4867
        %4869 = vmatprep.subr.mxu0 0.0
        %v4870 = vand.u32 %v4023, 4294901760
        %4871 = vmatpush1.xpose.msra.mxu0 %v4870
        %4872 = vmatprep.subr.mxu0 0.0
        %v4873 = vand.u32 %v4026, 4294901760
        %4874 = vmatpush1.xpose.msra.mxu0 %v4873
        %4875 = vmatprep.subr.mxu0 0.0
        %v4876 = vand.u32 %v4029, 4294901760
        %4877 = vmatpush1.xpose.msra.mxu0 %v4876
        %4878 = vmatprep.subr.mxu0 0.0
        %v4879 = vand.u32 %v4032, 4294901760
        %4880 = vmatpush1.xpose.msra.mxu0 %v4879
        %4881 = vmatprep.mubr.f32.mxu0 0.0
        %v4882 = vand.u32 %v3936, 4294901760
        %4883 = vmatmul.mubr.f32.gmra.mrb[0].mxu0 %v4882
        %v4884 = vpop.f32.mrb[0].mxu0
        %v4885 = vadd.f32 %v4781, %v4884
        %v4886 = vpop.f32.mrb[0].mxu0
        %v4887 = vadd.f32 %v4783, %v4886
        %4888 = vdwg.mxu0
        %v4889 = vrot.slane %v352, 1
        %v4890 = vrot.slane %v353, 1
        %v4891 = vsel %vm2354, %v4889, %v4890
        %v4892 = vrot.slane %v354, 1
        %v4893 = vsel %vm2354, %v4890, %v4892
        %v4894 = vrot.slane %v355, 1
        %v4895 = vrot.slane %v356, 1
        %v4896 = vsel %vm2354, %v4894, %v4895
        %v4897 = vrot.slane %v357, 1
        %v4898 = vsel %vm2354, %v4895, %v4897
        %v4899 = vrot.slane %v358, 1
        %v4900 = vrot.slane %v359, 1
        %v4901 = vsel %vm2354, %v4899, %v4900
        %v4902 = vrot.slane %v360, 1
        %v4903 = vsel %vm2354, %v4900, %v4902
        %v4904 = vrot.slane %v361, 1
        %v4905 = vrot.slane %v362, 1
        %v4906 = vsel %vm2354, %v4904, %v4905
        %v4907 = vrot.slane %v363, 1
        %v4908 = vsel %vm2354, %v4905, %v4907
        %v4909 = vrot.slane %v364, 1
        %v4910 = vrot.slane %v365, 1
        %v4911 = vsel %vm2354, %v4909, %v4910
        %v4912 = vrot.slane %v366, 1
        %v4913 = vsel %vm2354, %v4910, %v4912
        %v4914 = vrot.slane %v367, 1
        %v4915 = vrot.slane %v368, 1
        %v4916 = vsel %vm2354, %v4914, %v4915
        %v4917 = vrot.slane %v369, 1
        %v4918 = vsel %vm2354, %v4915, %v4917
        %v4919 = vrot.slane %v370, 1
        %v4920 = vrot.slane %v371, 1
        %v4921 = vsel %vm2354, %v4919, %v4920
        %v4922 = vrot.slane %v372, 1
        %v4923 = vsel %vm2354, %v4920, %v4922
        %v4924 = vrot.slane %v373, 1
        %v4925 = vrot.slane %v374, 1
        %v4926 = vsel %vm2354, %v4924, %v4925
        %v4927 = vrot.slane %v375, 1
        %v4928 = vsel %vm2354, %v4925, %v4927
        %v4929 = vrot.slane %v376, 1
        %v4930 = vrot.slane %v377, 1
        %v4931 = vsel %vm2354, %v4929, %v4930
        %v4932 = vrot.slane %v378, 1
        %v4933 = vsel %vm2354, %v4930, %v4932
        %v4934 = vrot.slane %v379, 1
        %v4935 = vrot.slane %v380, 1
        %v4936 = vsel %vm2354, %v4934, %v4935
        %v4937 = vrot.slane %v381, 1
        %v4938 = vsel %vm2354, %v4935, %v4937
        %v4939 = vrot.slane %v382, 1
        %v4940 = vrot.slane %v383, 1
        %v4941 = vsel %vm2354, %v4939, %v4940
        %v4942 = vrot.slane %v384, 1
        %v4943 = vsel %vm2354, %v4940, %v4942
        %v4944 = vrot.slane %v385, 1
        %v4945 = vrot.slane %v386, 1
        %v4946 = vsel %vm2354, %v4944, %v4945
        %v4947 = vrot.slane %v387, 1
        %v4948 = vsel %vm2354, %v4945, %v4947
        %v4949 = vrot.slane %v388, 1
        %v4950 = vrot.slane %v389, 1
        %v4951 = vsel %vm2354, %v4949, %v4950
        %v4952 = vrot.slane %v390, 1
        %v4953 = vsel %vm2354, %v4950, %v4952
        %v4954 = vrot.slane %v391, 1
        %v4955 = vrot.slane %v392, 1
        %v4956 = vsel %vm2354, %v4954, %v4955
        %v4957 = vrot.slane %v393, 1
        %v4958 = vsel %vm2354, %v4955, %v4957
        %v4959 = vrot.slane %v394, 1
        %v4960 = vrot.slane %v395, 1
        %v4961 = vsel %vm2354, %v4959, %v4960
        %v4962 = vrot.slane %v396, 1
        %v4963 = vsel %vm2354, %v4960, %v4962
        %v4964 = vrot.slane %v397, 1
        %v4965 = vrot.slane %v398, 1
        %v4966 = vsel %vm2354, %v4964, %v4965
        %v4967 = vrot.slane %v399, 1
        %v4968 = vsel %vm2354, %v4965, %v4967
        %v4969 = vld [vmem:[%s7] sm:$0xff]
        %vm4970 = vcmask 31744
        %v4972 = vsel %vm4970, %v4969, 0
        %v4974 = vsel %vm4970, %v4891, 0
        %v4976 = vsel %vm4970, %v4893, 0
        %v4978 = vsel %vm4970, %v4896, 0
        %v4980 = vsel %vm4970, %v4898, 0
        %v4982 = vsel %vm4970, %v4901, 0
        %v4984 = vsel %vm4970, %v4903, 0
        %v4986 = vsel %vm4970, %v4906, 0
        %v4988 = vsel %vm4970, %v4908, 0
        %v4990 = vsel %vm4970, %v4911, 0
        %v4992 = vsel %vm4970, %v4913, 0
        %v4994 = vsel %vm4970, %v4916, 0
        %v4996 = vsel %vm4970, %v4918, 0
        %v4998 = vsel %vm4970, %v4921, 0
        %v5000 = vsel %vm4970, %v4923, 0
        %v5002 = vsel %vm4970, %v4926, 0
        %v5004 = vsel %vm4970, %v4928, 0
        %v5006 = vsel %vm4970, %v4931, 0
        %v5008 = vsel %vm4970, %v4933, 0
        %v5010 = vsel %vm4970, %v4936, 0
        %v5012 = vsel %vm4970, %v4938, 0
        %v5014 = vsel %vm4970, %v4941, 0
        %v5016 = vsel %vm4970, %v4943, 0
        %v5018 = vsel %vm4970, %v4946, 0
        %v5020 = vsel %vm4970, %v4948, 0
        %v5022 = vsel %vm4970, %v4951, 0
        %v5024 = vsel %vm4970, %v4953, 0
        %v5026 = vsel %vm4970, %v4956, 0
        %v5028 = vsel %vm4970, %v4958, 0
        %v5030 = vsel %vm4970, %v4961, 0
        %v5032 = vsel %vm4970, %v4963, 0
        %v5034 = vsel %vm4970, %v4966, 0
        %v5036 = vsel %vm4970, %v4968, 0
        %5038 = vmatprep.subr.mxu0 0.0
        %v5039 = vand.u32 %v4974, 4294901760
        %5040 = vmatpush1.xpose.msra.mxu0 %v5039
        %5041 = vmatprep.subr.mxu0 0.0
        %v5042 = vand.u32 %v4976, 4294901760
        %5043 = vmatpush1.xpose.msra.mxu0 %v5042
        %5044 = vmatprep.subr.mxu0 0.0
        %v5045 = vand.u32 %v4978, 4294901760
        %5046 = vmatpush1.xpose.msra.mxu0 %v5045
        %5047 = vmatprep.subr.mxu0 0.0
        %v5048 = vand.u32 %v4980, 4294901760
        %5049 = vmatpush1.xpose.msra.mxu0 %v5048
        %5050 = vmatprep.subr.mxu0 0.0
        %v5051 = vand.u32 %v4982, 4294901760
        %5052 = vmatpush1.xpose.msra.mxu0 %v5051
        %5053 = vmatprep.subr.mxu0 0.0
        %v5054 = vand.u32 %v4984, 4294901760
        %5055 = vmatpush1.xpose.msra.mxu0 %v5054
        %5056 = vmatprep.subr.mxu0 0.0
        %v5057 = vand.u32 %v4986, 4294901760
        %5058 = vmatpush1.xpose.msra.mxu0 %v5057
        %5059 = vmatprep.subr.mxu0 0.0
        %v5060 = vand.u32 %v4988, 4294901760
        %5061 = vmatpush1.xpose.msra.mxu0 %v5060
        %5062 = vmatprep.subr.mxu0 0.0
        %v5063 = vand.u32 %v4990, 4294901760
        %5064 = vmatpush1.xpose.msra.mxu0 %v5063
        %5065 = vmatprep.subr.mxu0 0.0
        %v5066 = vand.u32 %v4992, 4294901760
        %5067 = vmatpush1.xpose.msra.mxu0 %v5066
        %5068 = vmatprep.subr.mxu0 0.0
        %v5069 = vand.u32 %v4994, 4294901760
        %5070 = vmatpush1.xpose.msra.mxu0 %v5069
        %5071 = vmatprep.subr.mxu0 0.0
        %v5072 = vand.u32 %v4996, 4294901760
        %5073 = vmatpush1.xpose.msra.mxu0 %v5072
        %5074 = vmatprep.subr.mxu0 0.0
        %v5075 = vand.u32 %v4998, 4294901760
        %5076 = vmatpush1.xpose.msra.mxu0 %v5075
        %5077 = vmatprep.subr.mxu0 0.0
        %v5078 = vand.u32 %v5000, 4294901760
        %5079 = vmatpush1.xpose.msra.mxu0 %v5078
        %5080 = vmatprep.subr.mxu0 0.0
        %v5081 = vand.u32 %v5002, 4294901760
        %5082 = vmatpush1.xpose.msra.mxu0 %v5081
        %5083 = vmatprep.subr.mxu0 0.0
        %v5084 = vand.u32 %v5004, 4294901760
        %5085 = vmatpush1.xpose.msra.mxu0 %v5084
        %5086 = vmatprep.subr.mxu0 0.0
        %v5087 = vand.u32 %v5006, 4294901760
        %5088 = vmatpush1.xpose.msra.mxu0 %v5087
        %5089 = vmatprep.subr.mxu0 0.0
        %v5090 = vand.u32 %v5008, 4294901760
        %5091 = vmatpush1.xpose.msra.mxu0 %v5090
        %5092 = vmatprep.subr.mxu0 0.0
        %v5093 = vand.u32 %v5010, 4294901760
        %5094 = vmatpush1.xpose.msra.mxu0 %v5093
        %5095 = vmatprep.subr.mxu0 0.0
        %v5096 = vand.u32 %v5012, 4294901760
        %5097 = vmatpush1.xpose.msra.mxu0 %v5096
        %5098 = vmatprep.subr.mxu0 0.0
        %v5099 = vand.u32 %v5014, 4294901760
        %5100 = vmatpush1.xpose.msra.mxu0 %v5099
        %5101 = vmatprep.subr.mxu0 0.0
        %v5102 = vand.u32 %v5016, 4294901760
        %5103 = vmatpush1.xpose.msra.mxu0 %v5102
        %5104 = vmatprep.subr.mxu0 0.0
        %v5105 = vand.u32 %v5018, 4294901760
        %5106 = vmatpush1.xpose.msra.mxu0 %v5105
        %5107 = vmatprep.subr.mxu0 0.0
        %v5108 = vand.u32 %v5020, 4294901760
        %5109 = vmatpush1.xpose.msra.mxu0 %v5108
        %5110 = vmatprep.subr.mxu0 0.0
        %v5111 = vand.u32 %v5022, 4294901760
        %5112 = vmatpush1.xpose.msra.mxu0 %v5111
        %5113 = vmatprep.subr.mxu0 0.0
        %v5114 = vand.u32 %v5024, 4294901760
        %5115 = vmatpush1.xpose.msra.mxu0 %v5114
        %5116 = vmatprep.subr.mxu0 0.0
        %v5117 = vand.u32 %v5026, 4294901760
        %5118 = vmatpush1.xpose.msra.mxu0 %v5117
        %5119 = vmatprep.subr.mxu0 0.0
        %v5120 = vand.u32 %v5028, 4294901760
        %5121 = vmatpush1.xpose.msra.mxu0 %v5120
        %5122 = vmatprep.subr.mxu0 0.0
        %v5123 = vand.u32 %v5030, 4294901760
        %5124 = vmatpush1.xpose.msra.mxu0 %v5123
        %5125 = vmatprep.subr.mxu0 0.0
        %v5126 = vand.u32 %v5032, 4294901760
        %5127 = vmatpush1.xpose.msra.mxu0 %v5126
        %5128 = vmatprep.subr.mxu0 0.0
        %v5129 = vand.u32 %v5034, 4294901760
        %5130 = vmatpush1.xpose.msra.mxu0 %v5129
        %5131 = vmatprep.subr.mxu0 0.0
        %v5132 = vand.u32 %v5036, 4294901760
        %5133 = vmatpush1.xpose.msra.mxu0 %v5132
        %5134 = vmatprep.mubr.f32.mxu0 0.0
        %v5135 = vand.u32 %v4972, 4294901760
        %v5136 = vsub.f32 %v4972, %v5135
        %v5137 = vand.u32 %v5136, 4294901760
        %v5138 = vsub.f32 %v5136, %v5137
        %v5139 = vand.u32 %v5138, 4294901760
        %5140 = vmatmul.mubr.f32.gmra.mrb[0].mxu0 %v5139
        %v5141 = vpop.f32.mrb[0].mxu0
        %v5142 = vadd.f32 0.0, %v5141
        %v5143 = vpop.f32.mrb[0].mxu0
        %v5144 = vadd.f32 0.0, %v5143
        %5145 = vdwg.mxu0
        %5146 = vmatprep.subr.mxu0 0.0
        %v5147 = vand.u32 %v4974, 4294901760
        %v5148 = vsub.f32 %v4974, %v5147
        %v5149 = vand.u32 %v5148, 4294901760
        %v5150 = vsub.f32 %v5148, %v5149
        %v5151 = vand.u32 %v5150, 4294901760
        %5152 = vmatpush1.xpose.msra.mxu0 %v5151
        %5153 = vmatprep.subr.mxu0 0.0
        %v5154 = vand.u32 %v4976, 4294901760
        %v5155 = vsub.f32 %v4976, %v5154
        %v5156 = vand.u32 %v5155, 4294901760
        %v5157 = vsub.f32 %v5155, %v5156
        %v5158 = vand.u32 %v5157, 4294901760
        %5159 = vmatpush1.xpose.msra.mxu0 %v5158
        %5160 = vmatprep.subr.mxu0 0.0
        %v5161 = vand.u32 %v4978, 4294901760
        %v5162 = vsub.f32 %v4978, %v5161
        %v5163 = vand.u32 %v5162, 4294901760
        %v5164 = vsub.f32 %v5162, %v5163
        %v5165 = vand.u32 %v5164, 4294901760
        %5166 = vmatpush1.xpose.msra.mxu0 %v5165
        %5167 = vmatprep.subr.mxu0 0.0
        %v5168 = vand.u32 %v4980, 4294901760
        %v5169 = vsub.f32 %v4980, %v5168
        %v5170 = vand.u32 %v5169, 4294901760
        %v5171 = vsub.f32 %v5169, %v5170
        %v5172 = vand.u32 %v5171, 4294901760
        %5173 = vmatpush1.xpose.msra.mxu0 %v5172
        %5174 = vmatprep.subr.mxu0 0.0
        %v5175 = vand.u32 %v4982, 4294901760
        %v5176 = vsub.f32 %v4982, %v5175
        %v5177 = vand.u32 %v5176, 4294901760
        %v5178 = vsub.f32 %v5176, %v5177
        %v5179 = vand.u32 %v5178, 4294901760
        %5180 = vmatpush1.xpose.msra.mxu0 %v5179
        %5181 = vmatprep.subr.mxu0 0.0
        %v5182 = vand.u32 %v4984, 4294901760
        %v5183 = vsub.f32 %v4984, %v5182
        %v5184 = vand.u32 %v5183, 4294901760
        %v5185 = vsub.f32 %v5183, %v5184
        %v5186 = vand.u32 %v5185, 4294901760
        %5187 = vmatpush1.xpose.msra.mxu0 %v5186
        %5188 = vmatprep.subr.mxu0 0.0
        %v5189 = vand.u32 %v4986, 4294901760
        %v5190 = vsub.f32 %v4986, %v5189
        %v5191 = vand.u32 %v5190, 4294901760
        %v5192 = vsub.f32 %v5190, %v5191
        %v5193 = vand.u32 %v5192, 4294901760
        %5194 = vmatpush1.xpose.msra.mxu0 %v5193
        %5195 = vmatprep.subr.mxu0 0.0
        %v5196 = vand.u32 %v4988, 4294901760
        %v5197 = vsub.f32 %v4988, %v5196
        %v5198 = vand.u32 %v5197, 4294901760
        %v5199 = vsub.f32 %v5197, %v5198
        %v5200 = vand.u32 %v5199, 4294901760
        %5201 = vmatpush1.xpose.msra.mxu0 %v5200
        %5202 = vmatprep.subr.mxu0 0.0
        %v5203 = vand.u32 %v4990, 4294901760
        %v5204 = vsub.f32 %v4990, %v5203
        %v5205 = vand.u32 %v5204, 4294901760
        %v5206 = vsub.f32 %v5204, %v5205
        %v5207 = vand.u32 %v5206, 4294901760
        %5208 = vmatpush1.xpose.msra.mxu0 %v5207
        %5209 = vmatprep.subr.mxu0 0.0
        %v5210 = vand.u32 %v4992, 4294901760
        %v5211 = vsub.f32 %v4992, %v5210
        %v5212 = vand.u32 %v5211, 4294901760
        %v5213 = vsub.f32 %v5211, %v5212
        %v5214 = vand.u32 %v5213, 4294901760
        %5215 = vmatpush1.xpose.msra.mxu0 %v5214
        %5216 = vmatprep.subr.mxu0 0.0
        %v5217 = vand.u32 %v4994, 4294901760
        %v5218 = vsub.f32 %v4994, %v5217
        %v5219 = vand.u32 %v5218, 4294901760
        %v5220 = vsub.f32 %v5218, %v5219
        %v5221 = vand.u32 %v5220, 4294901760
        %5222 = vmatpush1.xpose.msra.mxu0 %v5221
        %5223 = vmatprep.subr.mxu0 0.0
        %v5224 = vand.u32 %v4996, 4294901760
        %v5225 = vsub.f32 %v4996, %v5224
        %v5226 = vand.u32 %v5225, 4294901760
        %v5227 = vsub.f32 %v5225, %v5226
        %v5228 = vand.u32 %v5227, 4294901760
        %5229 = vmatpush1.xpose.msra.mxu0 %v5228
        %5230 = vmatprep.subr.mxu0 0.0
        %v5231 = vand.u32 %v4998, 4294901760
        %v5232 = vsub.f32 %v4998, %v5231
        %v5233 = vand.u32 %v5232, 4294901760
        %v5234 = vsub.f32 %v5232, %v5233
        %v5235 = vand.u32 %v5234, 4294901760
        %5236 = vmatpush1.xpose.msra.mxu0 %v5235
        %5237 = vmatprep.subr.mxu0 0.0
        %v5238 = vand.u32 %v5000, 4294901760
        %v5239 = vsub.f32 %v5000, %v5238
        %v5240 = vand.u32 %v5239, 4294901760
        %v5241 = vsub.f32 %v5239, %v5240
        %v5242 = vand.u32 %v5241, 4294901760
        %5243 = vmatpush1.xpose.msra.mxu0 %v5242
        %5244 = vmatprep.subr.mxu0 0.0
        %v5245 = vand.u32 %v5002, 4294901760
        %v5246 = vsub.f32 %v5002, %v5245
        %v5247 = vand.u32 %v5246, 4294901760
        %v5248 = vsub.f32 %v5246, %v5247
        %v5249 = vand.u32 %v5248, 4294901760
        %5250 = vmatpush1.xpose.msra.mxu0 %v5249
        %5251 = vmatprep.subr.mxu0 0.0
        %v5252 = vand.u32 %v5004, 4294901760
        %v5253 = vsub.f32 %v5004, %v5252
        %v5254 = vand.u32 %v5253, 4294901760
        %v5255 = vsub.f32 %v5253, %v5254
        %v5256 = vand.u32 %v5255, 4294901760
        %5257 = vmatpush1.xpose.msra.mxu0 %v5256
        %5258 = vmatprep.subr.mxu0 0.0
        %v5259 = vand.u32 %v5006, 4294901760
        %v5260 = vsub.f32 %v5006, %v5259
        %v5261 = vand.u32 %v5260, 4294901760
        %v5262 = vsub.f32 %v5260, %v5261
        %v5263 = vand.u32 %v5262, 4294901760
        %5264 = vmatpush1.xpose.msra.mxu0 %v5263
        %5265 = vmatprep.subr.mxu0 0.0
        %v5266 = vand.u32 %v5008, 4294901760
        %v5267 = vsub.f32 %v5008, %v5266
        %v5268 = vand.u32 %v5267, 4294901760
        %v5269 = vsub.f32 %v5267, %v5268
        %v5270 = vand.u32 %v5269, 4294901760
        %5271 = vmatpush1.xpose.msra.mxu0 %v5270
        %5272 = vmatprep.subr.mxu0 0.0
        %v5273 = vand.u32 %v5010, 4294901760
        %v5274 = vsub.f32 %v5010, %v5273
        %v5275 = vand.u32 %v5274, 4294901760
        %v5276 = vsub.f32 %v5274, %v5275
        %v5277 = vand.u32 %v5276, 4294901760
        %5278 = vmatpush1.xpose.msra.mxu0 %v5277
        %5279 = vmatprep.subr.mxu0 0.0
        %v5280 = vand.u32 %v5012, 4294901760
        %v5281 = vsub.f32 %v5012, %v5280
        %v5282 = vand.u32 %v5281, 4294901760
        %v5283 = vsub.f32 %v5281, %v5282
        %v5284 = vand.u32 %v5283, 4294901760
        %5285 = vmatpush1.xpose.msra.mxu0 %v5284
        %5286 = vmatprep.subr.mxu0 0.0
        %v5287 = vand.u32 %v5014, 4294901760
        %v5288 = vsub.f32 %v5014, %v5287
        %v5289 = vand.u32 %v5288, 4294901760
        %v5290 = vsub.f32 %v5288, %v5289
        %v5291 = vand.u32 %v5290, 4294901760
        %5292 = vmatpush1.xpose.msra.mxu0 %v5291
        %5293 = vmatprep.subr.mxu0 0.0
        %v5294 = vand.u32 %v5016, 4294901760
        %v5295 = vsub.f32 %v5016, %v5294
        %v5296 = vand.u32 %v5295, 4294901760
        %v5297 = vsub.f32 %v5295, %v5296
        %v5298 = vand.u32 %v5297, 4294901760
        %5299 = vmatpush1.xpose.msra.mxu0 %v5298
        %5300 = vmatprep.subr.mxu0 0.0
        %v5301 = vand.u32 %v5018, 4294901760
        %v5302 = vsub.f32 %v5018, %v5301
        %v5303 = vand.u32 %v5302, 4294901760
        %v5304 = vsub.f32 %v5302, %v5303
        %v5305 = vand.u32 %v5304, 4294901760
        %5306 = vmatpush1.xpose.msra.mxu0 %v5305
        %5307 = vmatprep.subr.mxu0 0.0
        %v5308 = vand.u32 %v5020, 4294901760
        %v5309 = vsub.f32 %v5020, %v5308
        %v5310 = vand.u32 %v5309, 4294901760
        %v5311 = vsub.f32 %v5309, %v5310
        %v5312 = vand.u32 %v5311, 4294901760
        %5313 = vmatpush1.xpose.msra.mxu0 %v5312
        %5314 = vmatprep.subr.mxu0 0.0
        %v5315 = vand.u32 %v5022, 4294901760
        %v5316 = vsub.f32 %v5022, %v5315
        %v5317 = vand.u32 %v5316, 4294901760
        %v5318 = vsub.f32 %v5316, %v5317
        %v5319 = vand.u32 %v5318, 4294901760
        %5320 = vmatpush1.xpose.msra.mxu0 %v5319
        %5321 = vmatprep.subr.mxu0 0.0
        %v5322 = vand.u32 %v5024, 4294901760
        %v5323 = vsub.f32 %v5024, %v5322
        %v5324 = vand.u32 %v5323, 4294901760
        %v5325 = vsub.f32 %v5323, %v5324
        %v5326 = vand.u32 %v5325, 4294901760
        %5327 = vmatpush1.xpose.msra.mxu0 %v5326
        %5328 = vmatprep.subr.mxu0 0.0
        %v5329 = vand.u32 %v5026, 4294901760
        %v5330 = vsub.f32 %v5026, %v5329
        %v5331 = vand.u32 %v5330, 4294901760
        %v5332 = vsub.f32 %v5330, %v5331
        %v5333 = vand.u32 %v5332, 4294901760
        %5334 = vmatpush1.xpose.msra.mxu0 %v5333
        %5335 = vmatprep.subr.mxu0 0.0
        %v5336 = vand.u32 %v5028, 4294901760
        %v5337 = vsub.f32 %v5028, %v5336
        %v5338 = vand.u32 %v5337, 4294901760
        %v5339 = vsub.f32 %v5337, %v5338
        %v5340 = vand.u32 %v5339, 4294901760
        %5341 = vmatpush1.xpose.msra.mxu0 %v5340
        %5342 = vmatprep.subr.mxu0 0.0
        %v5343 = vand.u32 %v5030, 4294901760
        %v5344 = vsub.f32 %v5030, %v5343
        %v5345 = vand.u32 %v5344, 4294901760
        %v5346 = vsub.f32 %v5344, %v5345
        %v5347 = vand.u32 %v5346, 4294901760
        %5348 = vmatpush1.xpose.msra.mxu0 %v5347
        %5349 = vmatprep.subr.mxu0 0.0
        %v5350 = vand.u32 %v5032, 4294901760
        %v5351 = vsub.f32 %v5032, %v5350
        %v5352 = vand.u32 %v5351, 4294901760
        %v5353 = vsub.f32 %v5351, %v5352
        %v5354 = vand.u32 %v5353, 4294901760
        %5355 = vmatpush1.xpose.msra.mxu0 %v5354
        %5356 = vmatprep.subr.mxu0 0.0
        %v5357 = vand.u32 %v5034, 4294901760
        %v5358 = vsub.f32 %v5034, %v5357
        %v5359 = vand.u32 %v5358, 4294901760
        %v5360 = vsub.f32 %v5358, %v5359
        %v5361 = vand.u32 %v5360, 4294901760
        %5362 = vmatpush1.xpose.msra.mxu0 %v5361
        %5363 = vmatprep.subr.mxu0 0.0
        %v5364 = vand.u32 %v5036, 4294901760
        %v5365 = vsub.f32 %v5036, %v5364
        %v5366 = vand.u32 %v5365, 4294901760
        %v5367 = vsub.f32 %v5365, %v5366
        %v5368 = vand.u32 %v5367, 4294901760
        %5369 = vmatpush1.xpose.msra.mxu0 %v5368
        %5370 = vmatprep.mubr.f32.mxu0 0.0
        %v5371 = vand.u32 %v4972, 4294901760
        %5372 = vmatmul.mubr.f32.gmra.mrb[0].mxu0 %v5371
        %v5373 = vpop.f32.mrb[0].mxu0
        %v5374 = vadd.f32 %v5142, %v5373
        %v5375 = vpop.f32.mrb[0].mxu0
        %v5376 = vadd.f32 %v5144, %v5375
        %5377 = vdwg.mxu0
        %5378 = vmatprep.subr.mxu0 0.0
        %v5379 = vand.u32 %v4974, 4294901760
        %v5380 = vsub.f32 %v4974, %v5379
        %5381 = vmatpush1.xpose.msra.mxu0 %v5380
        %5382 = vmatprep.subr.mxu0 0.0
        %v5383 = vand.u32 %v4976, 4294901760
        %v5384 = vsub.f32 %v4976, %v5383
        %5385 = vmatpush1.xpose.msra.mxu0 %v5384
        %5386 = vmatprep.subr.mxu0 0.0
        %v5387 = vand.u32 %v4978, 4294901760
        %v5388 = vsub.f32 %v4978, %v5387
        %5389 = vmatpush1.xpose.msra.mxu0 %v5388
        %5390 = vmatprep.subr.mxu0 0.0
        %v5391 = vand.u32 %v4980, 4294901760
        %v5392 = vsub.f32 %v4980, %v5391
        %5393 = vmatpush1.xpose.msra.mxu0 %v5392
        %5394 = vmatprep.subr.mxu0 0.0
        %v5395 = vand.u32 %v4982, 4294901760
        %v5396 = vsub.f32 %v4982, %v5395
        %5397 = vmatpush1.xpose.msra.mxu0 %v5396
        %5398 = vmatprep.subr.mxu0 0.0
        %v5399 = vand.u32 %v4984, 4294901760
        %v5400 = vsub.f32 %v4984, %v5399
        %5401 = vmatpush1.xpose.msra.mxu0 %v5400
        %5402 = vmatprep.subr.mxu0 0.0
        %v5403 = vand.u32 %v4986, 4294901760
        %v5404 = vsub.f32 %v4986, %v5403
        %5405 = vmatpush1.xpose.msra.mxu0 %v5404
        %5406 = vmatprep.subr.mxu0 0.0
        %v5407 = vand.u32 %v4988, 4294901760
        %v5408 = vsub.f32 %v4988, %v5407
        %5409 = vmatpush1.xpose.msra.mxu0 %v5408
        %5410 = vmatprep.subr.mxu0 0.0
        %v5411 = vand.u32 %v4990, 4294901760
        %v5412 = vsub.f32 %v4990, %v5411
        %5413 = vmatpush1.xpose.msra.mxu0 %v5412
        %5414 = vmatprep.subr.mxu0 0.0
        %v5415 = vand.u32 %v4992, 4294901760
        %v5416 = vsub.f32 %v4992, %v5415
        %5417 = vmatpush1.xpose.msra.mxu0 %v5416
        %5418 = vmatprep.subr.mxu0 0.0
        %v5419 = vand.u32 %v4994, 4294901760
        %v5420 = vsub.f32 %v4994, %v5419
        %5421 = vmatpush1.xpose.msra.mxu0 %v5420
        %5422 = vmatprep.subr.mxu0 0.0
        %v5423 = vand.u32 %v4996, 4294901760
        %v5424 = vsub.f32 %v4996, %v5423
        %5425 = vmatpush1.xpose.msra.mxu0 %v5424
        %5426 = vmatprep.subr.mxu0 0.0
        %v5427 = vand.u32 %v4998, 4294901760
        %v5428 = vsub.f32 %v4998, %v5427
        %5429 = vmatpush1.xpose.msra.mxu0 %v5428
        %5430 = vmatprep.subr.mxu0 0.0
        %v5431 = vand.u32 %v5000, 4294901760
        %v5432 = vsub.f32 %v5000, %v5431
        %5433 = vmatpush1.xpose.msra.mxu0 %v5432
        %5434 = vmatprep.subr.mxu0 0.0
        %v5435 = vand.u32 %v5002, 4294901760
        %v5436 = vsub.f32 %v5002, %v5435
        %5437 = vmatpush1.xpose.msra.mxu0 %v5436
        %5438 = vmatprep.subr.mxu0 0.0
        %v5439 = vand.u32 %v5004, 4294901760
        %v5440 = vsub.f32 %v5004, %v5439
        %5441 = vmatpush1.xpose.msra.mxu0 %v5440
        %5442 = vmatprep.subr.mxu0 0.0
        %v5443 = vand.u32 %v5006, 4294901760
        %v5444 = vsub.f32 %v5006, %v5443
        %5445 = vmatpush1.xpose.msra.mxu0 %v5444
        %5446 = vmatprep.subr.mxu0 0.0
        %v5447 = vand.u32 %v5008, 4294901760
        %v5448 = vsub.f32 %v5008, %v5447
        %5449 = vmatpush1.xpose.msra.mxu0 %v5448
        %5450 = vmatprep.subr.mxu0 0.0
        %v5451 = vand.u32 %v5010, 4294901760
        %v5452 = vsub.f32 %v5010, %v5451
        %5453 = vmatpush1.xpose.msra.mxu0 %v5452
        %5454 = vmatprep.subr.mxu0 0.0
        %v5455 = vand.u32 %v5012, 4294901760
        %v5456 = vsub.f32 %v5012, %v5455
        %5457 = vmatpush1.xpose.msra.mxu0 %v5456
        %5458 = vmatprep.subr.mxu0 0.0
        %v5459 = vand.u32 %v5014, 4294901760
        %v5460 = vsub.f32 %v5014, %v5459
        %5461 = vmatpush1.xpose.msra.mxu0 %v5460
        %5462 = vmatprep.subr.mxu0 0.0
        %v5463 = vand.u32 %v5016, 4294901760
        %v5464 = vsub.f32 %v5016, %v5463
        %5465 = vmatpush1.xpose.msra.mxu0 %v5464
        %5466 = vmatprep.subr.mxu0 0.0
        %v5467 = vand.u32 %v5018, 4294901760
        %v5468 = vsub.f32 %v5018, %v5467
        %5469 = vmatpush1.xpose.msra.mxu0 %v5468
        %5470 = vmatprep.subr.mxu0 0.0
        %v5471 = vand.u32 %v5020, 4294901760
        %v5472 = vsub.f32 %v5020, %v5471
        %5473 = vmatpush1.xpose.msra.mxu0 %v5472
        %5474 = vmatprep.subr.mxu0 0.0
        %v5475 = vand.u32 %v5022, 4294901760
        %v5476 = vsub.f32 %v5022, %v5475
        %5477 = vmatpush1.xpose.msra.mxu0 %v5476
        %5478 = vmatprep.subr.mxu0 0.0
        %v5479 = vand.u32 %v5024, 4294901760
        %v5480 = vsub.f32 %v5024, %v5479
        %5481 = vmatpush1.xpose.msra.mxu0 %v5480
        %5482 = vmatprep.subr.mxu0 0.0
        %v5483 = vand.u32 %v5026, 4294901760
        %v5484 = vsub.f32 %v5026, %v5483
        %5485 = vmatpush1.xpose.msra.mxu0 %v5484
        %5486 = vmatprep.subr.mxu0 0.0
        %v5487 = vand.u32 %v5028, 4294901760
        %v5488 = vsub.f32 %v5028, %v5487
        %5489 = vmatpush1.xpose.msra.mxu0 %v5488
        %5490 = vmatprep.subr.mxu0 0.0
        %v5491 = vand.u32 %v5030, 4294901760
        %v5492 = vsub.f32 %v5030, %v5491
        %5493 = vmatpush1.xpose.msra.mxu0 %v5492
        %5494 = vmatprep.subr.mxu0 0.0
        %v5495 = vand.u32 %v5032, 4294901760
        %v5496 = vsub.f32 %v5032, %v5495
        %5497 = vmatpush1.xpose.msra.mxu0 %v5496
        %5498 = vmatprep.subr.mxu0 0.0
        %v5499 = vand.u32 %v5034, 4294901760
        %v5500 = vsub.f32 %v5034, %v5499
        %5501 = vmatpush1.xpose.msra.mxu0 %v5500
        %5502 = vmatprep.subr.mxu0 0.0
        %v5503 = vand.u32 %v5036, 4294901760
        %v5504 = vsub.f32 %v5036, %v5503
        %5505 = vmatpush1.xpose.msra.mxu0 %v5504
        %5506 = vmatprep.mubr.f32.mxu0 0.0
        %v5507 = vand.u32 %v4972, 4294901760
        %v5508 = vsub.f32 %v4972, %v5507
        %5509 = vmatmul.mubr.f32.gmra.mrb[0].mxu0 %v5508
        %v5510 = vpop.f32.mrb[0].mxu0
        %v5511 = vadd.f32 %v5374, %v5510
        %v5512 = vpop.f32.mrb[0].mxu0
        %v5513 = vadd.f32 %v5376, %v5512
        %5514 = vdwg.mxu0
        %5515 = vmatprep.subr.mxu0 0.0
        %v5516 = vand.u32 %v4974, 4294901760
        %5517 = vmatpush1.xpose.msra.mxu0 %v5516
        %5518 = vmatprep.subr.mxu0 0.0
        %v5519 = vand.u32 %v4976, 4294901760
        %5520 = vmatpush1.xpose.msra.mxu0 %v5519
        %5521 = vmatprep.subr.mxu0 0.0
        %v5522 = vand.u32 %v4978, 4294901760
        %5523 = vmatpush1.xpose.msra.mxu0 %v5522
        %5524 = vmatprep.subr.mxu0 0.0
        %v5525 = vand.u32 %v4980, 4294901760
        %5526 = vmatpush1.xpose.msra.mxu0 %v5525
        %5527 = vmatprep.subr.mxu0 0.0
        %v5528 = vand.u32 %v4982, 4294901760
        %5529 = vmatpush1.xpose.msra.mxu0 %v5528
        %5530 = vmatprep.subr.mxu0 0.0
        %v5531 = vand.u32 %v4984, 4294901760
        %5532 = vmatpush1.xpose.msra.mxu0 %v5531
        %5533 = vmatprep.subr.mxu0 0.0
        %v5534 = vand.u32 %v4986, 4294901760
        %5535 = vmatpush1.xpose.msra.mxu0 %v5534
        %5536 = vmatprep.subr.mxu0 0.0
        %v5537 = vand.u32 %v4988, 4294901760
        %5538 = vmatpush1.xpose.msra.mxu0 %v5537
        %5539 = vmatprep.subr.mxu0 0.0
        %v5540 = vand.u32 %v4990, 4294901760
        %5541 = vmatpush1.xpose.msra.mxu0 %v5540
        %5542 = vmatprep.subr.mxu0 0.0
        %v5543 = vand.u32 %v4992, 4294901760
        %5544 = vmatpush1.xpose.msra.mxu0 %v5543
        %5545 = vmatprep.subr.mxu0 0.0
        %v5546 = vand.u32 %v4994, 4294901760
        %5547 = vmatpush1.xpose.msra.mxu0 %v5546
        %5548 = vmatprep.subr.mxu0 0.0
        %v5549 = vand.u32 %v4996, 4294901760
        %5550 = vmatpush1.xpose.msra.mxu0 %v5549
        %5551 = vmatprep.subr.mxu0 0.0
        %v5552 = vand.u32 %v4998, 4294901760
        %5553 = vmatpush1.xpose.msra.mxu0 %v5552
        %5554 = vmatprep.subr.mxu0 0.0
        %v5555 = vand.u32 %v5000, 4294901760
        %5556 = vmatpush1.xpose.msra.mxu0 %v5555
        %5557 = vmatprep.subr.mxu0 0.0
        %v5558 = vand.u32 %v5002, 4294901760
        %5559 = vmatpush1.xpose.msra.mxu0 %v5558
        %5560 = vmatprep.subr.mxu0 0.0
        %v5561 = vand.u32 %v5004, 4294901760
        %5562 = vmatpush1.xpose.msra.mxu0 %v5561
        %5563 = vmatprep.subr.mxu0 0.0
        %v5564 = vand.u32 %v5006, 4294901760
        %5565 = vmatpush1.xpose.msra.mxu0 %v5564
        %5566 = vmatprep.subr.mxu0 0.0
        %v5567 = vand.u32 %v5008, 4294901760
        %5568 = vmatpush1.xpose.msra.mxu0 %v5567
        %5569 = vmatprep.subr.mxu0 0.0
        %v5570 = vand.u32 %v5010, 4294901760
        %5571 = vmatpush1.xpose.msra.mxu0 %v5570
        %5572 = vmatprep.subr.mxu0 0.0
        %v5573 = vand.u32 %v5012, 4294901760
        %5574 = vmatpush1.xpose.msra.mxu0 %v5573
        %5575 = vmatprep.subr.mxu0 0.0
        %v5576 = vand.u32 %v5014, 4294901760
        %5577 = vmatpush1.xpose.msra.mxu0 %v5576
        %5578 = vmatprep.subr.mxu0 0.0
        %v5579 = vand.u32 %v5016, 4294901760
        %5580 = vmatpush1.xpose.msra.mxu0 %v5579
        %5581 = vmatprep.subr.mxu0 0.0
        %v5582 = vand.u32 %v5018, 4294901760
        %5583 = vmatpush1.xpose.msra.mxu0 %v5582
        %5584 = vmatprep.subr.mxu0 0.0
        %v5585 = vand.u32 %v5020, 4294901760
        %5586 = vmatpush1.xpose.msra.mxu0 %v5585
        %5587 = vmatprep.subr.mxu0 0.0
        %v5588 = vand.u32 %v5022, 4294901760
        %5589 = vmatpush1.xpose.msra.mxu0 %v5588
        %5590 = vmatprep.subr.mxu0 0.0
        %v5591 = vand.u32 %v5024, 4294901760
        %5592 = vmatpush1.xpose.msra.mxu0 %v5591
        %5593 = vmatprep.subr.mxu0 0.0
        %v5594 = vand.u32 %v5026, 4294901760
        %5595 = vmatpush1.xpose.msra.mxu0 %v5594
        %5596 = vmatprep.subr.mxu0 0.0
        %v5597 = vand.u32 %v5028, 4294901760
        %5598 = vmatpush1.xpose.msra.mxu0 %v5597
        %5599 = vmatprep.subr.mxu0 0.0
        %v5600 = vand.u32 %v5030, 4294901760
        %5601 = vmatpush1.xpose.msra.mxu0 %v5600
        %5602 = vmatprep.subr.mxu0 0.0
        %v5603 = vand.u32 %v5032, 4294901760
        %5604 = vmatpush1.xpose.msra.mxu0 %v5603
        %5605 = vmatprep.subr.mxu0 0.0
        %v5606 = vand.u32 %v5034, 4294901760
        %5607 = vmatpush1.xpose.msra.mxu0 %v5606
        %5608 = vmatprep.subr.mxu0 0.0
        %v5609 = vand.u32 %v5036, 4294901760
        %5610 = vmatpush1.xpose.msra.mxu0 %v5609
        %5611 = vmatprep.mubr.f32.mxu0 0.0
        %v5612 = vand.u32 %v4972, 4294901760
        %v5613 = vsub.f32 %v4972, %v5612
        %v5614 = vand.u32 %v5613, 4294901760
        %5615 = vmatmul.mubr.f32.gmra.mrb[0].mxu0 %v5614
        %v5616 = vpop.f32.mrb[0].mxu0
        %v5617 = vadd.f32 %v5511, %v5616
        %v5618 = vpop.f32.mrb[0].mxu0
        %v5619 = vadd.f32 %v5513, %v5618
        %5620 = vdwg.mxu0
        %5621 = vmatprep.subr.mxu0 0.0
        %v5622 = vand.u32 %v4974, 4294901760
        %v5623 = vsub.f32 %v4974, %v5622
        %v5624 = vand.u32 %v5623, 4294901760
        %5625 = vmatpush1.xpose.msra.mxu0 %v5624
        %5626 = vmatprep.subr.mxu0 0.0
        %v5627 = vand.u32 %v4976, 4294901760
        %v5628 = vsub.f32 %v4976, %v5627
        %v5629 = vand.u32 %v5628, 4294901760
        %5630 = vmatpush1.xpose.msra.mxu0 %v5629
        %5631 = vmatprep.subr.mxu0 0.0
        %v5632 = vand.u32 %v4978, 4294901760
        %v5633 = vsub.f32 %v4978, %v5632
        %v5634 = vand.u32 %v5633, 4294901760
        %5635 = vmatpush1.xpose.msra.mxu0 %v5634
        %5636 = vmatprep.subr.mxu0 0.0
        %v5637 = vand.u32 %v4980, 4294901760
        %v5638 = vsub.f32 %v4980, %v5637
        %v5639 = vand.u32 %v5638, 4294901760
        %5640 = vmatpush1.xpose.msra.mxu0 %v5639
        %5641 = vmatprep.subr.mxu0 0.0
        %v5642 = vand.u32 %v4982, 4294901760
        %v5643 = vsub.f32 %v4982, %v5642
        %v5644 = vand.u32 %v5643, 4294901760
        %5645 = vmatpush1.xpose.msra.mxu0 %v5644
        %5646 = vmatprep.subr.mxu0 0.0
        %v5647 = vand.u32 %v4984, 4294901760
        %v5648 = vsub.f32 %v4984, %v5647
        %v5649 = vand.u32 %v5648, 4294901760
        %5650 = vmatpush1.xpose.msra.mxu0 %v5649
        %5651 = vmatprep.subr.mxu0 0.0
        %v5652 = vand.u32 %v4986, 4294901760
        %v5653 = vsub.f32 %v4986, %v5652
        %v5654 = vand.u32 %v5653, 4294901760
        %5655 = vmatpush1.xpose.msra.mxu0 %v5654
        %5656 = vmatprep.subr.mxu0 0.0
        %v5657 = vand.u32 %v4988, 4294901760
        %v5658 = vsub.f32 %v4988, %v5657
        %v5659 = vand.u32 %v5658, 4294901760
        %5660 = vmatpush1.xpose.msra.mxu0 %v5659
        %5661 = vmatprep.subr.mxu0 0.0
        %v5662 = vand.u32 %v4990, 4294901760
        %v5663 = vsub.f32 %v4990, %v5662
        %v5664 = vand.u32 %v5663, 4294901760
        %5665 = vmatpush1.xpose.msra.mxu0 %v5664
        %5666 = vmatprep.subr.mxu0 0.0
        %v5667 = vand.u32 %v4992, 4294901760
        %v5668 = vsub.f32 %v4992, %v5667
        %v5669 = vand.u32 %v5668, 4294901760
        %5670 = vmatpush1.xpose.msra.mxu0 %v5669
        %5671 = vmatprep.subr.mxu0 0.0
        %v5672 = vand.u32 %v4994, 4294901760
        %v5673 = vsub.f32 %v4994, %v5672
        %v5674 = vand.u32 %v5673, 4294901760
        %5675 = vmatpush1.xpose.msra.mxu0 %v5674
        %5676 = vmatprep.subr.mxu0 0.0
        %v5677 = vand.u32 %v4996, 4294901760
        %v5678 = vsub.f32 %v4996, %v5677
        %v5679 = vand.u32 %v5678, 4294901760
        %5680 = vmatpush1.xpose.msra.mxu0 %v5679
        %5681 = vmatprep.subr.mxu0 0.0
        %v5682 = vand.u32 %v4998, 4294901760
        %v5683 = vsub.f32 %v4998, %v5682
        %v5684 = vand.u32 %v5683, 4294901760
        %5685 = vmatpush1.xpose.msra.mxu0 %v5684
        %5686 = vmatprep.subr.mxu0 0.0
        %v5687 = vand.u32 %v5000, 4294901760
        %v5688 = vsub.f32 %v5000, %v5687
        %v5689 = vand.u32 %v5688, 4294901760
        %5690 = vmatpush1.xpose.msra.mxu0 %v5689
        %5691 = vmatprep.subr.mxu0 0.0
        %v5692 = vand.u32 %v5002, 4294901760
        %v5693 = vsub.f32 %v5002, %v5692
        %v5694 = vand.u32 %v5693, 4294901760
        %5695 = vmatpush1.xpose.msra.mxu0 %v5694
        %5696 = vmatprep.subr.mxu0 0.0
        %v5697 = vand.u32 %v5004, 4294901760
        %v5698 = vsub.f32 %v5004, %v5697
        %v5699 = vand.u32 %v5698, 4294901760
        %5700 = vmatpush1.xpose.msra.mxu0 %v5699
        %5701 = vmatprep.subr.mxu0 0.0
        %v5702 = vand.u32 %v5006, 4294901760
        %v5703 = vsub.f32 %v5006, %v5702
        %v5704 = vand.u32 %v5703, 4294901760
        %5705 = vmatpush1.xpose.msra.mxu0 %v5704
        %5706 = vmatprep.subr.mxu0 0.0
        %v5707 = vand.u32 %v5008, 4294901760
        %v5708 = vsub.f32 %v5008, %v5707
        %v5709 = vand.u32 %v5708, 4294901760
        %5710 = vmatpush1.xpose.msra.mxu0 %v5709
        %5711 = vmatprep.subr.mxu0 0.0
        %v5712 = vand.u32 %v5010, 4294901760
        %v5713 = vsub.f32 %v5010, %v5712
        %v5714 = vand.u32 %v5713, 4294901760
        %5715 = vmatpush1.xpose.msra.mxu0 %v5714
        %5716 = vmatprep.subr.mxu0 0.0
        %v5717 = vand.u32 %v5012, 4294901760
        %v5718 = vsub.f32 %v5012, %v5717
        %v5719 = vand.u32 %v5718, 4294901760
        %5720 = vmatpush1.xpose.msra.mxu0 %v5719
        %5721 = vmatprep.subr.mxu0 0.0
        %v5722 = vand.u32 %v5014, 4294901760
        %v5723 = vsub.f32 %v5014, %v5722
        %v5724 = vand.u32 %v5723, 4294901760
        %5725 = vmatpush1.xpose.msra.mxu0 %v5724
        %5726 = vmatprep.subr.mxu0 0.0
        %v5727 = vand.u32 %v5016, 4294901760
        %v5728 = vsub.f32 %v5016, %v5727
        %v5729 = vand.u32 %v5728, 4294901760
        %5730 = vmatpush1.xpose.msra.mxu0 %v5729
        %5731 = vmatprep.subr.mxu0 0.0
        %v5732 = vand.u32 %v5018, 4294901760
        %v5733 = vsub.f32 %v5018, %v5732
        %v5734 = vand.u32 %v5733, 4294901760
        %5735 = vmatpush1.xpose.msra.mxu0 %v5734
        %5736 = vmatprep.subr.mxu0 0.0
        %v5737 = vand.u32 %v5020, 4294901760
        %v5738 = vsub.f32 %v5020, %v5737
        %v5739 = vand.u32 %v5738, 4294901760
        %5740 = vmatpush1.xpose.msra.mxu0 %v5739
        %5741 = vmatprep.subr.mxu0 0.0
        %v5742 = vand.u32 %v5022, 4294901760
        %v5743 = vsub.f32 %v5022, %v5742
        %v5744 = vand.u32 %v5743, 4294901760
        %5745 = vmatpush1.xpose.msra.mxu0 %v5744
        %5746 = vmatprep.subr.mxu0 0.0
        %v5747 = vand.u32 %v5024, 4294901760
        %v5748 = vsub.f32 %v5024, %v5747
        %v5749 = vand.u32 %v5748, 4294901760
        %5750 = vmatpush1.xpose.msra.mxu0 %v5749
        %5751 = vmatprep.subr.mxu0 0.0
        %v5752 = vand.u32 %v5026, 4294901760
        %v5753 = vsub.f32 %v5026, %v5752
        %v5754 = vand.u32 %v5753, 4294901760
        %5755 = vmatpush1.xpose.msra.mxu0 %v5754
        %5756 = vmatprep.subr.mxu0 0.0
        %v5757 = vand.u32 %v5028, 4294901760
        %v5758 = vsub.f32 %v5028, %v5757
        %v5759 = vand.u32 %v5758, 4294901760
        %5760 = vmatpush1.xpose.msra.mxu0 %v5759
        %5761 = vmatprep.subr.mxu0 0.0
        %v5762 = vand.u32 %v5030, 4294901760
        %v5763 = vsub.f32 %v5030, %v5762
        %v5764 = vand.u32 %v5763, 4294901760
        %5765 = vmatpush1.xpose.msra.mxu0 %v5764
        %5766 = vmatprep.subr.mxu0 0.0
        %v5767 = vand.u32 %v5032, 4294901760
        %v5768 = vsub.f32 %v5032, %v5767
        %v5769 = vand.u32 %v5768, 4294901760
        %5770 = vmatpush1.xpose.msra.mxu0 %v5769
        %5771 = vmatprep.subr.mxu0 0.0
        %v5772 = vand.u32 %v5034, 4294901760
        %v5773 = vsub.f32 %v5034, %v5772
        %v5774 = vand.u32 %v5773, 4294901760
        %5775 = vmatpush1.xpose.msra.mxu0 %v5774
        %5776 = vmatprep.subr.mxu0 0.0
        %v5777 = vand.u32 %v5036, 4294901760
        %v5778 = vsub.f32 %v5036, %v5777
        %v5779 = vand.u32 %v5778, 4294901760
        %5780 = vmatpush1.xpose.msra.mxu0 %v5779
        %5781 = vmatprep.mubr.f32.mxu0 0.0
        %v5782 = vand.u32 %v4972, 4294901760
        %5783 = vmatmul.mubr.f32.gmra.mrb[0].mxu0 %v5782
        %v5784 = vpop.f32.mrb[0].mxu0
        %v5785 = vadd.f32 %v5617, %v5784
        %v5786 = vpop.f32.mrb[0].mxu0
        %v5787 = vadd.f32 %v5619, %v5786
        %5788 = vdwg.mxu0
        %5789 = vmatprep.subr.mxu0 0.0
        %v5790 = vand.u32 %v4974, 4294901760
        %5791 = vmatpush1.xpose.msra.mxu0 %v5790
        %5792 = vmatprep.subr.mxu0 0.0
        %v5793 = vand.u32 %v4976, 4294901760
        %5794 = vmatpush1.xpose.msra.mxu0 %v5793
        %5795 = vmatprep.subr.mxu0 0.0
        %v5796 = vand.u32 %v4978, 4294901760
        %5797 = vmatpush1.xpose.msra.mxu0 %v5796
        %5798 = vmatprep.subr.mxu0 0.0
        %v5799 = vand.u32 %v4980, 4294901760
        %5800 = vmatpush1.xpose.msra.mxu0 %v5799
        %5801 = vmatprep.subr.mxu0 0.0
        %v5802 = vand.u32 %v4982, 4294901760
        %5803 = vmatpush1.xpose.msra.mxu0 %v5802
        %5804 = vmatprep.subr.mxu0 0.0
        %v5805 = vand.u32 %v4984, 4294901760
        %5806 = vmatpush1.xpose.msra.mxu0 %v5805
        %5807 = vmatprep.subr.mxu0 0.0
        %v5808 = vand.u32 %v4986, 4294901760
        %5809 = vmatpush1.xpose.msra.mxu0 %v5808
        %5810 = vmatprep.subr.mxu0 0.0
        %v5811 = vand.u32 %v4988, 4294901760
        %5812 = vmatpush1.xpose.msra.mxu0 %v5811
        %5813 = vmatprep.subr.mxu0 0.0
        %v5814 = vand.u32 %v4990, 4294901760
        %5815 = vmatpush1.xpose.msra.mxu0 %v5814
        %5816 = vmatprep.subr.mxu0 0.0
        %v5817 = vand.u32 %v4992, 4294901760
        %5818 = vmatpush1.xpose.msra.mxu0 %v5817
        %5819 = vmatprep.subr.mxu0 0.0
        %v5820 = vand.u32 %v4994, 4294901760
        %5821 = vmatpush1.xpose.msra.mxu0 %v5820
        %5822 = vmatprep.subr.mxu0 0.0
        %v5823 = vand.u32 %v4996, 4294901760
        %5824 = vmatpush1.xpose.msra.mxu0 %v5823
        %5825 = vmatprep.subr.mxu0 0.0
        %v5826 = vand.u32 %v4998, 4294901760
        %5827 = vmatpush1.xpose.msra.mxu0 %v5826
        %5828 = vmatprep.subr.mxu0 0.0
        %v5829 = vand.u32 %v5000, 4294901760
        %5830 = vmatpush1.xpose.msra.mxu0 %v5829
        %5831 = vmatprep.subr.mxu0 0.0
        %v5832 = vand.u32 %v5002, 4294901760
        %5833 = vmatpush1.xpose.msra.mxu0 %v5832
        %5834 = vmatprep.subr.mxu0 0.0
        %v5835 = vand.u32 %v5004, 4294901760
        %5836 = vmatpush1.xpose.msra.mxu0 %v5835
        %5837 = vmatprep.subr.mxu0 0.0
        %v5838 = vand.u32 %v5006, 4294901760
        %5839 = vmatpush1.xpose.msra.mxu0 %v5838
        %5840 = vmatprep.subr.mxu0 0.0
        %v5841 = vand.u32 %v5008, 4294901760
        %5842 = vmatpush1.xpose.msra.mxu0 %v5841
        %5843 = vmatprep.subr.mxu0 0.0
        %v5844 = vand.u32 %v5010, 4294901760
        %5845 = vmatpush1.xpose.msra.mxu0 %v5844
        %5846 = vmatprep.subr.mxu0 0.0
        %v5847 = vand.u32 %v5012, 4294901760
        %5848 = vmatpush1.xpose.msra.mxu0 %v5847
        %5849 = vmatprep.subr.mxu0 0.0
        %v5850 = vand.u32 %v5014, 4294901760
        %5851 = vmatpush1.xpose.msra.mxu0 %v5850
        %5852 = vmatprep.subr.mxu0 0.0
        %v5853 = vand.u32 %v5016, 4294901760
        %5854 = vmatpush1.xpose.msra.mxu0 %v5853
        %5855 = vmatprep.subr.mxu0 0.0
        %v5856 = vand.u32 %v5018, 4294901760
        %5857 = vmatpush1.xpose.msra.mxu0 %v5856
        %5858 = vmatprep.subr.mxu0 0.0
        %v5859 = vand.u32 %v5020, 4294901760
        %5860 = vmatpush1.xpose.msra.mxu0 %v5859
        %5861 = vmatprep.subr.mxu0 0.0
        %v5862 = vand.u32 %v5022, 4294901760
        %5863 = vmatpush1.xpose.msra.mxu0 %v5862
        %5864 = vmatprep.subr.mxu0 0.0
        %v5865 = vand.u32 %v5024, 4294901760
        %5866 = vmatpush1.xpose.msra.mxu0 %v5865
        %5867 = vmatprep.subr.mxu0 0.0
        %v5868 = vand.u32 %v5026, 4294901760
        %5869 = vmatpush1.xpose.msra.mxu0 %v5868
        %5870 = vmatprep.subr.mxu0 0.0
        %v5871 = vand.u32 %v5028, 4294901760
        %5872 = vmatpush1.xpose.msra.mxu0 %v5871
        %5873 = vmatprep.subr.mxu0 0.0
        %v5874 = vand.u32 %v5030, 4294901760
        %5875 = vmatpush1.xpose.msra.mxu0 %v5874
        %5876 = vmatprep.subr.mxu0 0.0
        %v5877 = vand.u32 %v5032, 4294901760
        %5878 = vmatpush1.xpose.msra.mxu0 %v5877
        %5879 = vmatprep.subr.mxu0 0.0
        %v5880 = vand.u32 %v5034, 4294901760
        %5881 = vmatpush1.xpose.msra.mxu0 %v5880
        %5882 = vmatprep.subr.mxu0 0.0
        %v5883 = vand.u32 %v5036, 4294901760
        %5884 = vmatpush1.xpose.msra.mxu0 %v5883
        %5885 = vmatprep.mubr.f32.mxu0 0.0
        %v5886 = vand.u32 %v4972, 4294901760
        %5887 = vmatmul.mubr.f32.gmra.mrb[0].mxu0 %v5886
        %v5888 = vpop.f32.mrb[0].mxu0
        %v5889 = vadd.f32 %v5785, %v5888
        %v5890 = vpop.f32.mrb[0].mxu0
        %v5891 = vadd.f32 %v5787, %v5890
        %5892 = vdwg.mxu0
        %v5893 = vadd.f32 %v4885, %v5889
        %v5894 = vadd.f32 %v4887, %v5891
        %v5895 = vld [vmem:[%s8] sm:$0xff]
        %5897 = vset.pattern.permute.xlu0 0
        %5898 = vperm.xlu0 %5897, %v5895
        %v5899 = vpop.permute.xlu0 %5898
        %v5901 = vadd.f32 %v5893, %v5899
        %v5902 = vadd.f32 %v5894, %v5899
        %5903 = vst [vmem:[%s339] sm:$0xff] %v5901
        %5904 = vst [vmem:[%s339 + $0x8] sm:$0xff] %v5902
        %s5905 = sand.u32 %s239, 1
        %s5906 = scalar_lea.sflag [#allocation3], %s5905
        %s5907 = sand.u32 %s239, 1
        %s5908 = smul.addr %s5907, 16
        %s5909 = scalar_lea.vmem [#allocation2], %s5908
        // Predicated region
        $region57: #{tpu_custom_call.1} parent=55 // pred_check
          %p5910 = pneg %p249
        $region58: #{tpu_custom_call.1} parent=55 // pred_check_branch
          %5912 = sbr.rel (%p5910) target = $region60
        $region59: #{tpu_custom_call.1} parent=55 // pred_region
          %s5913 = smul.u32 2, %s28
          %s5915 = ssub.s32 256, 256
          %5916 = vsyncadd %s5906, %s5915
          %s5917 = smul.addr %s27, 2
          %s5918 = sadd.s32 %s5913, %s5917
          %s5919 = smul.addr %s5918, 128
          %s5920 = scalar_lea.hbm %s9, %s5919
          %s5922 = sshll.u32 %s5909, 4
          %s5923 = int_to_ptr.vmem [resolvable:$true] %s5922
          %5925 = dma.vmem_to_hbm [thread:$0]  %s5923, 256, %s5920, %s5906
        $region60: #{tpu_custom_call.1} parent=55 // pred_fallthru
          _
      $region56: #{tpu_custom_call.1} parent=5 // pred_fallthru
        _
      %p5926 = scmp.le.s32.totalorder 2, %s18
      // Predicated region
      $region61: #{tpu_custom_call.1} parent=5 // pred_check
        %p5927 = pneg %p5926
      $region62: #{tpu_custom_call.1} parent=5 // pred_check_branch
        %5929 = sbr.rel (%p5927) target = $region64
      $region63: #{tpu_custom_call.1} parent=5 // pred_region
        %s5930 = ssub.s32 %s18, 2
        // Predicated region
        $region65: #{tpu_custom_call.1} parent=63 // pred_check
          %p5931 = pneg %p255
        $region66: #{tpu_custom_call.1} parent=63 // pred_check_branch
          %5933 = sbr.rel (%p5931) target = $region68
        $region67: #{tpu_custom_call.1} parent=63 // pred_region
          %s5934 = sand.u32 %s240, 1
          %s5935 = scalar_lea.sflag [#allocation3], %s5934
          %s5936 = sand.u32 %s240, 1
          %s5937 = smul.addr %s5936, 16
          %s5938 = scalar_lea.vmem [#allocation2], %s5937
          %5939 = dma.done %s5935, 256
        $region68: #{tpu_custom_call.1} parent=63 // pred_fallthru
          _
      $region64: #{tpu_custom_call.1} parent=5 // pred_fallthru
        _
    $region6: #{tpu_custom_call.1} parent=1 // loop_footer
      %s22 = sadd.s32 1, %s18
    $region7: #{tpu_custom_call.1} parent=1 // loop_footer_branch
      %17 = sbr.rel target = $region3
    $region8: #{tpu_custom_call.1} parent=1 // loop_exit
      _
    %5940 = vsyncpa [#allocation3], 1
    %s5941 = scalar_lea.sflag [#allocation3], 1
    %5942 = vsyncpa %s5941, 1

</llo_original>
